<compile_context>
chip_gen: v7x
topology: tpu7x:2x2x1
jax: 0.10.0
libtpu: 0.0.40
codegen_flags: <defaults>
</compile_context>

<pallas_src>
import functools
import math

import jax
import jax.numpy as jnp
from jax.experimental import pallas as pl
from jax.experimental.pallas import tpu as pltpu


# NOTE: the reference repo's custom LayerNorm uses eps=1e-12 (not nn.LayerNorm's 1e-5).
LN_EPS = 1e-12


def _layer_norm(x, gamma, beta, eps=LN_EPS):
    mean = jnp.mean(x, axis=-1, keepdims=True)
    var = jnp.mean((x - mean) ** 2, axis=-1, keepdims=True)
    return (x - mean) * jax.lax.rsqrt(var + eps) * gamma + beta


def encoder_layer_kernel(num_heads,
                         x_ref, bias_ref,
                         wqkv_ref, bqkv_ref, wo_ref, bo_ref,
                         gamma_ref, beta_ref,
                         w1_ref, b1_ref, w2_ref, b2_ref,
                         o_ref):
    TB, S, D = x_ref.shape
    H = num_heads
    dh = D // H

    x = x_ref[...].astype(jnp.float32)            # (TB, S, D)
    x2 = x.reshape(TB * S, D)                     # flatten: fat M for the MXU

    # ---- fused QKV projection: one (TB*S, D) @ (D, 3D) matmul, bf16 in / f32 acc.
    # The 1/sqrt(dh) scale is already folded into the Q columns of wqkv/bqkv.
    qkv = jnp.dot(x2.astype(jnp.bfloat16), wqkv_ref[...],
                  preferred_element_type=jnp.float32) + bqkv_ref[...]   # (TB*S, 3D)
    qkv_bf = qkv.astype(jnp.bfloat16)

    # Additive key mask bias, precomputed outside the kernel: (TB, 1, S), 0 / -1e9.
    bias = bias_ref[...].astype(jnp.float32)

    # ---- multi-head attention: per-head score/softmax/PV (static unroll), then
    #      all head contexts are merged and a SINGLE full-contraction Wo matmul
    #      runs (no per-head K=dh output-projection matmuls).
    ctx_heads = []
    for h in range(H):                            # static unroll over heads
        lo = h * dh
        q_h = qkv_bf[:, lo:lo + dh].reshape(TB, S, dh)
        k_h = qkv_bf[:, D + lo:D + lo + dh].reshape(TB, S, dh)
        v_h = qkv_bf[:, 2 * D + lo:2 * D + lo + dh].reshape(TB, S, dh)

        s = jnp.einsum('bqd,bkd->bqk', q_h, k_h,
                       preferred_element_type=jnp.float32) + bias       # (TB, S, S)
        m = jnp.max(s, axis=-1, keepdims=True)
        p = jnp.exp(s - m)
        p = p / jnp.sum(p, axis=-1, keepdims=True)    # exact divide (torch parity)

        ctx_heads.append(
            jnp.einsum('bqk,bkd->bqd', p.astype(jnp.bfloat16), v_h,
                       preferred_element_type=jnp.float32))             # (TB, S, dh)

    # merge heads -> (TB*S, D) slab; one full-K output projection on the MXU.
    ctx = jnp.concatenate(ctx_heads, axis=-1).reshape(TB * S, D)
    att = jnp.dot(ctx.astype(jnp.bfloat16), wo_ref[...],
                  preferred_element_type=jnp.float32) + bo_ref[...]

    gamma = gamma_ref[...]
    beta = beta_ref[...]

    # residual + LayerNorm (the SAME norm params are reused twice, as in PyTorch)
    y = _layer_norm(x2 + att, gamma, beta)

    # FFN: Linear -> ReLU -> Linear (dropout = identity at inference)
    h1 = jnp.maximum(
        jnp.dot(y.astype(jnp.bfloat16), w1_ref[...],
                preferred_element_type=jnp.float32) + b1_ref[...], 0.0)
    f = jnp.dot(h1.astype(jnp.bfloat16), w2_ref[...],
                preferred_element_type=jnp.float32) + b2_ref[...]

    z = _layer_norm(y + f, gamma, beta)
    o_ref[...] = z.reshape(TB, S, D).astype(o_ref.dtype)


# --------------------------------------------------------------------------
# capability / sizing helpers
# --------------------------------------------------------------------------

@functools.lru_cache(maxsize=None)
def _single_buffer_supported():
    """Explicit one-time probe: does this jax build accept pl.Buffered(1)?"""
    if not hasattr(pl, "Buffered"):
        return False

    def _probe_kernel(x_ref, o_ref):
        o_ref[...] = x_ref[...] + 1.0

    try:
        f = pl.pallas_call(
            _probe_kernel,
            out_shape=jax.ShapeDtypeStruct((8, 128), jnp.float32),
            grid=(1,),
            in_specs=[pl.BlockSpec((8, 128), lambda i: (0, 0),
                                   pipeline_mode=pl.Buffered(1))],
            out_specs=pl.BlockSpec((8, 128), lambda i: (0, 0)),
        )
        res = jax.block_until_ready(f(jnp.zeros((8, 128), jnp.float32)))
        return bool(jnp.all(res == 1.0))
    except Exception:
        return False


def _vmem_capacity_bytes():
    try:
        cap = int(pltpu.get_tpu_info().vmem_capacity_bytes)
        if cap > 0:
            return cap
    except Exception:
        pass
    return 128 << 20   # conservative default (v5e/v6e)


def _vmem_ceiling_bytes():
    # ~75% of physical VMEM: ≈96 MiB on v5e/v6e (128 MiB), ≈48 MiB on v7x (64 MiB).
    return int(0.75 * _vmem_capacity_bytes())


def _vmem_estimate_bytes(TB, S, D, F):
    weights = 2 * (3 * D * D + D * D + D * F + F * D)          # bf16 weights
    smalls = 4 * (3 * D + 4 * D + F)                           # f32 biases / gamma / beta
    rows = TB * S
    acts = 4 * rows * (3 * D + 3 * D + F + 4 * D) + 2 * 4 * TB * S * S
    io = 2 * 2 * 2 * rows * D + 4 * TB * S                     # bf16 double-buffered x / out
    return weights + smalls + acts + io


def _vmem_limit_bytes(TB, S, D, F):
    est = 3 * _vmem_estimate_bytes(TB, S, D, F) + (2 << 20)
    return int(min(max(16 << 20, est), _vmem_ceiling_bytes()))


def _pick_batch_tile(B, S, D, F, target_rows=256):
    """Pick TB (a divisor of B).  Keep >= 2 grid steps when B >= 2 so the
    ("parallel",) batch axis can shard across v7x's two TensorCores, and shrink
    TB if the per-step VMEM estimate would exceed this generation's ceiling."""
    max_tb = B if B < 2 else max(1, B // 2)
    tb = max(1, min(max_tb, max(1, target_rows // max(S, 1))))
    while B % tb:
        tb -= 1
    ceiling = _vmem_ceiling_bytes()
    while tb > 1 and 3 * _vmem_estimate_bytes(tb, S, D, F) + (2 << 20) > ceiling:
        tb -= 1
        while B % tb:
            tb -= 1
    return tb


# --------------------------------------------------------------------------
# pallas_call wrapper
# --------------------------------------------------------------------------

def _encoder_layer_call(x, bias, fp, num_heads, tb):
    B, S, D = x.shape
    F = fp["w1"].shape[1]

    if _single_buffer_supported():
        # grid-invariant weights: single-buffer them (index_map is constant).
        def wspec(shape):
            return pl.BlockSpec(shape, lambda b: (0, 0), pipeline_mode=pl.Buffered(1))
    else:
        def wspec(shape):
            return pl.BlockSpec(shape, lambda b: (0, 0))

    in_specs = [
        pl.BlockSpec((tb, S, D), lambda b: (b, 0, 0)),   # x        (per batch tile)
        pl.BlockSpec((tb, 1, S), lambda b: (b, 0, 0)),   # mask bias (per batch tile)
        wspec((D, 3 * D)), wspec((1, 3 * D)),            # Wqkv, bqkv (scale folded in)
        wspec((D, D)), wspec((1, D)),                    # Wo, bo
        wspec((1, D)), wspec((1, D)),                    # gamma, beta
        wspec((D, F)), wspec((1, F)),                    # W1, b1
        wspec((F, D)), wspec((1, D)),                    # W2, b2
    ]
    return pl.pallas_call(
        functools.partial(encoder_layer_kernel, num_heads),
        out_shape=jax.ShapeDtypeStruct((B, S, D), x.dtype),
        grid=(B // tb,),
        in_specs=in_specs,
        out_specs=pl.BlockSpec((tb, S, D), lambda b: (b, 0, 0)),
        compiler_params=pltpu.CompilerParams(
            dimension_semantics=("parallel",),
            vmem_limit_bytes=_vmem_limit_bytes(tb, S, D, F)),
    )(x, bias,
      fp["wqkv"], fp["bqkv"], fp["wo"], fp["bo"], fp["gamma"], fp["beta"],
      fp["w1"], fp["b1"], fp["w2"], fp["b2"])


# --------------------------------------------------------------------------
# parameter prep (runs once, outside jit) + forward
# --------------------------------------------------------------------------

def _prepare_layer(lp, num_heads):
    """Fuse QKV, fold the attention scale into Q, and cast matmul weights to bf16."""
    d_model = lp["wq"].shape[0]
    dh = d_model // num_heads
    scale = 1.0 / math.sqrt(dh)
    wqkv = jnp.concatenate([lp["wq"] * scale, lp["wk"], lp["wv"]], axis=1)
    bqkv = jnp.concatenate([lp["bq"] * scale, lp["bk"], lp["bv"]], axis=1)
    return {
        "wqkv": wqkv.astype(jnp.bfloat16),
        "bqkv": bqkv.astype(jnp.float32),
        "wo": lp["wo"].astype(jnp.bfloat16),
        "bo": lp["bo"].astype(jnp.float32),
        "gamma": lp["gamma"].astype(jnp.float32),
        "beta": lp["beta"].astype(jnp.float32),
        "w1": lp["w1"].astype(jnp.bfloat16),
        "b1": lp["b1"].astype(jnp.float32),
        "w2": lp["w2"].astype(jnp.bfloat16),
        "b2": lp["b2"].astype(jnp.float32),
    }


def prepare_encoder_params(params, num_heads):
    """Hoist per-layer weight fusion / bf16 cast out of the (jitted) forward."""
    _ = _single_buffer_supported()   # warm the Buffered(1) capability probe
    return {
        "tok_emb": params["tok_emb"].astype(jnp.float32),
        "pos_enc": params["pos_enc"].astype(jnp.float32),
        "layers": [_prepare_layer(lp, num_heads) for lp in params["layers"]],
    }


@functools.partial(jax.jit, static_argnums=(3,))
def encoder_forward(token_ids, s_mask, prepared, num_heads):
    # EmbeddingLayer: token gather + positional encoding in plain JAX (glue);
    # dropout = identity at inference.
    B, S = token_ids.shape
    x = prepared["tok_emb"][token_ids] + prepared["pos_enc"][:S][None, :, :]
    # bf16 residual stream between layers (halves activation DMA bytes);
    # LayerNorm / softmax math stays f32 inside the kernel.
    x = x.astype(jnp.bfloat16)
    # additive key-mask bias, computed ONCE: 0 where attended, -1e9 where padded.
    bias = ((s_mask.astype(jnp.float32) - 1.0) * 1e9)[:, None, :]   # (B, 1, S)
    D = prepared["layers"][0]["wo"].shape[0]
    F = prepared["layers"][0]["w1"].shape[1]
    tb = _pick_batch_tile(B, S, D, F)
    for fp in prepared["layers"]:
        x = _encoder_layer_call(x, bias, fp, num_heads, tb)
    return x.astype(jnp.float32)


# --------------------------------------------------------------------------
# param init (reference-style, random weights)
# --------------------------------------------------------------------------

def sinusoidal_pos_encoding(max_len, d_model):
    pos = jnp.arange(max_len, dtype=jnp.float32)[:, None]
    i = jnp.arange(0, d_model, 2, dtype=jnp.float32)
    angles = pos / jnp.power(10000.0, i / d_model)
    pe = jnp.zeros((max_len, d_model), dtype=jnp.float32)
    pe = pe.at[:, 0::2].set(jnp.sin(angles))
    pe = pe.at[:, 1::2].set(jnp.cos(angles))
    return pe


def init_params(key, d_model, d_ff, num_heads, n_layers, s_voca_len, max_len):
    keys = jax.random.split(key, 2 + n_layers)
    params = {
        "tok_emb": 0.02 * jax.random.normal(keys[0], (s_voca_len, d_model),
                                            dtype=jnp.float32),
        "pos_enc": sinusoidal_pos_encoding(max_len, d_model),
        "layers": [],
    }
    for li in range(n_layers):
        lk = jax.random.split(keys[2 + li], 6)
        s = 0.02
        lp = {
            "wq": s * jax.random.normal(lk[0], (d_model, d_model), jnp.float32),
            "bq": jnp.zeros((1, d_model), jnp.float32),
            "wk": s * jax.random.normal(lk[1], (d_model, d_model), jnp.float32),
            "bk": jnp.zeros((1, d_model), jnp.float32),
            "wv": s * jax.random.normal(lk[2], (d_model, d_model), jnp.float32),
            "bv": jnp.zeros((1, d_model), jnp.float32),
            "wo": s * jax.random.normal(lk[3], (d_model, d_model), jnp.float32),
            "bo": jnp.zeros((1, d_model), jnp.float32),
            "gamma": jnp.ones((1, d_model), jnp.float32),
            "beta": jnp.zeros((1, d_model), jnp.float32),
            "w1": s * jax.random.normal(lk[4], (d_model, d_ff), jnp.float32),
            "b1": jnp.zeros((1, d_ff), jnp.float32),
            "w2": s * jax.random.normal(lk[5], (d_ff, d_model), jnp.float32),
            "b2": jnp.zeros((1, d_model), jnp.float32),
        }
        params["layers"].append(lp)
    return params


if __name__ == "__main__":
    # Small, lane-dense shapes (D = 128, F = 256 keep matmul N / output lanes aligned).
    B, S = 2, 16
    d_model, d_ff, num_heads = 128, 256, 4
    n_layers, s_voca_len, max_len = 2, 50, 32
    # prob (dropout) treated as 0 / eval mode.

    key = jax.random.PRNGKey(0)
    k_tok, k_par = jax.random.split(key)
    token_ids = jax.random.randint(k_tok, (B, S), 0, s_voca_len, dtype=jnp.int32)
    # Source mask: 1 = real token, 0 = padding (pad the tail of batch element 1).
    s_mask = jnp.ones((B, S), dtype=jnp.float32)
    s_mask = s_mask.at[1, 12:].set(0.0)

    params = init_params(k_par, d_model, d_ff, num_heads, n_layers,
                         s_voca_len, max_len)
    prepared = prepare_encoder_params(params, num_heads)

    out = encoder_forward(token_ids, s_mask, prepared, num_heads)
    out = jax.block_until_ready(out)
    assert out.shape == (B, S, d_model) and out.dtype == jnp.float32
    assert bool(jnp.all(jnp.isfinite(out)))
    print("KERNEL_OK")
</pallas_src>

<mosaic_0001>
module attributes {stable_mosaic.version = 11 : i64} {
  func.func @_probe_kernel(%arg0: i32, %arg1: memref<8x128xf32, #tpu.memory_space<vmem>>, %arg2: memref<8x128xf32, #tpu.memory_space<vmem>>) attributes {dimension_semantics = [#tpu.dimension_semantics<arbitrary>], iteration_bounds = array<i64: 1>, scalar_prefetch = 0 : i64, scratch_operands = 0 : i64, tpu.core_type = #tpu.core_type<tc>, window_params = [{pipeline_mode = #tpu.pipeline_mode<synchronous>, transform_indices = @transform_0, window_bounds = array<i64: 8, 128>}, {pipeline_mode = #tpu.pipeline_mode<synchronous>, transform_indices = @transform_1, window_bounds = array<i64: 8, 128>}]} {
    %c0 = arith.constant 0 : index
    %c0_0 = arith.constant 0 : index
    %0 = vector.load %arg1[%c0, %c0_0] : memref<8x128xf32, #tpu.memory_space<vmem>>, vector<8x128xf32>
    %cst = arith.constant 1.000000e+00 : f32
    %1 = vector.broadcast %cst : f32 to vector<8x128xf32>
    %2 = arith.addf %0, %1 : vector<8x128xf32>
    %c0_1 = arith.constant 0 : index
    %c0_2 = arith.constant 0 : index
    %3 = vector.load %arg2[%c0_1, %c0_2] : memref<8x128xf32, #tpu.memory_space<vmem>>, vector<8x128xf32>
    tpu.vector_store %arg2[%c0_1, %c0_2], %2 {strides = array<i32>} : memref<8x128xf32, #tpu.memory_space<vmem>>, vector<8x128xf32>,
    return
  }
  func.func @transform_0(%arg0: i32) -> (i32, i32) {
    %c0_i32 = arith.constant 0 : i32
    %c0_i32_0 = arith.constant 0 : i32
    %c0_i32_1 = arith.constant 0 : i32
    return %c0_i32, %c0_i32_0 : i32, i32
  }
  func.func @transform_1(%arg0: i32) -> (i32, i32) {
    %c0_i32 = arith.constant 0 : i32
    %c0_i32_0 = arith.constant 0 : i32
    %c0_i32_1 = arith.constant 0 : i32
    return %c0_i32, %c0_i32_0 : i32, i32
  }
}

module attributes {stable_mosaic.version = 11 : i64} {
  func.func @encoder_layer_kernel(%arg0: i32, %arg1: memref<1x16x128xbf16, #tpu.memory_space<vmem>>, %arg2: memref<1x1x16xf32, #tpu.memory_space<vmem>>, %arg3: memref<128x384xbf16, #tpu.memory_space<vmem>>, %arg4: memref<1x384xf32, #tpu.memory_space<vmem>>, %arg5: memref<128x128xbf16, #tpu.memory_space<vmem>>, %arg6: memref<1x128xf32, #tpu.memory_space<vmem>>, %arg7: memref<1x128xf32, #tpu.memory_space<vmem>>, %arg8: memref<1x128xf32, #tpu.memory_space<vmem>>, %arg9: memref<128x256xbf16, #tpu.memory_space<vmem>>, %arg10: memref<1x256xf32, #tpu.memory_space<vmem>>, %arg11: memref<256x128xbf16, #tpu.memory_space<vmem>>, %arg12: memref<1x128xf32, #tpu.memory_space<vmem>>, %arg13: memref<1x16x128xbf16, #tpu.memory_space<vmem>>) attributes {dimension_semantics = [#tpu.dimension_semantics<parallel>], iteration_bounds = array<i64: 2>, scalar_prefetch = 0 : i64, scratch_operands = 0 : i64, tpu.core_type = #tpu.core_type<tc>, window_params = [{transform_indices = @transform_0, window_bounds = array<i64: 1, 16, 128>}, {transform_indices = @transform_1, window_bounds = array<i64: 1, 1, 16>}, {pipeline_mode = #tpu.pipeline_mode<synchronous>, transform_indices = @transform_2, window_bounds = array<i64: 128, 384>}, {pipeline_mode = #tpu.pipeline_mode<synchronous>, transform_indices = @transform_3, window_bounds = array<i64: 1, 384>}, {pipeline_mode = #tpu.pipeline_mode<synchronous>, transform_indices = @transform_4, window_bounds = array<i64: 128, 128>}, {pipeline_mode = #tpu.pipeline_mode<synchronous>, transform_indices = @transform_5, window_bounds = array<i64: 1, 128>}, {pipeline_mode = #tpu.pipeline_mode<synchronous>, transform_indices = @transform_6, window_bounds = array<i64: 1, 128>}, {pipeline_mode = #tpu.pipeline_mode<synchronous>, transform_indices = @transform_7, window_bounds = array<i64: 1, 128>}, {pipeline_mode = #tpu.pipeline_mode<synchronous>, transform_indices = @transform_8, window_bounds = array<i64: 128, 256>}, {pipeline_mode = #tpu.pipeline_mode<synchronous>, transform_indices = @transform_9, window_bounds = array<i64: 1, 256>}, {pipeline_mode = #tpu.pipeline_mode<synchronous>, transform_indices = @transform_10, window_bounds = array<i64: 256, 128>}, {pipeline_mode = #tpu.pipeline_mode<synchronous>, transform_indices = @transform_11, window_bounds = array<i64: 1, 128>}, {transform_indices = @transform_12, window_bounds = array<i64: 1, 16, 128>}]} {
    %c0 = arith.constant 0 : index
    %c0_0 = arith.constant 0 : index
    %c0_1 = arith.constant 0 : index
    %0 = vector.load %arg1[%c0, %c0_0, %c0_1] : memref<1x16x128xbf16, #tpu.memory_space<vmem>>, vector<1x16x128xbf16>
    %1 = arith.extf %0 : vector<1x16x128xbf16> to vector<1x16x128xf32>
    %2 = vector.shape_cast %1 : vector<1x16x128xf32> to vector<16x128xf32>
    %3 = arith.truncf %2 : vector<16x128xf32> to vector<16x128xbf16>
    %c0_2 = arith.constant 0 : index
    %c0_3 = arith.constant 0 : index
    %4 = vector.load %arg3[%c0_2, %c0_3] : memref<128x384xbf16, #tpu.memory_space<vmem>>, vector<128x384xbf16>
    %cst = arith.constant dense<0.000000e+00> : vector<16x384xf32>
    %5 = tpu.matmul %3, %4, %cst {dimension_numbers = #tpu.dot_dimension_numbers<[1], [0], [0], [1], [0, 0, 1, 1], [], []>} : vector<16x128xbf16>, vector<128x384xbf16>, vector<16x384xf32> -> vector<16x384xf32>
    %c0_4 = arith.constant 0 : index
    %c0_5 = arith.constant 0 : index
    %6 = vector.load %arg4[%c0_4, %c0_5] : memref<1x384xf32, #tpu.memory_space<vmem>>, vector<1x384xf32>
    %7 = vector.broadcast %6 : vector<1x384xf32> to vector<16x384xf32>
    %8 = arith.addf %5, %7 : vector<16x384xf32>
    %9 = arith.truncf %8 : vector<16x384xf32> to vector<16x384xbf16>
    %c0_6 = arith.constant 0 : index
    %c0_7 = arith.constant 0 : index
    %c0_8 = arith.constant 0 : index
    %10 = vector.load %arg2[%c0_6, %c0_7, %c0_8] : memref<1x1x16xf32, #tpu.memory_space<vmem>>, vector<1x1x16xf32>
    %11 = vector.extract_strided_slice %9 {offsets = [0, 0], sizes = [16, 32], strides = [1, 1]} : vector<16x384xbf16> to vector<16x32xbf16>
    %12 = vector.shape_cast %11 : vector<16x32xbf16> to vector<1x16x32xbf16>
    %13 = vector.extract_strided_slice %9 {offsets = [0, 128], sizes = [16, 32], strides = [1, 1]} : vector<16x384xbf16> to vector<16x32xbf16>
    %14 = vector.shape_cast %13 : vector<16x32xbf16> to vector<1x16x32xbf16>
    %15 = vector.extract_strided_slice %9 {offsets = [0, 256], sizes = [16, 32], strides = [1, 1]} : vector<16x384xbf16> to vector<16x32xbf16>
    %16 = vector.shape_cast %15 : vector<16x32xbf16> to vector<1x16x32xbf16>
    "tpu.trace_start"() <{level = 10 : i32, message = "bqd,bkd->bqk"}> : () -> ()
    %cst_9 = arith.constant dense<0.000000e+00> : vector<1x16x16xf32>
    %17 = tpu.matmul %12, %14, %cst_9 {dimension_numbers = #tpu.dot_dimension_numbers<[2], [2], [1], [1], [0, 0, 0, 1, 1, 1], [0], [0]>} : vector<1x16x32xbf16>, vector<1x16x32xbf16>, vector<1x16x16xf32> -> vector<1x16x16xf32>
    "tpu.trace_stop"() : () -> ()
    %18 = vector.broadcast %10 : vector<1x1x16xf32> to vector<1x16x16xf32>
    %19 = arith.addf %17, %18 : vector<1x16x16xf32>
    %cst_10 = arith.constant dense<0xFF800000> : vector<1x16xf32>
    %20 = vector.multi_reduction <maximumf>, %19, %cst_10 [2] : vector<1x16x16xf32> to vector<1x16xf32>
    %21 = vector.shape_cast %20 : vector<1x16xf32> to vector<1x16x1xf32>
    %22 = vector.broadcast %21 : vector<1x16x1xf32> to vector<1x16x16xf32>
    %23 = arith.subf %19, %22 : vector<1x16x16xf32>
    %24 = math.exp %23 : vector<1x16x16xf32>
    %cst_11 = arith.constant dense<0.000000e+00> : vector<1x16xf32>
    %25 = vector.multi_reduction <add>, %24, %cst_11 [2] : vector<1x16x16xf32> to vector<1x16xf32>
    %26 = vector.shape_cast %25 : vector<1x16xf32> to vector<1x16x1xf32>
    %27 = vector.broadcast %26 : vector<1x16x1xf32> to vector<1x16x16xf32>
    %28 = arith.divf %24, %27 : vector<1x16x16xf32>
    %29 = arith.truncf %28 : vector<1x16x16xf32> to vector<1x16x16xbf16>
    "tpu.trace_start"() <{level = 10 : i32, message = "bqk,bkd->bqd"}> : () -> ()
    %cst_12 = arith.constant dense<0.000000e+00> : vector<1x16x32xf32>
    %30 = tpu.matmul %29, %16, %cst_12 {dimension_numbers = #tpu.dot_dimension_numbers<[2], [1], [1], [2], [0, 0, 0, 1, 1, 2], [0], [0]>} : vector<1x16x16xbf16>, vector<1x16x32xbf16>, vector<1x16x32xf32> -> vector<1x16x32xf32>
    "tpu.trace_stop"() : () -> ()
    %31 = vector.extract_strided_slice %9 {offsets = [0, 32], sizes = [16, 32], strides = [1, 1]} : vector<16x384xbf16> to vector<16x32xbf16>
    %32 = vector.shape_cast %31 : vector<16x32xbf16> to vector<1x16x32xbf16>
    %33 = vector.extract_strided_slice %9 {offsets = [0, 160], sizes = [16, 32], strides = [1, 1]} : vector<16x384xbf16> to vector<16x32xbf16>
    %34 = vector.shape_cast %33 : vector<16x32xbf16> to vector<1x16x32xbf16>
    %35 = vector.extract_strided_slice %9 {offsets = [0, 288], sizes = [16, 32], strides = [1, 1]} : vector<16x384xbf16> to vector<16x32xbf16>
    %36 = vector.shape_cast %35 : vector<16x32xbf16> to vector<1x16x32xbf16>
    "tpu.trace_start"() <{level = 10 : i32, message = "bqd,bkd->bqk"}> : () -> ()
    %cst_13 = arith.constant dense<0.000000e+00> : vector<1x16x16xf32>
    %37 = tpu.matmul %32, %34, %cst_13 {dimension_numbers = #tpu.dot_dimension_numbers<[2], [2], [1], [1], [0, 0, 0, 1, 1, 1], [0], [0]>} : vector<1x16x32xbf16>, vector<1x16x32xbf16>, vector<1x16x16xf32> -> vector<1x16x16xf32>
    "tpu.trace_stop"() : () -> ()
    %38 = vector.broadcast %10 : vector<1x1x16xf32> to vector<1x16x16xf32>
    %39 = arith.addf %37, %38 : vector<1x16x16xf32>
    %cst_14 = arith.constant dense<0xFF800000> : vector<1x16xf32>
    %40 = vector.multi_reduction <maximumf>, %39, %cst_14 [2] : vector<1x16x16xf32> to vector<1x16xf32>
    %41 = vector.shape_cast %40 : vector<1x16xf32> to vector<1x16x1xf32>
    %42 = vector.broadcast %41 : vector<1x16x1xf32> to vector<1x16x16xf32>
    %43 = arith.subf %39, %42 : vector<1x16x16xf32>
    %44 = math.exp %43 : vector<1x16x16xf32>
    %cst_15 = arith.constant dense<0.000000e+00> : vector<1x16xf32>
    %45 = vector.multi_reduction <add>, %44, %cst_15 [2] : vector<1x16x16xf32> to vector<1x16xf32>
    %46 = vector.shape_cast %45 : vector<1x16xf32> to vector<1x16x1xf32>
    %47 = vector.broadcast %46 : vector<1x16x1xf32> to vector<1x16x16xf32>
    %48 = arith.divf %44, %47 : vector<1x16x16xf32>
    %49 = arith.truncf %48 : vector<1x16x16xf32> to vector<1x16x16xbf16>
    "tpu.trace_start"() <{level = 10 : i32, message = "bqk,bkd->bqd"}> : () -> ()
    %cst_16 = arith.constant dense<0.000000e+00> : vector<1x16x32xf32>
    %50 = tpu.matmul %49, %36, %cst_16 {dimension_numbers = #tpu.dot_dimension_numbers<[2], [1], [1], [2], [0, 0, 0, 1, 1, 2], [0], [0]>} : vector<1x16x16xbf16>, vector<1x16x32xbf16>, vector<1x16x32xf32> -> vector<1x16x32xf32>
    "tpu.trace_stop"() : () -> ()
    %51 = vector.extract_strided_slice %9 {offsets = [0, 64], sizes = [16, 32], strides = [1, 1]} : vector<16x384xbf16> to vector<16x32xbf16>
    %52 = vector.shape_cast %51 : vector<16x32xbf16> to vector<1x16x32xbf16>
    %53 = vector.extract_strided_slice %9 {offsets = [0, 192], sizes = [16, 32], strides = [1, 1]} : vector<16x384xbf16> to vector<16x32xbf16>
    %54 = vector.shape_cast %53 : vector<16x32xbf16> to vector<1x16x32xbf16>
    %55 = vector.extract_strided_slice %9 {offsets = [0, 320], sizes = [16, 32], strides = [1, 1]} : vector<16x384xbf16> to vector<16x32xbf16>
    %56 = vector.shape_cast %55 : vector<16x32xbf16> to vector<1x16x32xbf16>
    "tpu.trace_start"() <{level = 10 : i32, message = "bqd,bkd->bqk"}> : () -> ()
    %cst_17 = arith.constant dense<0.000000e+00> : vector<1x16x16xf32>
    %57 = tpu.matmul %52, %54, %cst_17 {dimension_numbers = #tpu.dot_dimension_numbers<[2], [2], [1], [1], [0, 0, 0, 1, 1, 1], [0], [0]>} : vector<1x16x32xbf16>, vector<1x16x32xbf16>, vector<1x16x16xf32> -> vector<1x16x16xf32>
    "tpu.trace_stop"() : () -> ()
    %58 = vector.broadcast %10 : vector<1x1x16xf32> to vector<1x16x16xf32>
    %59 = arith.addf %57, %58 : vector<1x16x16xf32>
    %cst_18 = arith.constant dense<0xFF800000> : vector<1x16xf32>
    %60 = vector.multi_reduction <maximumf>, %59, %cst_18 [2] : vector<1x16x16xf32> to vector<1x16xf32>
    %61 = vector.shape_cast %60 : vector<1x16xf32> to vector<1x16x1xf32>
    %62 = vector.broadcast %61 : vector<1x16x1xf32> to vector<1x16x16xf32>
    %63 = arith.subf %59, %62 : vector<1x16x16xf32>
    %64 = math.exp %63 : vector<1x16x16xf32>
    %cst_19 = arith.constant dense<0.000000e+00> : vector<1x16xf32>
    %65 = vector.multi_reduction <add>, %64, %cst_19 [2] : vector<1x16x16xf32> to vector<1x16xf32>
    %66 = vector.shape_cast %65 : vector<1x16xf32> to vector<1x16x1xf32>
    %67 = vector.broadcast %66 : vector<1x16x1xf32> to vector<1x16x16xf32>
    %68 = arith.divf %64, %67 : vector<1x16x16xf32>
    %69 = arith.truncf %68 : vector<1x16x16xf32> to vector<1x16x16xbf16>
    "tpu.trace_start"() <{level = 10 : i32, message = "bqk,bkd->bqd"}> : () -> ()
    %cst_20 = arith.constant dense<0.000000e+00> : vector<1x16x32xf32>
    %70 = tpu.matmul %69, %56, %cst_20 {dimension_numbers = #tpu.dot_dimension_numbers<[2], [1], [1], [2], [0, 0, 0, 1, 1, 2], [0], [0]>} : vector<1x16x16xbf16>, vector<1x16x32xbf16>, vector<1x16x32xf32> -> vector<1x16x32xf32>
    "tpu.trace_stop"() : () -> ()
    %71 = vector.extract_strided_slice %9 {offsets = [0, 96], sizes = [16, 32], strides = [1, 1]} : vector<16x384xbf16> to vector<16x32xbf16>
    %72 = vector.shape_cast %71 : vector<16x32xbf16> to vector<1x16x32xbf16>
    %73 = vector.extract_strided_slice %9 {offsets = [0, 224], sizes = [16, 32], strides = [1, 1]} : vector<16x384xbf16> to vector<16x32xbf16>
    %74 = vector.shape_cast %73 : vector<16x32xbf16> to vector<1x16x32xbf16>
    %75 = vector.extract_strided_slice %9 {offsets = [0, 352], sizes = [16, 32], strides = [1, 1]} : vector<16x384xbf16> to vector<16x32xbf16>
    %76 = vector.shape_cast %75 : vector<16x32xbf16> to vector<1x16x32xbf16>
    "tpu.trace_start"() <{level = 10 : i32, message = "bqd,bkd->bqk"}> : () -> ()
    %cst_21 = arith.constant dense<0.000000e+00> : vector<1x16x16xf32>
    %77 = tpu.matmul %72, %74, %cst_21 {dimension_numbers = #tpu.dot_dimension_numbers<[2], [2], [1], [1], [0, 0, 0, 1, 1, 1], [0], [0]>} : vector<1x16x32xbf16>, vector<1x16x32xbf16>, vector<1x16x16xf32> -> vector<1x16x16xf32>
    "tpu.trace_stop"() : () -> ()
    %78 = vector.broadcast %10 : vector<1x1x16xf32> to vector<1x16x16xf32>
    %79 = arith.addf %77, %78 : vector<1x16x16xf32>
    %cst_22 = arith.constant dense<0xFF800000> : vector<1x16xf32>
    %80 = vector.multi_reduction <maximumf>, %79, %cst_22 [2] : vector<1x16x16xf32> to vector<1x16xf32>
    %81 = vector.shape_cast %80 : vector<1x16xf32> to vector<1x16x1xf32>
    %82 = vector.broadcast %81 : vector<1x16x1xf32> to vector<1x16x16xf32>
    %83 = arith.subf %79, %82 : vector<1x16x16xf32>
    %84 = math.exp %83 : vector<1x16x16xf32>
    %cst_23 = arith.constant dense<0.000000e+00> : vector<1x16xf32>
    %85 = vector.multi_reduction <add>, %84, %cst_23 [2] : vector<1x16x16xf32> to vector<1x16xf32>
    %86 = vector.shape_cast %85 : vector<1x16xf32> to vector<1x16x1xf32>
    %87 = vector.broadcast %86 : vector<1x16x1xf32> to vector<1x16x16xf32>
    %88 = arith.divf %84, %87 : vector<1x16x16xf32>
    %89 = arith.truncf %88 : vector<1x16x16xf32> to vector<1x16x16xbf16>
    "tpu.trace_start"() <{level = 10 : i32, message = "bqk,bkd->bqd"}> : () -> ()
    %cst_24 = arith.constant dense<0.000000e+00> : vector<1x16x32xf32>
    %90 = tpu.matmul %89, %76, %cst_24 {dimension_numbers = #tpu.dot_dimension_numbers<[2], [1], [1], [2], [0, 0, 0, 1, 1, 2], [0], [0]>} : vector<1x16x16xbf16>, vector<1x16x32xbf16>, vector<1x16x32xf32> -> vector<1x16x32xf32>
    "tpu.trace_stop"() : () -> ()
    %91 = tpu.concatenate %30, %50, %70, %90 in 2 : vector<1x16x32xf32>, vector<1x16x32xf32>, vector<1x16x32xf32>, vector<1x16x32xf32> -> vector<1x16x128xf32>
    %92 = vector.shape_cast %91 : vector<1x16x128xf32> to vector<16x128xf32>
    %93 = arith.truncf %92 : vector<16x128xf32> to vector<16x128xbf16>
    %c0_25 = arith.constant 0 : index
    %c0_26 = arith.constant 0 : index
    %94 = vector.load %arg5[%c0_25, %c0_26] : memref<128x128xbf16, #tpu.memory_space<vmem>>, vector<128x128xbf16>
    %cst_27 = arith.constant dense<0.000000e+00> : vector<16x128xf32>
    %95 = tpu.matmul %93, %94, %cst_27 {dimension_numbers = #tpu.dot_dimension_numbers<[1], [0], [0], [1], [0, 0, 1, 1], [], []>} : vector<16x128xbf16>, vector<128x128xbf16>, vector<16x128xf32> -> vector<16x128xf32>
    %c0_28 = arith.constant 0 : index
    %c0_29 = arith.constant 0 : index
    %96 = vector.load %arg6[%c0_28, %c0_29] : memref<1x128xf32, #tpu.memory_space<vmem>>, vector<1x128xf32>
    %97 = vector.broadcast %96 : vector<1x128xf32> to vector<16x128xf32>
    %98 = arith.addf %95, %97 : vector<16x128xf32>
    %c0_30 = arith.constant 0 : index
    %c0_31 = arith.constant 0 : index
    %99 = vector.load %arg7[%c0_30, %c0_31] : memref<1x128xf32, #tpu.memory_space<vmem>>, vector<1x128xf32>
    %c0_32 = arith.constant 0 : index
    %c0_33 = arith.constant 0 : index
    %100 = vector.load %arg8[%c0_32, %c0_33] : memref<1x128xf32, #tpu.memory_space<vmem>>, vector<1x128xf32>
    %101 = arith.addf %2, %98 : vector<16x128xf32>
    %cst_34 = arith.constant dense<0.000000e+00> : vector<16xf32>
    %102 = vector.multi_reduction <add>, %101, %cst_34 [1] : vector<16x128xf32> to vector<16xf32>
    %103 = vector.shape_cast %102 : vector<16xf32> to vector<16x1xf32>
    %cst_35 = arith.constant 1.280000e+02 : f32
    %104 = vector.broadcast %cst_35 : f32 to vector<16x1xf32>
    %105 = arith.divf %103, %104 : vector<16x1xf32>
    %106 = vector.broadcast %105 : vector<16x1xf32> to vector<16x128xf32>
    %107 = arith.subf %101, %106 : vector<16x128xf32>
    %108 = arith.mulf %107, %107 : vector<16x128xf32>
    %cst_36 = arith.constant dense<0.000000e+00> : vector<16xf32>
    %109 = vector.multi_reduction <add>, %108, %cst_36 [1] : vector<16x128xf32> to vector<16xf32>
    %110 = vector.shape_cast %109 : vector<16xf32> to vector<16x1xf32>
    %cst_37 = arith.constant 1.280000e+02 : f32
    %111 = vector.broadcast %cst_37 : f32 to vector<16x1xf32>
    %112 = arith.divf %110, %111 : vector<16x1xf32>
    %113 = vector.broadcast %105 : vector<16x1xf32> to vector<16x128xf32>
    %114 = arith.subf %101, %113 : vector<16x128xf32>
    %cst_38 = arith.constant 9.99999996E-13 : f32
    %115 = vector.broadcast %cst_38 : f32 to vector<16x1xf32>
    %116 = arith.addf %112, %115 : vector<16x1xf32>
    %117 = math.rsqrt %116 : vector<16x1xf32>
    %118 = vector.broadcast %117 : vector<16x1xf32> to vector<16x128xf32>
    %119 = arith.mulf %114, %118 : vector<16x128xf32>
    %120 = vector.broadcast %99 : vector<1x128xf32> to vector<16x128xf32>
    %121 = arith.mulf %119, %120 : vector<16x128xf32>
    %122 = vector.broadcast %100 : vector<1x128xf32> to vector<16x128xf32>
    %123 = arith.addf %121, %122 : vector<16x128xf32>
    %124 = arith.truncf %123 : vector<16x128xf32> to vector<16x128xbf16>
    %c0_39 = arith.constant 0 : index
    %c0_40 = arith.constant 0 : index
    %125 = vector.load %arg9[%c0_39, %c0_40] : memref<128x256xbf16, #tpu.memory_space<vmem>>, vector<128x256xbf16>
    %cst_41 = arith.constant dense<0.000000e+00> : vector<16x256xf32>
    %126 = tpu.matmul %124, %125, %cst_41 {dimension_numbers = #tpu.dot_dimension_numbers<[1], [0], [0], [1], [0, 0, 1, 1], [], []>} : vector<16x128xbf16>, vector<128x256xbf16>, vector<16x256xf32> -> vector<16x256xf32>
    %c0_42 = arith.constant 0 : index
    %c0_43 = arith.constant 0 : index
    %127 = vector.load %arg10[%c0_42, %c0_43] : memref<1x256xf32, #tpu.memory_space<vmem>>, vector<1x256xf32>
    %128 = vector.broadcast %127 : vector<1x256xf32> to vector<16x256xf32>
    %129 = arith.addf %126, %128 : vector<16x256xf32>
    %cst_44 = arith.constant 0.000000e+00 : f32
    %130 = vector.broadcast %cst_44 : f32 to vector<16x256xf32>
    %131 = arith.maximumf %129, %130 : vector<16x256xf32>
    %132 = arith.truncf %131 : vector<16x256xf32> to vector<16x256xbf16>
    %c0_45 = arith.constant 0 : index
    %c0_46 = arith.constant 0 : index
    %133 = vector.load %arg11[%c0_45, %c0_46] : memref<256x128xbf16, #tpu.memory_space<vmem>>, vector<256x128xbf16>
    %cst_47 = arith.constant dense<0.000000e+00> : vector<16x128xf32>
    %134 = tpu.matmul %132, %133, %cst_47 {dimension_numbers = #tpu.dot_dimension_numbers<[1], [0], [0], [1], [0, 0, 1, 1], [], []>} : vector<16x256xbf16>, vector<256x128xbf16>, vector<16x128xf32> -> vector<16x128xf32>
    %c0_48 = arith.constant 0 : index
    %c0_49 = arith.constant 0 : index
    %135 = vector.load %arg12[%c0_48, %c0_49] : memref<1x128xf32, #tpu.memory_space<vmem>>, vector<1x128xf32>
    %136 = vector.broadcast %135 : vector<1x128xf32> to vector<16x128xf32>
    %137 = arith.addf %134, %136 : vector<16x128xf32>
    %138 = arith.addf %123, %137 : vector<16x128xf32>
    %cst_50 = arith.constant dense<0.000000e+00> : vector<16xf32>
    %139 = vector.multi_reduction <add>, %138, %cst_50 [1] : vector<16x128xf32> to vector<16xf32>
    %140 = vector.shape_cast %139 : vector<16xf32> to vector<16x1xf32>
    %cst_51 = arith.constant 1.280000e+02 : f32
    %141 = vector.broadcast %cst_51 : f32 to vector<16x1xf32>
    %142 = arith.divf %140, %141 : vector<16x1xf32>
    %143 = vector.broadcast %142 : vector<16x1xf32> to vector<16x128xf32>
    %144 = arith.subf %138, %143 : vector<16x128xf32>
    %145 = arith.mulf %144, %144 : vector<16x128xf32>
    %cst_52 = arith.constant dense<0.000000e+00> : vector<16xf32>
    %146 = vector.multi_reduction <add>, %145, %cst_52 [1] : vector<16x128xf32> to vector<16xf32>
    %147 = vector.shape_cast %146 : vector<16xf32> to vector<16x1xf32>
    %cst_53 = arith.constant 1.280000e+02 : f32
    %148 = vector.broadcast %cst_53 : f32 to vector<16x1xf32>
    %149 = arith.divf %147, %148 : vector<16x1xf32>
    %150 = vector.broadcast %142 : vector<16x1xf32> to vector<16x128xf32>
    %151 = arith.subf %138, %150 : vector<16x128xf32>
    %cst_54 = arith.constant 9.99999996E-13 : f32
    %152 = vector.broadcast %cst_54 : f32 to vector<16x1xf32>
    %153 = arith.addf %149, %152 : vector<16x1xf32>
    %154 = math.rsqrt %153 : vector<16x1xf32>
    %155 = vector.broadcast %154 : vector<16x1xf32> to vector<16x128xf32>
    %156 = arith.mulf %151, %155 : vector<16x128xf32>
    %157 = vector.broadcast %99 : vector<1x128xf32> to vector<16x128xf32>
    %158 = arith.mulf %156, %157 : vector<16x128xf32>
    %159 = vector.broadcast %100 : vector<1x128xf32> to vector<16x128xf32>
    %160 = arith.addf %158, %159 : vector<16x128xf32>
    %161 = vector.shape_cast %160 : vector<16x128xf32> to vector<1x16x128xf32>
    %162 = arith.truncf %161 : vector<1x16x128xf32> to vector<1x16x128xbf16>
    %c0_55 = arith.constant 0 : index
    %c0_56 = arith.constant 0 : index
    %c0_57 = arith.constant 0 : index
    %163 = vector.load %arg13[%c0_55, %c0_56, %c0_57] : memref<1x16x128xbf16, #tpu.memory_space<vmem>>, vector<1x16x128xbf16>
    tpu.vector_store %arg13[%c0_55, %c0_56, %c0_57], %162 {strides = array<i32>} : memref<1x16x128xbf16, #tpu.memory_space<vmem>>, vector<1x16x128xbf16>,
    return
  }
  func.func @transform_0(%arg0: i32) -> (i32, i32, i32) {
    %c0_i32 = arith.constant 0 : i32
    %c0_i32_0 = arith.constant 0 : i32
    %c0_i32_1 = arith.constant 0 : i32
    return %arg0, %c0_i32, %c0_i32_0 : i32, i32, i32
  }
  func.func @transform_1(%arg0: i32) -> (i32, i32, i32) {
    %c0_i32 = arith.constant 0 : i32
    %c0_i32_0 = arith.constant 0 : i32
    %c0_i32_1 = arith.constant 0 : i32
    return %arg0, %c0_i32, %c0_i32_0 : i32, i32, i32
  }
  func.func @transform_2(%arg0: i32) -> (i32, i32) {
    %c0_i32 = arith.constant 0 : i32
    %c0_i32_0 = arith.constant 0 : i32
    %c0_i32_1 = arith.constant 0 : i32
    return %c0_i32, %c0_i32_0 : i32, i32
  }
  func.func @transform_3(%arg0: i32) -> (i32, i32) {
    %c0_i32 = arith.constant 0 : i32
    %c0_i32_0 = arith.constant 0 : i32
    %c0_i32_1 = arith.constant 0 : i32
    return %c0_i32, %c0_i32_0 : i32, i32
  }
  func.func @transform_4(%arg0: i32) -> (i32, i32) {
    %c0_i32 = arith.constant 0 : i32
    %c0_i32_0 = arith.constant 0 : i32
    %c0_i32_1 = arith.constant 0 : i32
    return %c0_i32, %c0_i32_0 : i32, i32
  }
  func.func @transform_5(%arg0: i32) -> (i32, i32) {
    %c0_i32 = arith.constant 0 : i32
    %c0_i32_0 = arith.constant 0 : i32
    %c0_i32_1 = arith.constant 0 : i32
    return %c0_i32, %c0_i32_0 : i32, i32
  }
  func.func @transform_6(%arg0: i32) -> (i32, i32) {
    %c0_i32 = arith.constant 0 : i32
    %c0_i32_0 = arith.constant 0 : i32
    %c0_i32_1 = arith.constant 0 : i32
    return %c0_i32, %c0_i32_0 : i32, i32
  }
  func.func @transform_7(%arg0: i32) -> (i32, i32) {
    %c0_i32 = arith.constant 0 : i32
    %c0_i32_0 = arith.constant 0 : i32
    %c0_i32_1 = arith.constant 0 : i32
    return %c0_i32, %c0_i32_0 : i32, i32
  }
  func.func @transform_8(%arg0: i32) -> (i32, i32) {
    %c0_i32 = arith.constant 0 : i32
    %c0_i32_0 = arith.constant 0 : i32
    %c0_i32_1 = arith.constant 0 : i32
    return %c0_i32, %c0_i32_0 : i32, i32
  }
  func.func @transform_9(%arg0: i32) -> (i32, i32) {
    %c0_i32 = arith.constant 0 : i32
    %c0_i32_0 = arith.constant 0 : i32
    %c0_i32_1 = arith.constant 0 : i32
    return %c0_i32, %c0_i32_0 : i32, i32
  }
  func.func @transform_10(%arg0: i32) -> (i32, i32) {
    %c0_i32 = arith.constant 0 : i32
    %c0_i32_0 = arith.constant 0 : i32
    %c0_i32_1 = arith.constant 0 : i32
    return %c0_i32, %c0_i32_0 : i32, i32
  }
  func.func @transform_11(%arg0: i32) -> (i32, i32) {
    %c0_i32 = arith.constant 0 : i32
    %c0_i32_0 = arith.constant 0 : i32
    %c0_i32_1 = arith.constant 0 : i32
    return %c0_i32, %c0_i32_0 : i32, i32
  }
  func.func @transform_12(%arg0: i32) -> (i32, i32, i32) {
    %c0_i32 = arith.constant 0 : i32
    %c0_i32_0 = arith.constant 0 : i32
    %c0_i32_1 = arith.constant 0 : i32
    return %arg0, %c0_i32, %c0_i32_0 : i32, i32, i32
  }
}

module attributes {stable_mosaic.version = 11 : i64} {
  func.func @encoder_layer_kernel(%arg0: i32, %arg1: memref<1x16x128xbf16, #tpu.memory_space<vmem>>, %arg2: memref<1x1x16xf32, #tpu.memory_space<vmem>>, %arg3: memref<128x384xbf16, #tpu.memory_space<vmem>>, %arg4: memref<1x384xf32, #tpu.memory_space<vmem>>, %arg5: memref<128x128xbf16, #tpu.memory_space<vmem>>, %arg6: memref<1x128xf32, #tpu.memory_space<vmem>>, %arg7: memref<1x128xf32, #tpu.memory_space<vmem>>, %arg8: memref<1x128xf32, #tpu.memory_space<vmem>>, %arg9: memref<128x256xbf16, #tpu.memory_space<vmem>>, %arg10: memref<1x256xf32, #tpu.memory_space<vmem>>, %arg11: memref<256x128xbf16, #tpu.memory_space<vmem>>, %arg12: memref<1x128xf32, #tpu.memory_space<vmem>>, %arg13: memref<1x16x128xbf16, #tpu.memory_space<vmem>>) attributes {dimension_semantics = [#tpu.dimension_semantics<parallel>], iteration_bounds = array<i64: 2>, scalar_prefetch = 0 : i64, scratch_operands = 0 : i64, tpu.core_type = #tpu.core_type<tc>, window_params = [{transform_indices = @transform_0, window_bounds = array<i64: 1, 16, 128>}, {transform_indices = @transform_1, window_bounds = array<i64: 1, 1, 16>}, {pipeline_mode = #tpu.pipeline_mode<synchronous>, transform_indices = @transform_2, window_bounds = array<i64: 128, 384>}, {pipeline_mode = #tpu.pipeline_mode<synchronous>, transform_indices = @transform_3, window_bounds = array<i64: 1, 384>}, {pipeline_mode = #tpu.pipeline_mode<synchronous>, transform_indices = @transform_4, window_bounds = array<i64: 128, 128>}, {pipeline_mode = #tpu.pipeline_mode<synchronous>, transform_indices = @transform_5, window_bounds = array<i64: 1, 128>}, {pipeline_mode = #tpu.pipeline_mode<synchronous>, transform_indices = @transform_6, window_bounds = array<i64: 1, 128>}, {pipeline_mode = #tpu.pipeline_mode<synchronous>, transform_indices = @transform_7, window_bounds = array<i64: 1, 128>}, {pipeline_mode = #tpu.pipeline_mode<synchronous>, transform_indices = @transform_8, window_bounds = array<i64: 128, 256>}, {pipeline_mode = #tpu.pipeline_mode<synchronous>, transform_indices = @transform_9, window_bounds = array<i64: 1, 256>}, {pipeline_mode = #tpu.pipeline_mode<synchronous>, transform_indices = @transform_10, window_bounds = array<i64: 256, 128>}, {pipeline_mode = #tpu.pipeline_mode<synchronous>, transform_indices = @transform_11, window_bounds = array<i64: 1, 128>}, {transform_indices = @transform_12, window_bounds = array<i64: 1, 16, 128>}]} {
    %c0 = arith.constant 0 : index
    %c0_0 = arith.constant 0 : index
    %c0_1 = arith.constant 0 : index
    %0 = vector.load %arg1[%c0, %c0_0, %c0_1] : memref<1x16x128xbf16, #tpu.memory_space<vmem>>, vector<1x16x128xbf16>
    %1 = arith.extf %0 : vector<1x16x128xbf16> to vector<1x16x128xf32>
    %2 = vector.shape_cast %1 : vector<1x16x128xf32> to vector<16x128xf32>
    %3 = arith.truncf %2 : vector<16x128xf32> to vector<16x128xbf16>
    %c0_2 = arith.constant 0 : index
    %c0_3 = arith.constant 0 : index
    %4 = vector.load %arg3[%c0_2, %c0_3] : memref<128x384xbf16, #tpu.memory_space<vmem>>, vector<128x384xbf16>
    %cst = arith.constant dense<0.000000e+00> : vector<16x384xf32>
    %5 = tpu.matmul %3, %4, %cst {dimension_numbers = #tpu.dot_dimension_numbers<[1], [0], [0], [1], [0, 0, 1, 1], [], []>} : vector<16x128xbf16>, vector<128x384xbf16>, vector<16x384xf32> -> vector<16x384xf32>
    %c0_4 = arith.constant 0 : index
    %c0_5 = arith.constant 0 : index
    %6 = vector.load %arg4[%c0_4, %c0_5] : memref<1x384xf32, #tpu.memory_space<vmem>>, vector<1x384xf32>
    %7 = vector.broadcast %6 : vector<1x384xf32> to vector<16x384xf32>
    %8 = arith.addf %5, %7 : vector<16x384xf32>
    %9 = arith.truncf %8 : vector<16x384xf32> to vector<16x384xbf16>
    %c0_6 = arith.constant 0 : index
    %c0_7 = arith.constant 0 : index
    %c0_8 = arith.constant 0 : index
    %10 = vector.load %arg2[%c0_6, %c0_7, %c0_8] : memref<1x1x16xf32, #tpu.memory_space<vmem>>, vector<1x1x16xf32>
    %11 = vector.extract_strided_slice %9 {offsets = [0, 0], sizes = [16, 32], strides = [1, 1]} : vector<16x384xbf16> to vector<16x32xbf16>
    %12 = vector.shape_cast %11 : vector<16x32xbf16> to vector<1x16x32xbf16>
    %13 = vector.extract_strided_slice %9 {offsets = [0, 128], sizes = [16, 32], strides = [1, 1]} : vector<16x384xbf16> to vector<16x32xbf16>
    %14 = vector.shape_cast %13 : vector<16x32xbf16> to vector<1x16x32xbf16>
    %15 = vector.extract_strided_slice %9 {offsets = [0, 256], sizes = [16, 32], strides = [1, 1]} : vector<16x384xbf16> to vector<16x32xbf16>
    %16 = vector.shape_cast %15 : vector<16x32xbf16> to vector<1x16x32xbf16>
    "tpu.trace_start"() <{level = 10 : i32, message = "bqd,bkd->bqk"}> : () -> ()
    %cst_9 = arith.constant dense<0.000000e+00> : vector<1x16x16xf32>
    %17 = tpu.matmul %12, %14, %cst_9 {dimension_numbers = #tpu.dot_dimension_numbers<[2], [2], [1], [1], [0, 0, 0, 1, 1, 1], [0], [0]>} : vector<1x16x32xbf16>, vector<1x16x32xbf16>, vector<1x16x16xf32> -> vector<1x16x16xf32>
    "tpu.trace_stop"() : () -> ()
    %18 = vector.broadcast %10 : vector<1x1x16xf32> to vector<1x16x16xf32>
    %19 = arith.addf %17, %18 : vector<1x16x16xf32>
    %cst_10 = arith.constant dense<0xFF800000> : vector<1x16xf32>
    %20 = vector.multi_reduction <maximumf>, %19, %cst_10 [2] : vector<1x16x16xf32> to vector<1x16xf32>
    %21 = vector.shape_cast %20 : vector<1x16xf32> to vector<1x16x1xf32>
    %22 = vector.broadcast %21 : vector<1x16x1xf32> to vector<1x16x16xf32>
    %23 = arith.subf %19, %22 : vector<1x16x16xf32>
    %24 = math.exp %23 : vector<1x16x16xf32>
    %cst_11 = arith.constant dense<0.000000e+00> : vector<1x16xf32>
    %25 = vector.multi_reduction <add>, %24, %cst_11 [2] : vector<1x16x16xf32> to vector<1x16xf32>
    %26 = vector.shape_cast %25 : vector<1x16xf32> to vector<1x16x1xf32>
    %27 = vector.broadcast %26 : vector<1x16x1xf32> to vector<1x16x16xf32>
    %28 = arith.divf %24, %27 : vector<1x16x16xf32>
    %29 = arith.truncf %28 : vector<1x16x16xf32> to vector<1x16x16xbf16>
    "tpu.trace_start"() <{level = 10 : i32, message = "bqk,bkd->bqd"}> : () -> ()
    %cst_12 = arith.constant dense<0.000000e+00> : vector<1x16x32xf32>
    %30 = tpu.matmul %29, %16, %cst_12 {dimension_numbers = #tpu.dot_dimension_numbers<[2], [1], [1], [2], [0, 0, 0, 1, 1, 2], [0], [0]>} : vector<1x16x16xbf16>, vector<1x16x32xbf16>, vector<1x16x32xf32> -> vector<1x16x32xf32>
    "tpu.trace_stop"() : () -> ()
    %31 = vector.extract_strided_slice %9 {offsets = [0, 32], sizes = [16, 32], strides = [1, 1]} : vector<16x384xbf16> to vector<16x32xbf16>
    %32 = vector.shape_cast %31 : vector<16x32xbf16> to vector<1x16x32xbf16>
    %33 = vector.extract_strided_slice %9 {offsets = [0, 160], sizes = [16, 32], strides = [1, 1]} : vector<16x384xbf16> to vector<16x32xbf16>
    %34 = vector.shape_cast %33 : vector<16x32xbf16> to vector<1x16x32xbf16>
    %35 = vector.extract_strided_slice %9 {offsets = [0, 288], sizes = [16, 32], strides = [1, 1]} : vector<16x384xbf16> to vector<16x32xbf16>
    %36 = vector.shape_cast %35 : vector<16x32xbf16> to vector<1x16x32xbf16>
    "tpu.trace_start"() <{level = 10 : i32, message = "bqd,bkd->bqk"}> : () -> ()
    %cst_13 = arith.constant dense<0.000000e+00> : vector<1x16x16xf32>
    %37 = tpu.matmul %32, %34, %cst_13 {dimension_numbers = #tpu.dot_dimension_numbers<[2], [2], [1], [1], [0, 0, 0, 1, 1, 1], [0], [0]>} : vector<1x16x32xbf16>, vector<1x16x32xbf16>, vector<1x16x16xf32> -> vector<1x16x16xf32>
    "tpu.trace_stop"() : () -> ()
    %38 = vector.broadcast %10 : vector<1x1x16xf32> to vector<1x16x16xf32>
    %39 = arith.addf %37, %38 : vector<1x16x16xf32>
    %cst_14 = arith.constant dense<0xFF800000> : vector<1x16xf32>
    %40 = vector.multi_reduction <maximumf>, %39, %cst_14 [2] : vector<1x16x16xf32> to vector<1x16xf32>
    %41 = vector.shape_cast %40 : vector<1x16xf32> to vector<1x16x1xf32>
    %42 = vector.broadcast %41 : vector<1x16x1xf32> to vector<1x16x16xf32>
    %43 = arith.subf %39, %42 : vector<1x16x16xf32>
    %44 = math.exp %43 : vector<1x16x16xf32>
    %cst_15 = arith.constant dense<0.000000e+00> : vector<1x16xf32>
    %45 = vector.multi_reduction <add>, %44, %cst_15 [2] : vector<1x16x16xf32> to vector<1x16xf32>
    %46 = vector.shape_cast %45 : vector<1x16xf32> to vector<1x16x1xf32>
    %47 = vector.broadcast %46 : vector<1x16x1xf32> to vector<1x16x16xf32>
    %48 = arith.divf %44, %47 : vector<1x16x16xf32>
    %49 = arith.truncf %48 : vector<1x16x16xf32> to vector<1x16x16xbf16>
    "tpu.trace_start"() <{level = 10 : i32, message = "bqk,bkd->bqd"}> : () -> ()
    %cst_16 = arith.constant dense<0.000000e+00> : vector<1x16x32xf32>
    %50 = tpu.matmul %49, %36, %cst_16 {dimension_numbers = #tpu.dot_dimension_numbers<[2], [1], [1], [2], [0, 0, 0, 1, 1, 2], [0], [0]>} : vector<1x16x16xbf16>, vector<1x16x32xbf16>, vector<1x16x32xf32> -> vector<1x16x32xf32>
    "tpu.trace_stop"() : () -> ()
    %51 = vector.extract_strided_slice %9 {offsets = [0, 64], sizes = [16, 32], strides = [1, 1]} : vector<16x384xbf16> to vector<16x32xbf16>
    %52 = vector.shape_cast %51 : vector<16x32xbf16> to vector<1x16x32xbf16>
    %53 = vector.extract_strided_slice %9 {offsets = [0, 192], sizes = [16, 32], strides = [1, 1]} : vector<16x384xbf16> to vector<16x32xbf16>
    %54 = vector.shape_cast %53 : vector<16x32xbf16> to vector<1x16x32xbf16>
    %55 = vector.extract_strided_slice %9 {offsets = [0, 320], sizes = [16, 32], strides = [1, 1]} : vector<16x384xbf16> to vector<16x32xbf16>
    %56 = vector.shape_cast %55 : vector<16x32xbf16> to vector<1x16x32xbf16>
    "tpu.trace_start"() <{level = 10 : i32, message = "bqd,bkd->bqk"}> : () -> ()
    %cst_17 = arith.constant dense<0.000000e+00> : vector<1x16x16xf32>
    %57 = tpu.matmul %52, %54, %cst_17 {dimension_numbers = #tpu.dot_dimension_numbers<[2], [2], [1], [1], [0, 0, 0, 1, 1, 1], [0], [0]>} : vector<1x16x32xbf16>, vector<1x16x32xbf16>, vector<1x16x16xf32> -> vector<1x16x16xf32>
    "tpu.trace_stop"() : () -> ()
    %58 = vector.broadcast %10 : vector<1x1x16xf32> to vector<1x16x16xf32>
    %59 = arith.addf %57, %58 : vector<1x16x16xf32>
    %cst_18 = arith.constant dense<0xFF800000> : vector<1x16xf32>
    %60 = vector.multi_reduction <maximumf>, %59, %cst_18 [2] : vector<1x16x16xf32> to vector<1x16xf32>
    %61 = vector.shape_cast %60 : vector<1x16xf32> to vector<1x16x1xf32>
    %62 = vector.broadcast %61 : vector<1x16x1xf32> to vector<1x16x16xf32>
    %63 = arith.subf %59, %62 : vector<1x16x16xf32>
    %64 = math.exp %63 : vector<1x16x16xf32>
    %cst_19 = arith.constant dense<0.000000e+00> : vector<1x16xf32>
    %65 = vector.multi_reduction <add>, %64, %cst_19 [2] : vector<1x16x16xf32> to vector<1x16xf32>
    %66 = vector.shape_cast %65 : vector<1x16xf32> to vector<1x16x1xf32>
    %67 = vector.broadcast %66 : vector<1x16x1xf32> to vector<1x16x16xf32>
    %68 = arith.divf %64, %67 : vector<1x16x16xf32>
    %69 = arith.truncf %68 : vector<1x16x16xf32> to vector<1x16x16xbf16>
    "tpu.trace_start"() <{level = 10 : i32, message = "bqk,bkd->bqd"}> : () -> ()
    %cst_20 = arith.constant dense<0.000000e+00> : vector<1x16x32xf32>
    %70 = tpu.matmul %69, %56, %cst_20 {dimension_numbers = #tpu.dot_dimension_numbers<[2], [1], [1], [2], [0, 0, 0, 1, 1, 2], [0], [0]>} : vector<1x16x16xbf16>, vector<1x16x32xbf16>, vector<1x16x32xf32> -> vector<1x16x32xf32>
    "tpu.trace_stop"() : () -> ()
    %71 = vector.extract_strided_slice %9 {offsets = [0, 96], sizes = [16, 32], strides = [1, 1]} : vector<16x384xbf16> to vector<16x32xbf16>
    %72 = vector.shape_cast %71 : vector<16x32xbf16> to vector<1x16x32xbf16>
    %73 = vector.extract_strided_slice %9 {offsets = [0, 224], sizes = [16, 32], strides = [1, 1]} : vector<16x384xbf16> to vector<16x32xbf16>
    %74 = vector.shape_cast %73 : vector<16x32xbf16> to vector<1x16x32xbf16>
    %75 = vector.extract_strided_slice %9 {offsets = [0, 352], sizes = [16, 32], strides = [1, 1]} : vector<16x384xbf16> to vector<16x32xbf16>
    %76 = vector.shape_cast %75 : vector<16x32xbf16> to vector<1x16x32xbf16>
    "tpu.trace_start"() <{level = 10 : i32, message = "bqd,bkd->bqk"}> : () -> ()
    %cst_21 = arith.constant dense<0.000000e+00> : vector<1x16x16xf32>
    %77 = tpu.matmul %72, %74, %cst_21 {dimension_numbers = #tpu.dot_dimension_numbers<[2], [2], [1], [1], [0, 0, 0, 1, 1, 1], [0], [0]>} : vector<1x16x32xbf16>, vector<1x16x32xbf16>, vector<1x16x16xf32> -> vector<1x16x16xf32>
    "tpu.trace_stop"() : () -> ()
    %78 = vector.broadcast %10 : vector<1x1x16xf32> to vector<1x16x16xf32>
    %79 = arith.addf %77, %78 : vector<1x16x16xf32>
    %cst_22 = arith.constant dense<0xFF800000> : vector<1x16xf32>
    %80 = vector.multi_reduction <maximumf>, %79, %cst_22 [2] : vector<1x16x16xf32> to vector<1x16xf32>
    %81 = vector.shape_cast %80 : vector<1x16xf32> to vector<1x16x1xf32>
    %82 = vector.broadcast %81 : vector<1x16x1xf32> to vector<1x16x16xf32>
    %83 = arith.subf %79, %82 : vector<1x16x16xf32>
    %84 = math.exp %83 : vector<1x16x16xf32>
    %cst_23 = arith.constant dense<0.000000e+00> : vector<1x16xf32>
    %85 = vector.multi_reduction <add>, %84, %cst_23 [2] : vector<1x16x16xf32> to vector<1x16xf32>
    %86 = vector.shape_cast %85 : vector<1x16xf32> to vector<1x16x1xf32>
    %87 = vector.broadcast %86 : vector<1x16x1xf32> to vector<1x16x16xf32>
    %88 = arith.divf %84, %87 : vector<1x16x16xf32>
    %89 = arith.truncf %88 : vector<1x16x16xf32> to vector<1x16x16xbf16>
    "tpu.trace_start"() <{level = 10 : i32, message = "bqk,bkd->bqd"}> : () -> ()
    %cst_24 = arith.constant dense<0.000000e+00> : vector<1x16x32xf32>
    %90 = tpu.matmul %89, %76, %cst_24 {dimension_numbers = #tpu.dot_dimension_numbers<[2], [1], [1], [2], [0, 0, 0, 1, 1, 2], [0], [0]>} : vector<1x16x16xbf16>, vector<1x16x32xbf16>, vector<1x16x32xf32> -> vector<1x16x32xf32>
    "tpu.trace_stop"() : () -> ()
    %91 = tpu.concatenate %30, %50, %70, %90 in 2 : vector<1x16x32xf32>, vector<1x16x32xf32>, vector<1x16x32xf32>, vector<1x16x32xf32> -> vector<1x16x128xf32>
    %92 = vector.shape_cast %91 : vector<1x16x128xf32> to vector<16x128xf32>
    %93 = arith.truncf %92 : vector<16x128xf32> to vector<16x128xbf16>
    %c0_25 = arith.constant 0 : index
    %c0_26 = arith.constant 0 : index
    %94 = vector.load %arg5[%c0_25, %c0_26] : memref<128x128xbf16, #tpu.memory_space<vmem>>, vector<128x128xbf16>
    %cst_27 = arith.constant dense<0.000000e+00> : vector<16x128xf32>
    %95 = tpu.matmul %93, %94, %cst_27 {dimension_numbers = #tpu.dot_dimension_numbers<[1], [0], [0], [1], [0, 0, 1, 1], [], []>} : vector<16x128xbf16>, vector<128x128xbf16>, vector<16x128xf32> -> vector<16x128xf32>
    %c0_28 = arith.constant 0 : index
    %c0_29 = arith.constant 0 : index
    %96 = vector.load %arg6[%c0_28, %c0_29] : memref<1x128xf32, #tpu.memory_space<vmem>>, vector<1x128xf32>
    %97 = vector.broadcast %96 : vector<1x128xf32> to vector<16x128xf32>
    %98 = arith.addf %95, %97 : vector<16x128xf32>
    %c0_30 = arith.constant 0 : index
    %c0_31 = arith.constant 0 : index
    %99 = vector.load %arg7[%c0_30, %c0_31] : memref<1x128xf32, #tpu.memory_space<vmem>>, vector<1x128xf32>
    %c0_32 = arith.constant 0 : index
    %c0_33 = arith.constant 0 : index
    %100 = vector.load %arg8[%c0_32, %c0_33] : memref<1x128xf32, #tpu.memory_space<vmem>>, vector<1x128xf32>
    %101 = arith.addf %2, %98 : vector<16x128xf32>
    %cst_34 = arith.constant dense<0.000000e+00> : vector<16xf32>
    %102 = vector.multi_reduction <add>, %101, %cst_34 [1] : vector<16x128xf32> to vector<16xf32>
    %103 = vector.shape_cast %102 : vector<16xf32> to vector<16x1xf32>
    %cst_35 = arith.constant 1.280000e+02 : f32
    %104 = vector.broadcast %cst_35 : f32 to vector<16x1xf32>
    %105 = arith.divf %103, %104 : vector<16x1xf32>
    %106 = vector.broadcast %105 : vector<16x1xf32> to vector<16x128xf32>
    %107 = arith.subf %101, %106 : vector<16x128xf32>
    %108 = arith.mulf %107, %107 : vector<16x128xf32>
    %cst_36 = arith.constant dense<0.000000e+00> : vector<16xf32>
    %109 = vector.multi_reduction <add>, %108, %cst_36 [1] : vector<16x128xf32> to vector<16xf32>
    %110 = vector.shape_cast %109 : vector<16xf32> to vector<16x1xf32>
    %cst_37 = arith.constant 1.280000e+02 : f32
    %111 = vector.broadcast %cst_37 : f32 to vector<16x1xf32>
    %112 = arith.divf %110, %111 : vector<16x1xf32>
    %113 = vector.broadcast %105 : vector<16x1xf32> to vector<16x128xf32>
    %114 = arith.subf %101, %113 : vector<16x128xf32>
    %cst_38 = arith.constant 9.99999996E-13 : f32
    %115 = vector.broadcast %cst_38 : f32 to vector<16x1xf32>
    %116 = arith.addf %112, %115 : vector<16x1xf32>
    %117 = math.rsqrt %116 : vector<16x1xf32>
    %118 = vector.broadcast %117 : vector<16x1xf32> to vector<16x128xf32>
    %119 = arith.mulf %114, %118 : vector<16x128xf32>
    %120 = vector.broadcast %99 : vector<1x128xf32> to vector<16x128xf32>
    %121 = arith.mulf %119, %120 : vector<16x128xf32>
    %122 = vector.broadcast %100 : vector<1x128xf32> to vector<16x128xf32>
    %123 = arith.addf %121, %122 : vector<16x128xf32>
    %124 = arith.truncf %123 : vector<16x128xf32> to vector<16x128xbf16>
    %c0_39 = arith.constant 0 : index
    %c0_40 = arith.constant 0 : index
    %125 = vector.load %arg9[%c0_39, %c0_40] : memref<128x256xbf16, #tpu.memory_space<vmem>>, vector<128x256xbf16>
    %cst_41 = arith.constant dense<0.000000e+00> : vector<16x256xf32>
    %126 = tpu.matmul %124, %125, %cst_41 {dimension_numbers = #tpu.dot_dimension_numbers<[1], [0], [0], [1], [0, 0, 1, 1], [], []>} : vector<16x128xbf16>, vector<128x256xbf16>, vector<16x256xf32> -> vector<16x256xf32>
    %c0_42 = arith.constant 0 : index
    %c0_43 = arith.constant 0 : index
    %127 = vector.load %arg10[%c0_42, %c0_43] : memref<1x256xf32, #tpu.memory_space<vmem>>, vector<1x256xf32>
    %128 = vector.broadcast %127 : vector<1x256xf32> to vector<16x256xf32>
    %129 = arith.addf %126, %128 : vector<16x256xf32>
    %cst_44 = arith.constant 0.000000e+00 : f32
    %130 = vector.broadcast %cst_44 : f32 to vector<16x256xf32>
    %131 = arith.maximumf %129, %130 : vector<16x256xf32>
    %132 = arith.truncf %131 : vector<16x256xf32> to vector<16x256xbf16>
    %c0_45 = arith.constant 0 : index
    %c0_46 = arith.constant 0 : index
    %133 = vector.load %arg11[%c0_45, %c0_46] : memref<256x128xbf16, #tpu.memory_space<vmem>>, vector<256x128xbf16>
    %cst_47 = arith.constant dense<0.000000e+00> : vector<16x128xf32>
    %134 = tpu.matmul %132, %133, %cst_47 {dimension_numbers = #tpu.dot_dimension_numbers<[1], [0], [0], [1], [0, 0, 1, 1], [], []>} : vector<16x256xbf16>, vector<256x128xbf16>, vector<16x128xf32> -> vector<16x128xf32>
    %c0_48 = arith.constant 0 : index
    %c0_49 = arith.constant 0 : index
    %135 = vector.load %arg12[%c0_48, %c0_49] : memref<1x128xf32, #tpu.memory_space<vmem>>, vector<1x128xf32>
    %136 = vector.broadcast %135 : vector<1x128xf32> to vector<16x128xf32>
    %137 = arith.addf %134, %136 : vector<16x128xf32>
    %138 = arith.addf %123, %137 : vector<16x128xf32>
    %cst_50 = arith.constant dense<0.000000e+00> : vector<16xf32>
    %139 = vector.multi_reduction <add>, %138, %cst_50 [1] : vector<16x128xf32> to vector<16xf32>
    %140 = vector.shape_cast %139 : vector<16xf32> to vector<16x1xf32>
    %cst_51 = arith.constant 1.280000e+02 : f32
    %141 = vector.broadcast %cst_51 : f32 to vector<16x1xf32>
    %142 = arith.divf %140, %141 : vector<16x1xf32>
    %143 = vector.broadcast %142 : vector<16x1xf32> to vector<16x128xf32>
    %144 = arith.subf %138, %143 : vector<16x128xf32>
    %145 = arith.mulf %144, %144 : vector<16x128xf32>
    %cst_52 = arith.constant dense<0.000000e+00> : vector<16xf32>
    %146 = vector.multi_reduction <add>, %145, %cst_52 [1] : vector<16x128xf32> to vector<16xf32>
    %147 = vector.shape_cast %146 : vector<16xf32> to vector<16x1xf32>
    %cst_53 = arith.constant 1.280000e+02 : f32
    %148 = vector.broadcast %cst_53 : f32 to vector<16x1xf32>
    %149 = arith.divf %147, %148 : vector<16x1xf32>
    %150 = vector.broadcast %142 : vector<16x1xf32> to vector<16x128xf32>
    %151 = arith.subf %138, %150 : vector<16x128xf32>
    %cst_54 = arith.constant 9.99999996E-13 : f32
    %152 = vector.broadcast %cst_54 : f32 to vector<16x1xf32>
    %153 = arith.addf %149, %152 : vector<16x1xf32>
    %154 = math.rsqrt %153 : vector<16x1xf32>
    %155 = vector.broadcast %154 : vector<16x1xf32> to vector<16x128xf32>
    %156 = arith.mulf %151, %155 : vector<16x128xf32>
    %157 = vector.broadcast %99 : vector<1x128xf32> to vector<16x128xf32>
    %158 = arith.mulf %156, %157 : vector<16x128xf32>
    %159 = vector.broadcast %100 : vector<1x128xf32> to vector<16x128xf32>
    %160 = arith.addf %158, %159 : vector<16x128xf32>
    %161 = vector.shape_cast %160 : vector<16x128xf32> to vector<1x16x128xf32>
    %162 = arith.truncf %161 : vector<1x16x128xf32> to vector<1x16x128xbf16>
    %c0_55 = arith.constant 0 : index
    %c0_56 = arith.constant 0 : index
    %c0_57 = arith.constant 0 : index
    %163 = vector.load %arg13[%c0_55, %c0_56, %c0_57] : memref<1x16x128xbf16, #tpu.memory_space<vmem>>, vector<1x16x128xbf16>
    tpu.vector_store %arg13[%c0_55, %c0_56, %c0_57], %162 {strides = array<i32>} : memref<1x16x128xbf16, #tpu.memory_space<vmem>>, vector<1x16x128xbf16>,
    return
  }
  func.func @transform_0(%arg0: i32) -> (i32, i32, i32) {
    %c0_i32 = arith.constant 0 : i32
    %c0_i32_0 = arith.constant 0 : i32
    %c0_i32_1 = arith.constant 0 : i32
    return %arg0, %c0_i32, %c0_i32_0 : i32, i32, i32
  }
  func.func @transform_1(%arg0: i32) -> (i32, i32, i32) {
    %c0_i32 = arith.constant 0 : i32
    %c0_i32_0 = arith.constant 0 : i32
    %c0_i32_1 = arith.constant 0 : i32
    return %arg0, %c0_i32, %c0_i32_0 : i32, i32, i32
  }
  func.func @transform_2(%arg0: i32) -> (i32, i32) {
    %c0_i32 = arith.constant 0 : i32
    %c0_i32_0 = arith.constant 0 : i32
    %c0_i32_1 = arith.constant 0 : i32
    return %c0_i32, %c0_i32_0 : i32, i32
  }
  func.func @transform_3(%arg0: i32) -> (i32, i32) {
    %c0_i32 = arith.constant 0 : i32
    %c0_i32_0 = arith.constant 0 : i32
    %c0_i32_1 = arith.constant 0 : i32
    return %c0_i32, %c0_i32_0 : i32, i32
  }
  func.func @transform_4(%arg0: i32) -> (i32, i32) {
    %c0_i32 = arith.constant 0 : i32
    %c0_i32_0 = arith.constant 0 : i32
    %c0_i32_1 = arith.constant 0 : i32
    return %c0_i32, %c0_i32_0 : i32, i32
  }
  func.func @transform_5(%arg0: i32) -> (i32, i32) {
    %c0_i32 = arith.constant 0 : i32
    %c0_i32_0 = arith.constant 0 : i32
    %c0_i32_1 = arith.constant 0 : i32
    return %c0_i32, %c0_i32_0 : i32, i32
  }
  func.func @transform_6(%arg0: i32) -> (i32, i32) {
    %c0_i32 = arith.constant 0 : i32
    %c0_i32_0 = arith.constant 0 : i32
    %c0_i32_1 = arith.constant 0 : i32
    return %c0_i32, %c0_i32_0 : i32, i32
  }
  func.func @transform_7(%arg0: i32) -> (i32, i32) {
    %c0_i32 = arith.constant 0 : i32
    %c0_i32_0 = arith.constant 0 : i32
    %c0_i32_1 = arith.constant 0 : i32
    return %c0_i32, %c0_i32_0 : i32, i32
  }
  func.func @transform_8(%arg0: i32) -> (i32, i32) {
    %c0_i32 = arith.constant 0 : i32
    %c0_i32_0 = arith.constant 0 : i32
    %c0_i32_1 = arith.constant 0 : i32
    return %c0_i32, %c0_i32_0 : i32, i32
  }
  func.func @transform_9(%arg0: i32) -> (i32, i32) {
    %c0_i32 = arith.constant 0 : i32
    %c0_i32_0 = arith.constant 0 : i32
    %c0_i32_1 = arith.constant 0 : i32
    return %c0_i32, %c0_i32_0 : i32, i32
  }
  func.func @transform_10(%arg0: i32) -> (i32, i32) {
    %c0_i32 = arith.constant 0 : i32
    %c0_i32_0 = arith.constant 0 : i32
    %c0_i32_1 = arith.constant 0 : i32
    return %c0_i32, %c0_i32_0 : i32, i32
  }
  func.func @transform_11(%arg0: i32) -> (i32, i32) {
    %c0_i32 = arith.constant 0 : i32
    %c0_i32_0 = arith.constant 0 : i32
    %c0_i32_1 = arith.constant 0 : i32
    return %c0_i32, %c0_i32_0 : i32, i32
  }
  func.func @transform_12(%arg0: i32) -> (i32, i32, i32) {
    %c0_i32 = arith.constant 0 : i32
    %c0_i32_0 = arith.constant 0 : i32
    %c0_i32_1 = arith.constant 0 : i32
    return %arg0, %c0_i32, %c0_i32_0 : i32, i32, i32
  }
}

</mosaic_0001>

<llo_original>
// kernel: tpu_custom_call.1
$region0: #{tpu_custom_call.1}
  #allocation0 [shape = 'u32[]', space=smem, size = 0x4, offset = 0x4, fixed_abs, tag = 'smem constant byte address 0x4 - core index']
  #allocation1 [shape = 'u32[144,128]{1,0:T(1,128)}', space=vmem, size = 0x12000, scoped, tag = 'internal scratch']
  %s0 = inlined_call_operand.hbm [shape: f32[8,128], index: 0, kind: input, shape index: {}]
  %s1 = inlined_call_operand.hbm [shape: f32[8,128], index: 1, kind: output, shape index: {}]
  %s2 = sld [smem:[#allocation0]]
  $region18: #{tpu_custom_call.1} parent=0
    _
  %s4 = ssub.s32 1, %s2
  %s5 = scalar_select 0, %s4, %s2
  $region1: #{tpu_custom_call.1} parent=0
    #allocation2 [shape = 'u8[4096]{0}', space=vmem, size = 0x1000, scoped, tag = 'input window, operand 0, single buffered']
    #allocation3 [shape = 's32[1]{0}', space=sflag, size = 0x4, scoped, tag = 'scoped memory for tpu_custom_call.1']
    #allocation4 [shape = 's32[1]{0}', space=sflag, size = 0x4, scoped, tag = 'scoped memory for tpu_custom_call.1']
    #allocation5 [shape = 'u8[4096]{0}', space=vmem, size = 0x1000, scoped, tag = 'output window, operand 0, single buffered']
    %6 = vsyncpa [#allocation3], 0
    %7 = vsyncpa [#allocation4], 0
    // Predicated region
    $region2: #{tpu_custom_call.1} parent=1 // pred_check
      _
    $region3: #{tpu_custom_call.1} parent=1 // pred_check_branch
      %9 = sbr.rel (0) target = $region5
    $region4: #{tpu_custom_call.1} parent=1 // pred_region
      %s11 = ssub.s32 128, 128
      %12 = vsyncadd [#allocation3], %s11
      %s14 = sshll.u32 [#allocation2], 4
      %s15 = int_to_ptr.vmem [resolvable:$true] %s14
      %17 = dma.hbm_to_vmem [thread:$0]  %s0, 128, %s15, [#allocation3]
    $region5: #{tpu_custom_call.1} parent=1 // pred_fallthru
      _
    // Predicated region
    $region6: #{tpu_custom_call.1} parent=1 // pred_check
      _
    $region7: #{tpu_custom_call.1} parent=1 // pred_check_branch
      %19 = sbr.rel (0) target = $region9
    $region8: #{tpu_custom_call.1} parent=1 // pred_region
      %20 = dma.done [#allocation3], 128
    $region9: #{tpu_custom_call.1} parent=1 // pred_fallthru
      _
    %v21 = vld [vmem:[#allocation2] sm:$0xff]
    %v22 = vadd.f32 %v21, 1.0
    %23 = vst [vmem:[#allocation5] sm:$0xff] %v22
    // Predicated region
    $region10: #{tpu_custom_call.1} parent=1 // pred_check
      _
    $region11: #{tpu_custom_call.1} parent=1 // pred_check_branch
      %25 = sbr.rel (0) target = $region13
    $region12: #{tpu_custom_call.1} parent=1 // pred_region
      %s27 = ssub.s32 128, 128
      %28 = vsyncadd [#allocation4], %s27
      %s30 = sshll.u32 [#allocation5], 4
      %s31 = int_to_ptr.vmem [resolvable:$true] %s30
      %33 = dma.vmem_to_hbm [thread:$0]  %s31, 128, %s1, [#allocation4]
    $region13: #{tpu_custom_call.1} parent=1 // pred_fallthru
      _
    // Predicated region
    $region14: #{tpu_custom_call.1} parent=1 // pred_check
      _
    $region15: #{tpu_custom_call.1} parent=1 // pred_check_branch
      %35 = sbr.rel (0) target = $region17
    $region16: #{tpu_custom_call.1} parent=1 // pred_region
      %36 = dma.done [#allocation4], 128
    $region17: #{tpu_custom_call.1} parent=1 // pred_fallthru
      _
    %37 = vsyncpa [#allocation3], 1
    %38 = vsyncpa [#allocation4], 1

// kernel: encoder_forward.3
$region0: #{encoder_forward.3}
  #allocation0 [shape = 'u32[]', space=smem, size = 0x4, offset = 0x4, fixed_abs, tag = 'smem constant byte address 0x4 - core index']
  #allocation1 [shape = 'u32[144,128]{1,0:T(1,128)}', space=vmem, size = 0x12000, scoped, tag = 'internal scratch']
  %s0 = inlined_call_operand.vmem [shape: bf16[2,16,128], index: 0, kind: input, shape index: {}]
  %s1 = inlined_call_operand.vmem [shape: f32[2,1,16], index: 1, kind: input, shape index: {}]
  %s2 = inlined_call_operand.vmem [shape: bf16[128,384], index: 2, kind: input, shape index: {}]
  %s3 = inlined_call_operand.vmem [shape: f32[1,384], index: 3, kind: input, shape index: {}]
  %s4 = inlined_call_operand.vmem [shape: bf16[128,128], index: 4, kind: input, shape index: {}]
  %s5 = inlined_call_operand.vmem [shape: f32[1,128], index: 5, kind: input, shape index: {}]
  %s6 = inlined_call_operand.vmem [shape: f32[1,128], index: 6, kind: input, shape index: {}]
  %s7 = inlined_call_operand.vmem [shape: f32[1,128], index: 7, kind: input, shape index: {}]
  %s8 = inlined_call_operand.vmem [shape: bf16[128,256], index: 8, kind: input, shape index: {}]
  %s9 = inlined_call_operand.vmem [shape: f32[1,256], index: 9, kind: input, shape index: {}]
  %s10 = inlined_call_operand.vmem [shape: bf16[256,128], index: 10, kind: input, shape index: {}]
  %s11 = inlined_call_operand.vmem [shape: f32[1,128], index: 11, kind: input, shape index: {}]
  %s12 = inlined_call_operand.vmem [shape: bf16[2,16,128], index: 12, kind: output, shape index: {}]
  %s13 = sld [smem:[#allocation0]]
  $region81: #{encoder_forward.3} parent=0
    _
  %s15 = ssub.s32 1, %s13
  %s16 = scalar_select 0, %s15, %s13
  loop: start=0, step=1, limit=4
  $region2: #{encoder_forward.3} parent=0 // loop_pre_header
    _
  $region3: #{encoder_forward.3} parent=0 // loop_header
    %s18 = sphi 0, %s22
    %p19 = scmp.ge.s32.totalorder %s18, 4
    %s28 = sphi 0, %s30
    %s31 = sphi 0, %s28
    %s32 = sphi 0, %s31
    %s48 = sphi 0, %s32
    %s54 = sphi 0, %s56
    %s57 = sphi 0, %s54
    %s58 = sphi 0, %s57
    %s74 = sphi 0, %s58
    %s78 = sphi 0, %s78
    %s80 = sphi 0, %s78
    %s81 = sphi 0, %s80
    %s95 = sphi 0, %s81
    %s99 = sphi 0, %s99
    %s101 = sphi 0, %s99
    %s102 = sphi 0, %s101
    %s116 = sphi 0, %s102
    %s120 = sphi 0, %s120
    %s122 = sphi 0, %s120
    %s123 = sphi 0, %s122
    %s137 = sphi 0, %s123
    %s141 = sphi 0, %s141
    %s143 = sphi 0, %s141
    %s144 = sphi 0, %s143
    %s158 = sphi 0, %s144
    %s162 = sphi 0, %s162
    %s164 = sphi 0, %s162
    %s165 = sphi 0, %s164
    %s179 = sphi 0, %s165
    %s183 = sphi 0, %s183
    %s185 = sphi 0, %s183
    %s186 = sphi 0, %s185
    %s200 = sphi 0, %s186
    %s204 = sphi 0, %s204
    %s206 = sphi 0, %s204
    %s207 = sphi 0, %s206
    %s221 = sphi 0, %s207
    %s225 = sphi 0, %s225
    %s227 = sphi 0, %s225
    %s228 = sphi 0, %s227
    %s242 = sphi 0, %s228
    %s246 = sphi 0, %s246
    %s248 = sphi 0, %s246
    %s249 = sphi 0, %s248
    %s263 = sphi 0, %s249
    %s267 = sphi 0, %s267
    %s269 = sphi 0, %s267
    %s270 = sphi 0, %s269
    %s284 = sphi 0, %s270
    %s290 = sphi 0, %s292
    %s293 = sphi 0, %s290
    %s294 = sphi 0, %s293
    %s310 = sphi 0, %s294
  $region4: #{encoder_forward.3} parent=0 // loop_header_branch
    %21 = sbr.rel (%p19) target = $region8
  $region5: #{encoder_forward.3} parent=0 // loop_body
    %s23 = ssub.s32 %s18, 1
    %s24 = ssub.s32 %s18, 2
    %s25 = sadd.s32 %s18, 1
    %s26 = ssub.s32 %s18, %s25
    %p27 = scmp.eq.s32.totalorder %s26, 0
    %s29 = sadd.s32 %s28, 1
    %s30 = scalar_select %p27, %s28, %s29
    %p33 = pneg %p27
    %p34 = scmp.eq.s32.totalorder %s18, 1
    %p35 = por %p33, %p34
    %p36 = scmp.ne.s32.totalorder %s28, %s31
    %p37 = scmp.eq.s32.totalorder %s18, 0
    %p38 = por %p36, %p37
    %p39 = scmp.ne.s32.totalorder %s28, %s31
    %p40 = scmp.eq.s32.totalorder %s23, 1
    %p41 = por %p39, %p40
    %p42 = scmp.ne.s32.totalorder %s31, %s32
    %p43 = scmp.eq.s32.totalorder %s23, 0
    %p44 = por %p42, %p43
    %p45 = scmp.ne.s32.totalorder %s31, %s32
    %p46 = scmp.eq.s32.totalorder %s24, 1
    %p47 = por %p45, %p46
    %p49 = scmp.ne.s32.totalorder %s32, %s48
    %p50 = scmp.eq.s32.totalorder %s24, 0
    %p51 = por %p49, %p50
    %s52 = ssub.s32 %s18, %s25
    %p53 = scmp.eq.s32.totalorder %s52, 0
    %s55 = sadd.s32 %s54, 1
    %s56 = scalar_select %p53, %s54, %s55
    %p59 = pneg %p53
    %p60 = scmp.eq.s32.totalorder %s18, 1
    %p61 = por %p59, %p60
    %p62 = scmp.ne.s32.totalorder %s54, %s57
    %p63 = scmp.eq.s32.totalorder %s18, 0
    %p64 = por %p62, %p63
    %p65 = scmp.ne.s32.totalorder %s54, %s57
    %p66 = scmp.eq.s32.totalorder %s23, 1
    %p67 = por %p65, %p66
    %p68 = scmp.ne.s32.totalorder %s57, %s58
    %p69 = scmp.eq.s32.totalorder %s23, 0
    %p70 = por %p68, %p69
    %p71 = scmp.ne.s32.totalorder %s57, %s58
    %p72 = scmp.eq.s32.totalorder %s24, 1
    %p73 = por %p71, %p72
    %p75 = scmp.ne.s32.totalorder %s58, %s74
    %p76 = scmp.eq.s32.totalorder %s24, 0
    %p77 = por %p75, %p76
    %s79 = sadd.s32 %s78, 1
    %p82 = scmp.eq.s32.totalorder %s18, 1
    %p83 = scmp.ne.s32.totalorder %s78, %s80
    %p84 = scmp.eq.s32.totalorder %s18, 0
    %p85 = por %p83, %p84
    %p86 = scmp.ne.s32.totalorder %s78, %s80
    %p87 = scmp.eq.s32.totalorder %s23, 1
    %p88 = por %p86, %p87
    %p89 = scmp.ne.s32.totalorder %s80, %s81
    %p90 = scmp.eq.s32.totalorder %s23, 0
    %p91 = por %p89, %p90
    %p92 = scmp.ne.s32.totalorder %s80, %s81
    %p93 = scmp.eq.s32.totalorder %s24, 1
    %p94 = por %p92, %p93
    %p96 = scmp.ne.s32.totalorder %s81, %s95
    %p97 = scmp.eq.s32.totalorder %s24, 0
    %p98 = por %p96, %p97
    %s100 = sadd.s32 %s99, 1
    %p103 = scmp.eq.s32.totalorder %s18, 1
    %p104 = scmp.ne.s32.totalorder %s99, %s101
    %p105 = scmp.eq.s32.totalorder %s18, 0
    %p106 = por %p104, %p105
    %p107 = scmp.ne.s32.totalorder %s99, %s101
    %p108 = scmp.eq.s32.totalorder %s23, 1
    %p109 = por %p107, %p108
    %p110 = scmp.ne.s32.totalorder %s101, %s102
    %p111 = scmp.eq.s32.totalorder %s23, 0
    %p112 = por %p110, %p111
    %p113 = scmp.ne.s32.totalorder %s101, %s102
    %p114 = scmp.eq.s32.totalorder %s24, 1
    %p115 = por %p113, %p114
    %p117 = scmp.ne.s32.totalorder %s102, %s116
    %p118 = scmp.eq.s32.totalorder %s24, 0
    %p119 = por %p117, %p118
    %s121 = sadd.s32 %s120, 1
    %p124 = scmp.eq.s32.totalorder %s18, 1
    %p125 = scmp.ne.s32.totalorder %s120, %s122
    %p126 = scmp.eq.s32.totalorder %s18, 0
    %p127 = por %p125, %p126
    %p128 = scmp.ne.s32.totalorder %s120, %s122
    %p129 = scmp.eq.s32.totalorder %s23, 1
    %p130 = por %p128, %p129
    %p131 = scmp.ne.s32.totalorder %s122, %s123
    %p132 = scmp.eq.s32.totalorder %s23, 0
    %p133 = por %p131, %p132
    %p134 = scmp.ne.s32.totalorder %s122, %s123
    %p135 = scmp.eq.s32.totalorder %s24, 1
    %p136 = por %p134, %p135
    %p138 = scmp.ne.s32.totalorder %s123, %s137
    %p139 = scmp.eq.s32.totalorder %s24, 0
    %p140 = por %p138, %p139
    %s142 = sadd.s32 %s141, 1
    %p145 = scmp.eq.s32.totalorder %s18, 1
    %p146 = scmp.ne.s32.totalorder %s141, %s143
    %p147 = scmp.eq.s32.totalorder %s18, 0
    %p148 = por %p146, %p147
    %p149 = scmp.ne.s32.totalorder %s141, %s143
    %p150 = scmp.eq.s32.totalorder %s23, 1
    %p151 = por %p149, %p150
    %p152 = scmp.ne.s32.totalorder %s143, %s144
    %p153 = scmp.eq.s32.totalorder %s23, 0
    %p154 = por %p152, %p153
    %p155 = scmp.ne.s32.totalorder %s143, %s144
    %p156 = scmp.eq.s32.totalorder %s24, 1
    %p157 = por %p155, %p156
    %p159 = scmp.ne.s32.totalorder %s144, %s158
    %p160 = scmp.eq.s32.totalorder %s24, 0
    %p161 = por %p159, %p160
    %s163 = sadd.s32 %s162, 1
    %p166 = scmp.eq.s32.totalorder %s18, 1
    %p167 = scmp.ne.s32.totalorder %s162, %s164
    %p168 = scmp.eq.s32.totalorder %s18, 0
    %p169 = por %p167, %p168
    %p170 = scmp.ne.s32.totalorder %s162, %s164
    %p171 = scmp.eq.s32.totalorder %s23, 1
    %p172 = por %p170, %p171
    %p173 = scmp.ne.s32.totalorder %s164, %s165
    %p174 = scmp.eq.s32.totalorder %s23, 0
    %p175 = por %p173, %p174
    %p176 = scmp.ne.s32.totalorder %s164, %s165
    %p177 = scmp.eq.s32.totalorder %s24, 1
    %p178 = por %p176, %p177
    %p180 = scmp.ne.s32.totalorder %s165, %s179
    %p181 = scmp.eq.s32.totalorder %s24, 0
    %p182 = por %p180, %p181
    %s184 = sadd.s32 %s183, 1
    %p187 = scmp.eq.s32.totalorder %s18, 1
    %p188 = scmp.ne.s32.totalorder %s183, %s185
    %p189 = scmp.eq.s32.totalorder %s18, 0
    %p190 = por %p188, %p189
    %p191 = scmp.ne.s32.totalorder %s183, %s185
    %p192 = scmp.eq.s32.totalorder %s23, 1
    %p193 = por %p191, %p192
    %p194 = scmp.ne.s32.totalorder %s185, %s186
    %p195 = scmp.eq.s32.totalorder %s23, 0
    %p196 = por %p194, %p195
    %p197 = scmp.ne.s32.totalorder %s185, %s186
    %p198 = scmp.eq.s32.totalorder %s24, 1
    %p199 = por %p197, %p198
    %p201 = scmp.ne.s32.totalorder %s186, %s200
    %p202 = scmp.eq.s32.totalorder %s24, 0
    %p203 = por %p201, %p202
    %s205 = sadd.s32 %s204, 1
    %p208 = scmp.eq.s32.totalorder %s18, 1
    %p209 = scmp.ne.s32.totalorder %s204, %s206
    %p210 = scmp.eq.s32.totalorder %s18, 0
    %p211 = por %p209, %p210
    %p212 = scmp.ne.s32.totalorder %s204, %s206
    %p213 = scmp.eq.s32.totalorder %s23, 1
    %p214 = por %p212, %p213
    %p215 = scmp.ne.s32.totalorder %s206, %s207
    %p216 = scmp.eq.s32.totalorder %s23, 0
    %p217 = por %p215, %p216
    %p218 = scmp.ne.s32.totalorder %s206, %s207
    %p219 = scmp.eq.s32.totalorder %s24, 1
    %p220 = por %p218, %p219
    %p222 = scmp.ne.s32.totalorder %s207, %s221
    %p223 = scmp.eq.s32.totalorder %s24, 0
    %p224 = por %p222, %p223
    %s226 = sadd.s32 %s225, 1
    %p229 = scmp.eq.s32.totalorder %s18, 1
    %p230 = scmp.ne.s32.totalorder %s225, %s227
    %p231 = scmp.eq.s32.totalorder %s18, 0
    %p232 = por %p230, %p231
    %p233 = scmp.ne.s32.totalorder %s225, %s227
    %p234 = scmp.eq.s32.totalorder %s23, 1
    %p235 = por %p233, %p234
    %p236 = scmp.ne.s32.totalorder %s227, %s228
    %p237 = scmp.eq.s32.totalorder %s23, 0
    %p238 = por %p236, %p237
    %p239 = scmp.ne.s32.totalorder %s227, %s228
    %p240 = scmp.eq.s32.totalorder %s24, 1
    %p241 = por %p239, %p240
    %p243 = scmp.ne.s32.totalorder %s228, %s242
    %p244 = scmp.eq.s32.totalorder %s24, 0
    %p245 = por %p243, %p244
    %s247 = sadd.s32 %s246, 1
    %p250 = scmp.eq.s32.totalorder %s18, 1
    %p251 = scmp.ne.s32.totalorder %s246, %s248
    %p252 = scmp.eq.s32.totalorder %s18, 0
    %p253 = por %p251, %p252
    %p254 = scmp.ne.s32.totalorder %s246, %s248
    %p255 = scmp.eq.s32.totalorder %s23, 1
    %p256 = por %p254, %p255
    %p257 = scmp.ne.s32.totalorder %s248, %s249
    %p258 = scmp.eq.s32.totalorder %s23, 0
    %p259 = por %p257, %p258
    %p260 = scmp.ne.s32.totalorder %s248, %s249
    %p261 = scmp.eq.s32.totalorder %s24, 1
    %p262 = por %p260, %p261
    %p264 = scmp.ne.s32.totalorder %s249, %s263
    %p265 = scmp.eq.s32.totalorder %s24, 0
    %p266 = por %p264, %p265
    %s268 = sadd.s32 %s267, 1
    %p271 = scmp.eq.s32.totalorder %s18, 1
    %p272 = scmp.ne.s32.totalorder %s267, %s269
    %p273 = scmp.eq.s32.totalorder %s18, 0
    %p274 = por %p272, %p273
    %p275 = scmp.ne.s32.totalorder %s267, %s269
    %p276 = scmp.eq.s32.totalorder %s23, 1
    %p277 = por %p275, %p276
    %p278 = scmp.ne.s32.totalorder %s269, %s270
    %p279 = scmp.eq.s32.totalorder %s23, 0
    %p280 = por %p278, %p279
    %p281 = scmp.ne.s32.totalorder %s269, %s270
    %p282 = scmp.eq.s32.totalorder %s24, 1
    %p283 = por %p281, %p282
    %p285 = scmp.ne.s32.totalorder %s270, %s284
    %p286 = scmp.eq.s32.totalorder %s24, 0
    %p287 = por %p285, %p286
    %s288 = ssub.s32 %s18, %s25
    %p289 = scmp.eq.s32.totalorder %s288, 0
    %s291 = sadd.s32 %s290, 1
    %s292 = scalar_select %p289, %s290, %s291
    %p295 = pneg %p289
    %p296 = scmp.eq.s32.totalorder %s18, 1
    %p297 = por %p295, %p296
    %p298 = scmp.ne.s32.totalorder %s290, %s293
    %p299 = scmp.eq.s32.totalorder %s18, 0
    %p300 = por %p298, %p299
    %p301 = scmp.ne.s32.totalorder %s290, %s293
    %p302 = scmp.eq.s32.totalorder %s23, 1
    %p303 = por %p301, %p302
    %p304 = scmp.ne.s32.totalorder %s293, %s294
    %p305 = scmp.eq.s32.totalorder %s23, 0
    %p306 = por %p304, %p305
    %p307 = scmp.ne.s32.totalorder %s293, %s294
    %p308 = scmp.eq.s32.totalorder %s24, 1
    %p309 = por %p307, %p308
    %p311 = scmp.ne.s32.totalorder %s294, %s310
    %p312 = scmp.eq.s32.totalorder %s24, 0
    %p313 = por %p311, %p312
    %p314 = scmp.le.s32.totalorder 1, %s18
    %p315 = scmp.lt.s32.totalorder %s18, 3
    %p316 = pnand %p314, %p315
    %p317 = pneg %p316
    // Predicated region
    $region9: #{encoder_forward.3} parent=5 // pred_check
      _
    $region10: #{encoder_forward.3} parent=5 // pred_check_branch
      %319 = sbr.rel (%p316) target = $region12
    $region11: #{encoder_forward.3} parent=5 // pred_region
      %s320 = ssub.s32 %s18, 1
      // Predicated region
      $region13: #{encoder_forward.3} parent=11 // pred_check
        %p321 = pneg %p91
      $region14: #{encoder_forward.3} parent=11 // pred_check_branch
        %323 = sbr.rel (%p321) target = $region16
      $region15: #{encoder_forward.3} parent=11 // pred_region
        _
      $region16: #{encoder_forward.3} parent=11 // pred_fallthru
        _
      // Predicated region
      $region17: #{encoder_forward.3} parent=11 // pred_check
        %p324 = pneg %p112
      $region18: #{encoder_forward.3} parent=11 // pred_check_branch
        %326 = sbr.rel (%p324) target = $region20
      $region19: #{encoder_forward.3} parent=11 // pred_region
        _
      $region20: #{encoder_forward.3} parent=11 // pred_fallthru
        _
      // Predicated region
      $region21: #{encoder_forward.3} parent=11 // pred_check
        %p327 = pneg %p133
      $region22: #{encoder_forward.3} parent=11 // pred_check_branch
        %329 = sbr.rel (%p327) target = $region24
      $region23: #{encoder_forward.3} parent=11 // pred_region
        _
      $region24: #{encoder_forward.3} parent=11 // pred_fallthru
        _
      // Predicated region
      $region25: #{encoder_forward.3} parent=11 // pred_check
        %p330 = pneg %p154
      $region26: #{encoder_forward.3} parent=11 // pred_check_branch
        %332 = sbr.rel (%p330) target = $region28
      $region27: #{encoder_forward.3} parent=11 // pred_region
        _
      $region28: #{encoder_forward.3} parent=11 // pred_fallthru
        _
      // Predicated region
      $region29: #{encoder_forward.3} parent=11 // pred_check
        %p333 = pneg %p175
      $region30: #{encoder_forward.3} parent=11 // pred_check_branch
        %335 = sbr.rel (%p333) target = $region32
      $region31: #{encoder_forward.3} parent=11 // pred_region
        _
      $region32: #{encoder_forward.3} parent=11 // pred_fallthru
        _
      // Predicated region
      $region33: #{encoder_forward.3} parent=11 // pred_check
        %p336 = pneg %p196
      $region34: #{encoder_forward.3} parent=11 // pred_check_branch
        %338 = sbr.rel (%p336) target = $region36
      $region35: #{encoder_forward.3} parent=11 // pred_region
        _
      $region36: #{encoder_forward.3} parent=11 // pred_fallthru
        _
      // Predicated region
      $region37: #{encoder_forward.3} parent=11 // pred_check
        %p339 = pneg %p217
      $region38: #{encoder_forward.3} parent=11 // pred_check_branch
        %341 = sbr.rel (%p339) target = $region40
      $region39: #{encoder_forward.3} parent=11 // pred_region
        _
      $region40: #{encoder_forward.3} parent=11 // pred_fallthru
        _
      // Predicated region
      $region41: #{encoder_forward.3} parent=11 // pred_check
        %p342 = pneg %p238
      $region42: #{encoder_forward.3} parent=11 // pred_check_branch
        %344 = sbr.rel (%p342) target = $region44
      $region43: #{encoder_forward.3} parent=11 // pred_region
        _
      $region44: #{encoder_forward.3} parent=11 // pred_fallthru
        _
      // Predicated region
      $region45: #{encoder_forward.3} parent=11 // pred_check
        %p345 = pneg %p259
      $region46: #{encoder_forward.3} parent=11 // pred_check_branch
        %347 = sbr.rel (%p345) target = $region48
      $region47: #{encoder_forward.3} parent=11 // pred_region
        _
      $region48: #{encoder_forward.3} parent=11 // pred_fallthru
        _
      // Predicated region
      $region49: #{encoder_forward.3} parent=11 // pred_check
        %p348 = pneg %p280
      $region50: #{encoder_forward.3} parent=11 // pred_check_branch
        %350 = sbr.rel (%p348) target = $region52
      $region51: #{encoder_forward.3} parent=11 // pred_region
        _
      $region52: #{encoder_forward.3} parent=11 // pred_fallthru
        _
    $region12: #{encoder_forward.3} parent=5 // pred_fallthru
      _
    %p351 = scmp.lt.s32.totalorder %s18, 2
    // Predicated region
    $region53: #{encoder_forward.3} parent=5 // pred_check
      %p352 = pneg %p351
    $region54: #{encoder_forward.3} parent=5 // pred_check_branch
      %354 = sbr.rel (%p352) target = $region56
    $region55: #{encoder_forward.3} parent=5 // pred_region
      // Predicated region
      $region57: #{encoder_forward.3} parent=55 // pred_check
        %p355 = pneg %p38
      $region58: #{encoder_forward.3} parent=55 // pred_check_branch
        %357 = sbr.rel (%p355) target = $region60
      $region59: #{encoder_forward.3} parent=55 // pred_region
        %p358 = scmp.lt.s32.totalorder %s18, 1
        %s359 = scalar_select %p358, %s18, 1
        %s360 = smul.addr %s359, 2
        %s361 = smul.addr %s360, 4
        %s362 = scalar_lea.vmem %s0, %s361
      $region60: #{encoder_forward.3} parent=55 // pred_fallthru
        _
      // Predicated region
      $region61: #{encoder_forward.3} parent=55 // pred_check
        %p363 = pneg %p64
      $region62: #{encoder_forward.3} parent=55 // pred_check_branch
        %365 = sbr.rel (%p363) target = $region64
      $region63: #{encoder_forward.3} parent=55 // pred_region
        %p366 = scmp.lt.s32.totalorder %s18, 1
        %s367 = scalar_select %p366, %s18, 1
        %s368 = scalar_lea.vmem %s1, %s367
      $region64: #{encoder_forward.3} parent=55 // pred_fallthru
        _
    $region56: #{encoder_forward.3} parent=5 // pred_fallthru
      _
    %p369 = scmp.le.s32.totalorder 1, %s18
    %p370 = scmp.lt.s32.totalorder %s18, 3
    %p371 = pnand %p369, %p370
    %p372 = pneg %p371
    // Predicated region
    $region65: #{encoder_forward.3} parent=5 // pred_check
      _
    $region66: #{encoder_forward.3} parent=5 // pred_check_branch
      %374 = sbr.rel (%p371) target = $region68
    $region67: #{encoder_forward.3} parent=5 // pred_region
      %s375 = ssub.s32 %s18, 1
      %p376 = scmp.lt.s32.totalorder %s23, 1
      %s377 = scalar_select %p376, %s23, 1
      %s378 = smul.addr %s377, 2
      %s379 = smul.addr %s378, 4
      %s380 = scalar_lea.vmem %s0, %s379
      %p381 = pneg %p44
      %p382 = pneg %p41
      %p383 = scmp.lt.s32.totalorder %s23, 1
      %s384 = scalar_select %p383, %s23, 1
      %s385 = scalar_lea.vmem %s1, %s384
      %p386 = pneg %p70
      %p387 = pneg %p67
      %p388 = pneg %p91
      %p389 = pneg %p88
      %p390 = pneg %p112
      %p391 = pneg %p109
      %p392 = pneg %p133
      %p393 = pneg %p130
      %p394 = pneg %p154
      %p395 = pneg %p151
      %p396 = pneg %p175
      %p397 = pneg %p172
      %p398 = pneg %p196
      %p399 = pneg %p193
      %p400 = pneg %p217
      %p401 = pneg %p214
      %p402 = pneg %p238
      %p403 = pneg %p235
      %p404 = pneg %p259
      %p405 = pneg %p256
      %p406 = pneg %p280
      %p407 = pneg %p277
      %p408 = pneg %p306
      %p409 = pneg %p303
      %p410 = scmp.lt.s32.totalorder %s23, 1
      %s411 = scalar_select %p410, %s23, 1
      %s412 = smul.addr %s411, 2
      %s413 = smul.addr %s412, 4
      %s414 = scalar_lea.vmem %s12, %s413
      %p415 = scmp.lt.s32.totalorder %s23, 1
      %s416 = scalar_select %p415, %s23, 1
      %s417 = smul.addr %s416, 2
      %s418 = smul.addr %s417, 4
      %s419 = scalar_lea.vmem %s0, %s418
      %p420 = scmp.lt.s32.totalorder %s23, 1
      %s421 = scalar_select %p420, %s23, 1
      %s422 = scalar_lea.vmem %s1, %s421
      %p423 = scmp.lt.s32.totalorder %s23, 1
      %s424 = scalar_select %p423, %s23, 1
      %s425 = smul.addr %s424, 2
      %s426 = smul.addr %s425, 4
      %s427 = scalar_lea.vmem %s12, %s426
      %v429 = vld [vmem:[%s419] sm:$0xf]
      %v430 = vld [vmem:[%s419 + $0x4] sm:$0xf]
      %v431 = vunpack.c.l.bf16 %v429
      %v432 = vunpack.c.l.bf16 %v430
      %v433 = vpack.c.bf16 %v432, %v431
      %v434 = vld [vmem:[%s2] sm:$0xff]
      %v435 = vld [vmem:[%s2 + $0x8] sm:$0xf]
      %v436 = vld [vmem:[%s2 + $0xc] sm:$0xff]
      %v437 = vld [vmem:[%s2 + $0x14] sm:$0xf]
      %v438 = vld [vmem:[%s2 + $0x18] sm:$0xff]
      %v439 = vld [vmem:[%s2 + $0x20] sm:$0xf]
      %v440 = vld [vmem:[%s2 + $0x24] sm:$0xff]
      %v441 = vld [vmem:[%s2 + $0x2c] sm:$0xf]
      %v442 = vld [vmem:[%s2 + $0x30] sm:$0xff]
      %v443 = vld [vmem:[%s2 + $0x38] sm:$0xf]
      %v444 = vld [vmem:[%s2 + $0x3c] sm:$0xff]
      %v445 = vld [vmem:[%s2 + $0x44] sm:$0xf]
      %v446 = vld [vmem:[%s2 + $0x48] sm:$0xff]
      %v447 = vld [vmem:[%s2 + $0x50] sm:$0xf]
      %v448 = vld [vmem:[%s2 + $0x54] sm:$0xff]
      %v449 = vld [vmem:[%s2 + $0x5c] sm:$0xf]
      %v450 = vld [vmem:[%s2 + $0x60] sm:$0xff]
      %v451 = vld [vmem:[%s2 + $0x68] sm:$0xf]
      %v452 = vld [vmem:[%s2 + $0x6c] sm:$0xff]
      %v453 = vld [vmem:[%s2 + $0x74] sm:$0xf]
      %v454 = vld [vmem:[%s2 + $0x78] sm:$0xff]
      %v455 = vld [vmem:[%s2 + $0x80] sm:$0xf]
      %v456 = vld [vmem:[%s2 + $0x84] sm:$0xff]
      %v457 = vld [vmem:[%s2 + $0x8c] sm:$0xf]
      %v458 = vld [vmem:[%s2 + $0x90] sm:$0xff]
      %v459 = vld [vmem:[%s2 + $0x98] sm:$0xf]
      %v460 = vld [vmem:[%s2 + $0x9c] sm:$0xff]
      %v461 = vld [vmem:[%s2 + $0xa4] sm:$0xf]
      %v462 = vld [vmem:[%s2 + $0xa8] sm:$0xff]
      %v463 = vld [vmem:[%s2 + $0xb0] sm:$0xf]
      %v464 = vld [vmem:[%s2 + $0xb4] sm:$0xff]
      %v465 = vld [vmem:[%s2 + $0xbc] sm:$0xf]
      %v466 = vld [vmem:[%s3] sm:$0x7]
      %v468 = vlaneseq
      %v469 = vshrl.u32 %v468, 7
      %v470 = vsub.s32 0, %v469
      %v471 = vrot.slane %v466, %v470
      %v472 = vlaneseq
      %v473 = vshrl.u32 %v472, 7
      %v474 = vsub.s32 1, %v473
      %v475 = vrot.slane %v466, %v474
      %v476 = vlaneseq
      %v477 = vshrl.u32 %v476, 7
      %v478 = vsub.s32 2, %v477
      %v479 = vrot.slane %v466, %v478
      %v515 = vunpack.c.l.b16 %v434
      %v516 = vunpack.c.h.b16 %v434
      %v517 = vunpack.c.l.b16 %v435
      %v518 = vunpack.c.l.b16 %v436
      %v519 = vunpack.c.h.b16 %v436
      %v520 = vunpack.c.l.b16 %v437
      %v521 = vunpack.c.l.b16 %v438
      %v522 = vunpack.c.h.b16 %v438
      %v523 = vunpack.c.l.b16 %v439
      %v524 = vunpack.c.l.b16 %v440
      %v525 = vunpack.c.h.b16 %v440
      %v526 = vunpack.c.l.b16 %v441
      %v527 = vunpack.c.l.b16 %v442
      %v528 = vunpack.c.h.b16 %v442
      %v529 = vunpack.c.l.b16 %v443
      %v530 = vunpack.c.l.b16 %v444
      %v531 = vunpack.c.h.b16 %v444
      %v532 = vunpack.c.l.b16 %v445
      %v533 = vunpack.c.l.b16 %v446
      %v534 = vunpack.c.h.b16 %v446
      %v535 = vunpack.c.l.b16 %v447
      %v536 = vunpack.c.l.b16 %v448
      %v537 = vunpack.c.h.b16 %v448
      %v538 = vunpack.c.l.b16 %v449
      %v539 = vunpack.c.l.b16 %v450
      %v540 = vunpack.c.h.b16 %v450
      %v541 = vunpack.c.l.b16 %v451
      %v542 = vunpack.c.l.b16 %v452
      %v543 = vunpack.c.h.b16 %v452
      %v544 = vunpack.c.l.b16 %v453
      %v545 = vunpack.c.l.b16 %v454
      %v546 = vunpack.c.h.b16 %v454
      %v547 = vunpack.c.l.b16 %v455
      %v548 = vunpack.c.l.b16 %v456
      %v549 = vunpack.c.h.b16 %v456
      %v550 = vunpack.c.l.b16 %v457
      %v551 = vunpack.c.l.b16 %v458
      %v552 = vunpack.c.h.b16 %v458
      %v553 = vunpack.c.l.b16 %v459
      %v554 = vunpack.c.l.b16 %v460
      %v555 = vunpack.c.h.b16 %v460
      %v556 = vunpack.c.l.b16 %v461
      %v557 = vunpack.c.l.b16 %v462
      %v558 = vunpack.c.h.b16 %v462
      %v559 = vunpack.c.l.b16 %v463
      %v560 = vunpack.c.l.b16 %v464
      %v561 = vunpack.c.h.b16 %v464
      %v562 = vunpack.c.l.b16 %v465
      %v563 = vpack.c.b16 %v518, %v515
      %v564 = vpack.c.b16 %v519, %v516
      %v565 = vpack.c.b16 %v520, %v517
      %v566 = vpack.c.b16 %v524, %v521
      %v567 = vpack.c.b16 %v525, %v522
      %v568 = vpack.c.b16 %v526, %v523
      %v569 = vpack.c.b16 %v530, %v527
      %v570 = vpack.c.b16 %v531, %v528
      %v571 = vpack.c.b16 %v532, %v529
      %v572 = vpack.c.b16 %v536, %v533
      %v573 = vpack.c.b16 %v537, %v534
      %v574 = vpack.c.b16 %v538, %v535
      %v575 = vpack.c.b16 %v542, %v539
      %v576 = vpack.c.b16 %v543, %v540
      %v577 = vpack.c.b16 %v544, %v541
      %v578 = vpack.c.b16 %v548, %v545
      %v579 = vpack.c.b16 %v549, %v546
      %v580 = vpack.c.b16 %v550, %v547
      %v581 = vpack.c.b16 %v554, %v551
      %v582 = vpack.c.b16 %v555, %v552
      %v583 = vpack.c.b16 %v556, %v553
      %v584 = vpack.c.b16 %v560, %v557
      %v585 = vpack.c.b16 %v561, %v558
      %v586 = vpack.c.b16 %v562, %v559
      %611 = vmatprep.subr.bf16.mxu0 %v564
      %612 = vmatpush1.bf16.msra.mxu0 %v563
      %613 = vmatprep.subr.bf16.mxu0 %v567
      %614 = vmatpush1.bf16.msra.mxu0 %v566
      %615 = vmatprep.subr.bf16.mxu0 %v570
      %616 = vmatpush1.bf16.msra.mxu0 %v569
      %617 = vmatprep.subr.bf16.mxu0 %v573
      %618 = vmatpush1.bf16.msra.mxu0 %v572
      %619 = vmatprep.subr.bf16.mxu0 %v576
      %620 = vmatpush1.bf16.msra.mxu0 %v575
      %621 = vmatprep.subr.bf16.mxu0 %v579
      %622 = vmatpush1.bf16.msra.mxu0 %v578
      %623 = vmatprep.subr.bf16.mxu0 %v582
      %624 = vmatpush1.bf16.msra.mxu0 %v581
      %625 = vmatprep.subr.bf16.mxu0 %v585
      %626 = vmatpush1.bf16.msra.mxu0 %v584
      %627 = vmatprep.subr.bf16.mxu0 0
      %628 = vmatpush1.bf16.msra.mxu0 0
      %629 = vmatprep.subr.bf16.mxu0 0
      %630 = vmatpush1.bf16.msra.mxu0 0
      %631 = vmatprep.subr.bf16.mxu0 0
      %632 = vmatpush1.bf16.msra.mxu0 0
      %633 = vmatprep.subr.bf16.mxu0 0
      %634 = vmatpush1.bf16.msra.mxu0 0
      %635 = vmatprep.subr.bf16.mxu0 0
      %636 = vmatpush1.bf16.msra.mxu0 0
      %637 = vmatprep.subr.bf16.mxu0 0
      %638 = vmatpush1.bf16.msra.mxu0 0
      %639 = vmatprep.subr.bf16.mxu0 0
      %640 = vmatpush1.bf16.msra.mxu0 0
      %641 = vmatprep.subr.bf16.mxu0 0
      %642 = vmatpush1.bf16.msra.mxu0 0
      %643 = vmatprep.mubr.bf16.mxu0 0
      %644 = vmatmul.mubr.bf16.gmra.mrb[0].mxu0 %v433
      %v645 = vpop.f32.mrb[0].mxu0
      %v646 = vadd.f32 %v471, %v645
      %v647 = vpop.f32.mrb[0].mxu0
      %v648 = vadd.f32 %v475, %v647
      %v649 = vpop.f32.mrb[0].mxu0
      %v650 = vadd.f32 %v471, %v649
      %v651 = vpop.f32.mrb[0].mxu0
      %v652 = vadd.f32 %v475, %v651
      %653 = vdwg.mxu0
      %654 = vmatprep.subr.bf16.mxu0 0
      %655 = vmatpush1.bf16.msra.mxu0 %v565
      %656 = vmatprep.subr.bf16.mxu0 0
      %657 = vmatpush1.bf16.msra.mxu0 %v568
      %658 = vmatprep.subr.bf16.mxu0 0
      %659 = vmatpush1.bf16.msra.mxu0 %v571
      %660 = vmatprep.subr.bf16.mxu0 0
      %661 = vmatpush1.bf16.msra.mxu0 %v574
      %662 = vmatprep.subr.bf16.mxu0 0
      %663 = vmatpush1.bf16.msra.mxu0 %v577
      %664 = vmatprep.subr.bf16.mxu0 0
      %665 = vmatpush1.bf16.msra.mxu0 %v580
      %666 = vmatprep.subr.bf16.mxu0 0
      %667 = vmatpush1.bf16.msra.mxu0 %v583
      %668 = vmatprep.subr.bf16.mxu0 0
      %669 = vmatpush1.bf16.msra.mxu0 %v586
      %670 = vmatprep.subr.bf16.mxu0 0
      %671 = vmatpush1.bf16.msra.mxu0 0
      %672 = vmatprep.subr.bf16.mxu0 0
      %673 = vmatpush1.bf16.msra.mxu0 0
      %674 = vmatprep.subr.bf16.mxu0 0
      %675 = vmatpush1.bf16.msra.mxu0 0
      %676 = vmatprep.subr.bf16.mxu0 0
      %677 = vmatpush1.bf16.msra.mxu0 0
      %678 = vmatprep.subr.bf16.mxu0 0
      %679 = vmatpush1.bf16.msra.mxu0 0
      %680 = vmatprep.subr.bf16.mxu0 0
      %681 = vmatpush1.bf16.msra.mxu0 0
      %682 = vmatprep.subr.bf16.mxu0 0
      %683 = vmatpush1.bf16.msra.mxu0 0
      %684 = vmatprep.subr.bf16.mxu0 0
      %685 = vmatpush1.bf16.msra.mxu0 0
      %686 = vmatprep.mubr.bf16.mxu0 0
      %687 = vmatmul.mubr.bf16.gmra.mrb[0].mxu0 %v433
      %v688 = vpop.f32.mrb[0].mxu0
      %v689 = vadd.f32 %v479, %v688
      %v690 = vpop.f32.mrb[0].mxu0
      %v691 = vpop.f32.mrb[0].mxu0
      %v692 = vadd.f32 %v479, %v691
      %v693 = vpop.f32.mrb[0].mxu0
      %694 = vdwg.mxu0
      %v695 = vpack.c.bf16 %v650, %v646
      %v696 = vpack.c.bf16 %v652, %v648
      %v697 = vpack.c.bf16 %v692, %v689
      %v698 = vld [vmem:[%s422] sm:$0x1]
      %v700 = vlaneseq
      %v701 = vshrl.u32 %v700, 7
      %v702 = vsub.s32 0, %v701
      %v703 = vrot.slane %v698, %v702
      %vm705 = vcmask 261120
      %v707 = vsel %vm705, %v695, 0
      %v710 = vsel %vm705, %v696, 0
      %712 = vmatprep.subr.bf16.mxu0 0
      %713 = vmatpush1.bf16.xpose.msra.mxu0 %v710
      %714 = vmatprep.subr.bf16.mxu0 0
      %715 = vmatpush1.bf16.xpose.msra.mxu0 0
      %716 = vmatprep.subr.bf16.mxu0 0
      %717 = vmatpush1.bf16.xpose.msra.mxu0 0
      %718 = vmatprep.subr.bf16.mxu0 0
      %719 = vmatpush1.bf16.xpose.msra.mxu0 0
      %720 = vmatprep.subr.bf16.mxu0 0
      %721 = vmatpush1.bf16.xpose.msra.mxu0 0
      %722 = vmatprep.subr.bf16.mxu0 0
      %723 = vmatpush1.bf16.xpose.msra.mxu0 0
      %724 = vmatprep.subr.bf16.mxu0 0
      %725 = vmatpush1.bf16.xpose.msra.mxu0 0
      %726 = vmatprep.subr.bf16.mxu0 0
      %727 = vmatpush1.bf16.xpose.msra.mxu0 0
      %728 = vmatprep.subr.bf16.mxu0 0
      %729 = vmatpush1.bf16.xpose.msra.mxu0 0
      %730 = vmatprep.subr.bf16.mxu0 0
      %731 = vmatpush1.bf16.xpose.msra.mxu0 0
      %732 = vmatprep.subr.bf16.mxu0 0
      %733 = vmatpush1.bf16.xpose.msra.mxu0 0
      %734 = vmatprep.subr.bf16.mxu0 0
      %735 = vmatpush1.bf16.xpose.msra.mxu0 0
      %736 = vmatprep.subr.bf16.mxu0 0
      %737 = vmatpush1.bf16.xpose.msra.mxu0 0
      %738 = vmatprep.subr.bf16.mxu0 0
      %739 = vmatpush1.bf16.xpose.msra.mxu0 0
      %740 = vmatprep.subr.bf16.mxu0 0
      %741 = vmatpush1.bf16.xpose.msra.mxu0 0
      %742 = vmatprep.subr.bf16.mxu0 0
      %743 = vmatpush1.bf16.xpose.msra.mxu0 0
      %744 = vmatprep.mubr.bf16.mxu0 0
      %745 = vmatmul.mubr.bf16.gmra.mrb[0].mxu0 %v707
      %v746 = vpop.f32.mrb[0].mxu0
      %v747 = vadd.f32 %v703, %v746
      %v748 = vpop.f32.mrb[0].mxu0
      %v749 = vpop.f32.mrb[0].mxu0
      %v750 = vadd.f32 %v703, %v749
      %v751 = vpop.f32.mrb[0].mxu0
      %752 = vdwg.mxu0
      %vm753 = vcmask 130048
      %v754 = vsel %vm753, %v747, -inf
      %755 = vmax.xlane.f32.xlu0 %v754
      %v756 = vpop.xlane.xlu0 %755
      %v757 = vsel %vm753, %v750, -inf
      %758 = vmax.xlane.f32.xlu0 %v757
      %v759 = vpop.xlane.xlu0 %758
      %v760 = vsub.f32 %v747, %v756
      %v761 = vsub.f32 %v750, %v759
      %v762 = vmul.f32 %v760, 1.442695
      %v763 = vpow.pop %v762
      %v764 = vmul.f32 %v761, 1.442695
      %v765 = vpow.pop %v764
      %v766 = vsel %vm753, %v763, 0.0
      %767 = vadd.xlane.f32.xlu0 %v766
      %v768 = vpop.xlane.xlu0 %767
      %v769 = vsel %vm753, %v765, 0.0
      %770 = vadd.xlane.f32.xlu0 %v769
      %v771 = vpop.xlane.xlu0 %770
      %v772 = vrcp.pop %v768
      %v773 = vmul.f32 %v763, %v772
      %v774 = vrcp.pop %v771
      %v775 = vmul.f32 %v765, %v774
      %v776 = vpack.c.bf16 %v775, %v773
      %v778 = vsel %vm753, %v776, 0
      %780 = vmatprep.subr.bf16.mxu0 0
      %781 = vmatpush1.bf16.msra.mxu0 %v697
      %782 = vmatprep.subr.bf16.mxu0 0
      %783 = vmatpush1.bf16.msra.mxu0 0
      %784 = vmatprep.subr.bf16.mxu0 0
      %785 = vmatpush1.bf16.msra.mxu0 0
      %786 = vmatprep.subr.bf16.mxu0 0
      %787 = vmatpush1.bf16.msra.mxu0 0
      %788 = vmatprep.subr.bf16.mxu0 0
      %789 = vmatpush1.bf16.msra.mxu0 0
      %790 = vmatprep.subr.bf16.mxu0 0
      %791 = vmatpush1.bf16.msra.mxu0 0
      %792 = vmatprep.subr.bf16.mxu0 0
      %793 = vmatpush1.bf16.msra.mxu0 0
      %794 = vmatprep.subr.bf16.mxu0 0
      %795 = vmatpush1.bf16.msra.mxu0 0
      %796 = vmatprep.subr.bf16.mxu0 0
      %797 = vmatpush1.bf16.msra.mxu0 0
      %798 = vmatprep.subr.bf16.mxu0 0
      %799 = vmatpush1.bf16.msra.mxu0 0
      %800 = vmatprep.subr.bf16.mxu0 0
      %801 = vmatpush1.bf16.msra.mxu0 0
      %802 = vmatprep.subr.bf16.mxu0 0
      %803 = vmatpush1.bf16.msra.mxu0 0
      %804 = vmatprep.subr.bf16.mxu0 0
      %805 = vmatpush1.bf16.msra.mxu0 0
      %806 = vmatprep.subr.bf16.mxu0 0
      %807 = vmatpush1.bf16.msra.mxu0 0
      %808 = vmatprep.subr.bf16.mxu0 0
      %809 = vmatpush1.bf16.msra.mxu0 0
      %810 = vmatprep.subr.bf16.mxu0 0
      %811 = vmatpush1.bf16.msra.mxu0 0
      %812 = vmatprep.mubr.bf16.mxu0 0
      %813 = vmatmul.mubr.bf16.gmra.mrb[0].mxu0 %v778
      %v814 = vpop.f32.mrb[0].mxu0
      %v815 = vadd.f32 0.0, %v814
      %v816 = vpop.f32.mrb[0].mxu0
      %v817 = vpop.f32.mrb[0].mxu0
      %v818 = vadd.f32 0.0, %v817
      %v819 = vpop.f32.mrb[0].mxu0
      %820 = vdwg.mxu0
      %822 = vrot.lane.b32.xlu0 %v695, 96
      %v823 = vpop.permute.xlu0 %822
      %825 = vrot.lane.b32.xlu0 %v696, 96
      %v826 = vpop.permute.xlu0 %825
      %v828 = vsel %vm705, %v823, 0
      %v831 = vsel %vm705, %v826, 0
      %833 = vmatprep.subr.bf16.mxu0 0
      %834 = vmatpush1.bf16.xpose.msra.mxu0 %v831
      %835 = vmatprep.subr.bf16.mxu0 0
      %836 = vmatpush1.bf16.xpose.msra.mxu0 0
      %837 = vmatprep.subr.bf16.mxu0 0
      %838 = vmatpush1.bf16.xpose.msra.mxu0 0
      %839 = vmatprep.subr.bf16.mxu0 0
      %840 = vmatpush1.bf16.xpose.msra.mxu0 0
      %841 = vmatprep.subr.bf16.mxu0 0
      %842 = vmatpush1.bf16.xpose.msra.mxu0 0
      %843 = vmatprep.subr.bf16.mxu0 0
      %844 = vmatpush1.bf16.xpose.msra.mxu0 0
      %845 = vmatprep.subr.bf16.mxu0 0
      %846 = vmatpush1.bf16.xpose.msra.mxu0 0
      %847 = vmatprep.subr.bf16.mxu0 0
      %848 = vmatpush1.bf16.xpose.msra.mxu0 0
      %849 = vmatprep.subr.bf16.mxu0 0
      %850 = vmatpush1.bf16.xpose.msra.mxu0 0
      %851 = vmatprep.subr.bf16.mxu0 0
      %852 = vmatpush1.bf16.xpose.msra.mxu0 0
      %853 = vmatprep.subr.bf16.mxu0 0
      %854 = vmatpush1.bf16.xpose.msra.mxu0 0
      %855 = vmatprep.subr.bf16.mxu0 0
      %856 = vmatpush1.bf16.xpose.msra.mxu0 0
      %857 = vmatprep.subr.bf16.mxu0 0
      %858 = vmatpush1.bf16.xpose.msra.mxu0 0
      %859 = vmatprep.subr.bf16.mxu0 0
      %860 = vmatpush1.bf16.xpose.msra.mxu0 0
      %861 = vmatprep.subr.bf16.mxu0 0
      %862 = vmatpush1.bf16.xpose.msra.mxu0 0
      %863 = vmatprep.subr.bf16.mxu0 0
      %864 = vmatpush1.bf16.xpose.msra.mxu0 0
      %865 = vmatprep.mubr.bf16.mxu0 0
      %866 = vmatmul.mubr.bf16.gmra.mrb[0].mxu0 %v828
      %v867 = vpop.f32.mrb[0].mxu0
      %v868 = vadd.f32 %v703, %v867
      %v869 = vpop.f32.mrb[0].mxu0
      %v870 = vpop.f32.mrb[0].mxu0
      %v871 = vadd.f32 %v703, %v870
      %v872 = vpop.f32.mrb[0].mxu0
      %873 = vdwg.mxu0
      %v874 = vsel %vm753, %v868, -inf
      %875 = vmax.xlane.f32.xlu0 %v874
      %v876 = vpop.xlane.xlu0 %875
      %v877 = vsel %vm753, %v871, -inf
      %878 = vmax.xlane.f32.xlu0 %v877
      %v879 = vpop.xlane.xlu0 %878
      %v880 = vsub.f32 %v868, %v876
      %v881 = vsub.f32 %v871, %v879
      %v882 = vmul.f32 %v880, 1.442695
      %v883 = vpow.pop %v882
      %v884 = vmul.f32 %v881, 1.442695
      %v885 = vpow.pop %v884
      %v886 = vsel %vm753, %v883, 0.0
      %887 = vadd.xlane.f32.xlu0 %v886
      %v888 = vpop.xlane.xlu0 %887
      %v889 = vsel %vm753, %v885, 0.0
      %890 = vadd.xlane.f32.xlu0 %v889
      %v891 = vpop.xlane.xlu0 %890
      %v892 = vrcp.pop %v888
      %v893 = vmul.f32 %v883, %v892
      %v894 = vrcp.pop %v891
      %v895 = vmul.f32 %v885, %v894
      %v896 = vpack.c.bf16 %v895, %v893
      %898 = vrot.lane.b32.xlu0 %v697, 96
      %v899 = vpop.permute.xlu0 %898
      %v902 = vsel %vm753, %v896, 0
      %904 = vmatprep.subr.bf16.mxu0 0
      %905 = vmatpush1.bf16.msra.mxu0 %v899
      %906 = vmatprep.subr.bf16.mxu0 0
      %907 = vmatpush1.bf16.msra.mxu0 0
      %908 = vmatprep.subr.bf16.mxu0 0
      %909 = vmatpush1.bf16.msra.mxu0 0
      %910 = vmatprep.subr.bf16.mxu0 0
      %911 = vmatpush1.bf16.msra.mxu0 0
      %912 = vmatprep.subr.bf16.mxu0 0
      %913 = vmatpush1.bf16.msra.mxu0 0
      %914 = vmatprep.subr.bf16.mxu0 0
      %915 = vmatpush1.bf16.msra.mxu0 0
      %916 = vmatprep.subr.bf16.mxu0 0
      %917 = vmatpush1.bf16.msra.mxu0 0
      %918 = vmatprep.subr.bf16.mxu0 0
      %919 = vmatpush1.bf16.msra.mxu0 0
      %920 = vmatprep.subr.bf16.mxu0 0
      %921 = vmatpush1.bf16.msra.mxu0 0
      %922 = vmatprep.subr.bf16.mxu0 0
      %923 = vmatpush1.bf16.msra.mxu0 0
      %924 = vmatprep.subr.bf16.mxu0 0
      %925 = vmatpush1.bf16.msra.mxu0 0
      %926 = vmatprep.subr.bf16.mxu0 0
      %927 = vmatpush1.bf16.msra.mxu0 0
      %928 = vmatprep.subr.bf16.mxu0 0
      %929 = vmatpush1.bf16.msra.mxu0 0
      %930 = vmatprep.subr.bf16.mxu0 0
      %931 = vmatpush1.bf16.msra.mxu0 0
      %932 = vmatprep.subr.bf16.mxu0 0
      %933 = vmatpush1.bf16.msra.mxu0 0
      %934 = vmatprep.subr.bf16.mxu0 0
      %935 = vmatpush1.bf16.msra.mxu0 0
      %936 = vmatprep.mubr.bf16.mxu0 0
      %937 = vmatmul.mubr.bf16.gmra.mrb[0].mxu0 %v902
      %v938 = vpop.f32.mrb[0].mxu0
      %v939 = vadd.f32 0.0, %v938
      %v940 = vpop.f32.mrb[0].mxu0
      %v941 = vpop.f32.mrb[0].mxu0
      %v942 = vadd.f32 0.0, %v941
      %v943 = vpop.f32.mrb[0].mxu0
      %944 = vdwg.mxu0
      %945 = vrot.lane.b32.xlu0 %v695, 64
      %v946 = vpop.permute.xlu0 %945
      %947 = vrot.lane.b32.xlu0 %v696, 64
      %v948 = vpop.permute.xlu0 %947
      %v950 = vsel %vm705, %v946, 0
      %v953 = vsel %vm705, %v948, 0
      %955 = vmatprep.subr.bf16.mxu0 0
      %956 = vmatpush1.bf16.xpose.msra.mxu0 %v953
      %957 = vmatprep.subr.bf16.mxu0 0
      %958 = vmatpush1.bf16.xpose.msra.mxu0 0
      %959 = vmatprep.subr.bf16.mxu0 0
      %960 = vmatpush1.bf16.xpose.msra.mxu0 0
      %961 = vmatprep.subr.bf16.mxu0 0
      %962 = vmatpush1.bf16.xpose.msra.mxu0 0
      %963 = vmatprep.subr.bf16.mxu0 0
      %964 = vmatpush1.bf16.xpose.msra.mxu0 0
      %965 = vmatprep.subr.bf16.mxu0 0
      %966 = vmatpush1.bf16.xpose.msra.mxu0 0
      %967 = vmatprep.subr.bf16.mxu0 0
      %968 = vmatpush1.bf16.xpose.msra.mxu0 0
      %969 = vmatprep.subr.bf16.mxu0 0
      %970 = vmatpush1.bf16.xpose.msra.mxu0 0
      %971 = vmatprep.subr.bf16.mxu0 0
      %972 = vmatpush1.bf16.xpose.msra.mxu0 0
      %973 = vmatprep.subr.bf16.mxu0 0
      %974 = vmatpush1.bf16.xpose.msra.mxu0 0
      %975 = vmatprep.subr.bf16.mxu0 0
      %976 = vmatpush1.bf16.xpose.msra.mxu0 0
      %977 = vmatprep.subr.bf16.mxu0 0
      %978 = vmatpush1.bf16.xpose.msra.mxu0 0
      %979 = vmatprep.subr.bf16.mxu0 0
      %980 = vmatpush1.bf16.xpose.msra.mxu0 0
      %981 = vmatprep.subr.bf16.mxu0 0
      %982 = vmatpush1.bf16.xpose.msra.mxu0 0
      %983 = vmatprep.subr.bf16.mxu0 0
      %984 = vmatpush1.bf16.xpose.msra.mxu0 0
      %985 = vmatprep.subr.bf16.mxu0 0
      %986 = vmatpush1.bf16.xpose.msra.mxu0 0
      %987 = vmatprep.mubr.bf16.mxu0 0
      %988 = vmatmul.mubr.bf16.gmra.mrb[0].mxu0 %v950
      %v989 = vpop.f32.mrb[0].mxu0
      %v990 = vadd.f32 %v703, %v989
      %v991 = vpop.f32.mrb[0].mxu0
      %v992 = vpop.f32.mrb[0].mxu0
      %v993 = vadd.f32 %v703, %v992
      %v994 = vpop.f32.mrb[0].mxu0
      %995 = vdwg.mxu0
      %v996 = vsel %vm753, %v990, -inf
      %997 = vmax.xlane.f32.xlu0 %v996
      %v998 = vpop.xlane.xlu0 %997
      %v999 = vsel %vm753, %v993, -inf
      %1000 = vmax.xlane.f32.xlu0 %v999
      %v1001 = vpop.xlane.xlu0 %1000
      %v1002 = vsub.f32 %v990, %v998
      %v1003 = vsub.f32 %v993, %v1001
      %v1004 = vmul.f32 %v1002, 1.442695
      %v1005 = vpow.pop %v1004
      %v1006 = vmul.f32 %v1003, 1.442695
      %v1007 = vpow.pop %v1006
      %v1008 = vsel %vm753, %v1005, 0.0
      %1009 = vadd.xlane.f32.xlu0 %v1008
      %v1010 = vpop.xlane.xlu0 %1009
      %v1011 = vsel %vm753, %v1007, 0.0
      %1012 = vadd.xlane.f32.xlu0 %v1011
      %v1013 = vpop.xlane.xlu0 %1012
      %v1014 = vrcp.pop %v1010
      %v1015 = vmul.f32 %v1005, %v1014
      %v1016 = vrcp.pop %v1013
      %v1017 = vmul.f32 %v1007, %v1016
      %v1018 = vpack.c.bf16 %v1017, %v1015
      %1019 = vrot.lane.b32.xlu0 %v697, 64
      %v1020 = vpop.permute.xlu0 %1019
      %v1023 = vsel %vm753, %v1018, 0
      %1025 = vmatprep.subr.bf16.mxu0 0
      %1026 = vmatpush1.bf16.msra.mxu0 %v1020
      %1027 = vmatprep.subr.bf16.mxu0 0
      %1028 = vmatpush1.bf16.msra.mxu0 0
      %1029 = vmatprep.subr.bf16.mxu0 0
      %1030 = vmatpush1.bf16.msra.mxu0 0
      %1031 = vmatprep.subr.bf16.mxu0 0
      %1032 = vmatpush1.bf16.msra.mxu0 0
      %1033 = vmatprep.subr.bf16.mxu0 0
      %1034 = vmatpush1.bf16.msra.mxu0 0
      %1035 = vmatprep.subr.bf16.mxu0 0
      %1036 = vmatpush1.bf16.msra.mxu0 0
      %1037 = vmatprep.subr.bf16.mxu0 0
      %1038 = vmatpush1.bf16.msra.mxu0 0
      %1039 = vmatprep.subr.bf16.mxu0 0
      %1040 = vmatpush1.bf16.msra.mxu0 0
      %1041 = vmatprep.subr.bf16.mxu0 0
      %1042 = vmatpush1.bf16.msra.mxu0 0
      %1043 = vmatprep.subr.bf16.mxu0 0
      %1044 = vmatpush1.bf16.msra.mxu0 0
      %1045 = vmatprep.subr.bf16.mxu0 0
      %1046 = vmatpush1.bf16.msra.mxu0 0
      %1047 = vmatprep.subr.bf16.mxu0 0
      %1048 = vmatpush1.bf16.msra.mxu0 0
      %1049 = vmatprep.subr.bf16.mxu0 0
      %1050 = vmatpush1.bf16.msra.mxu0 0
      %1051 = vmatprep.subr.bf16.mxu0 0
      %1052 = vmatpush1.bf16.msra.mxu0 0
      %1053 = vmatprep.subr.bf16.mxu0 0
      %1054 = vmatpush1.bf16.msra.mxu0 0
      %1055 = vmatprep.subr.bf16.mxu0 0
      %1056 = vmatpush1.bf16.msra.mxu0 0
      %1057 = vmatprep.mubr.bf16.mxu0 0
      %1058 = vmatmul.mubr.bf16.gmra.mrb[0].mxu0 %v1023
      %v1059 = vpop.f32.mrb[0].mxu0
      %v1060 = vadd.f32 0.0, %v1059
      %v1061 = vpop.f32.mrb[0].mxu0
      %v1062 = vpop.f32.mrb[0].mxu0
      %v1063 = vadd.f32 0.0, %v1062
      %v1064 = vpop.f32.mrb[0].mxu0
      %1065 = vdwg.mxu0
      %1066 = vrot.lane.b32.xlu0 %v695, 32
      %v1067 = vpop.permute.xlu0 %1066
      %1068 = vrot.lane.b32.xlu0 %v696, 32
      %v1069 = vpop.permute.xlu0 %1068
      %v1071 = vsel %vm705, %v1067, 0
      %v1074 = vsel %vm705, %v1069, 0
      %1076 = vmatprep.subr.bf16.mxu0 0
      %1077 = vmatpush1.bf16.xpose.msra.mxu0 %v1074
      %1078 = vmatprep.subr.bf16.mxu0 0
      %1079 = vmatpush1.bf16.xpose.msra.mxu0 0
      %1080 = vmatprep.subr.bf16.mxu0 0
      %1081 = vmatpush1.bf16.xpose.msra.mxu0 0
      %1082 = vmatprep.subr.bf16.mxu0 0
      %1083 = vmatpush1.bf16.xpose.msra.mxu0 0
      %1084 = vmatprep.subr.bf16.mxu0 0
      %1085 = vmatpush1.bf16.xpose.msra.mxu0 0
      %1086 = vmatprep.subr.bf16.mxu0 0
      %1087 = vmatpush1.bf16.xpose.msra.mxu0 0
      %1088 = vmatprep.subr.bf16.mxu0 0
      %1089 = vmatpush1.bf16.xpose.msra.mxu0 0
      %1090 = vmatprep.subr.bf16.mxu0 0
      %1091 = vmatpush1.bf16.xpose.msra.mxu0 0
      %1092 = vmatprep.subr.bf16.mxu0 0
      %1093 = vmatpush1.bf16.xpose.msra.mxu0 0
      %1094 = vmatprep.subr.bf16.mxu0 0
      %1095 = vmatpush1.bf16.xpose.msra.mxu0 0
      %1096 = vmatprep.subr.bf16.mxu0 0
      %1097 = vmatpush1.bf16.xpose.msra.mxu0 0
      %1098 = vmatprep.subr.bf16.mxu0 0
      %1099 = vmatpush1.bf16.xpose.msra.mxu0 0
      %1100 = vmatprep.subr.bf16.mxu0 0
      %1101 = vmatpush1.bf16.xpose.msra.mxu0 0
      %1102 = vmatprep.subr.bf16.mxu0 0
      %1103 = vmatpush1.bf16.xpose.msra.mxu0 0
      %1104 = vmatprep.subr.bf16.mxu0 0
      %1105 = vmatpush1.bf16.xpose.msra.mxu0 0
      %1106 = vmatprep.subr.bf16.mxu0 0
      %1107 = vmatpush1.bf16.xpose.msra.mxu0 0
      %1108 = vmatprep.mubr.bf16.mxu0 0
      %1109 = vmatmul.mubr.bf16.gmra.mrb[0].mxu0 %v1071
      %v1110 = vpop.f32.mrb[0].mxu0
      %v1111 = vadd.f32 %v703, %v1110
      %v1112 = vpop.f32.mrb[0].mxu0
      %v1113 = vpop.f32.mrb[0].mxu0
      %v1114 = vadd.f32 %v703, %v1113
      %v1115 = vpop.f32.mrb[0].mxu0
      %1116 = vdwg.mxu0
      %v1117 = vsel %vm753, %v1111, -inf
      %1118 = vmax.xlane.f32.xlu0 %v1117
      %v1119 = vpop.xlane.xlu0 %1118
      %v1120 = vsel %vm753, %v1114, -inf
      %1121 = vmax.xlane.f32.xlu0 %v1120
      %v1122 = vpop.xlane.xlu0 %1121
      %v1123 = vsub.f32 %v1111, %v1119
      %v1124 = vsub.f32 %v1114, %v1122
      %v1125 = vmul.f32 %v1123, 1.442695
      %v1126 = vpow.pop %v1125
      %v1127 = vmul.f32 %v1124, 1.442695
      %v1128 = vpow.pop %v1127
      %v1129 = vsel %vm753, %v1126, 0.0
      %1130 = vadd.xlane.f32.xlu0 %v1129
      %v1131 = vpop.xlane.xlu0 %1130
      %v1132 = vsel %vm753, %v1128, 0.0
      %1133 = vadd.xlane.f32.xlu0 %v1132
      %v1134 = vpop.xlane.xlu0 %1133
      %v1135 = vrcp.pop %v1131
      %v1136 = vmul.f32 %v1126, %v1135
      %v1137 = vrcp.pop %v1134
      %v1138 = vmul.f32 %v1128, %v1137
      %v1139 = vpack.c.bf16 %v1138, %v1136
      %1140 = vrot.lane.b32.xlu0 %v697, 32
      %v1141 = vpop.permute.xlu0 %1140
      %v1144 = vsel %vm753, %v1139, 0
      %1146 = vmatprep.subr.bf16.mxu0 0
      %1147 = vmatpush1.bf16.msra.mxu0 %v1141
      %1148 = vmatprep.subr.bf16.mxu0 0
      %1149 = vmatpush1.bf16.msra.mxu0 0
      %1150 = vmatprep.subr.bf16.mxu0 0
      %1151 = vmatpush1.bf16.msra.mxu0 0
      %1152 = vmatprep.subr.bf16.mxu0 0
      %1153 = vmatpush1.bf16.msra.mxu0 0
      %1154 = vmatprep.subr.bf16.mxu0 0
      %1155 = vmatpush1.bf16.msra.mxu0 0
      %1156 = vmatprep.subr.bf16.mxu0 0
      %1157 = vmatpush1.bf16.msra.mxu0 0
      %1158 = vmatprep.subr.bf16.mxu0 0
      %1159 = vmatpush1.bf16.msra.mxu0 0
      %1160 = vmatprep.subr.bf16.mxu0 0
      %1161 = vmatpush1.bf16.msra.mxu0 0
      %1162 = vmatprep.subr.bf16.mxu0 0
      %1163 = vmatpush1.bf16.msra.mxu0 0
      %1164 = vmatprep.subr.bf16.mxu0 0
      %1165 = vmatpush1.bf16.msra.mxu0 0
      %1166 = vmatprep.subr.bf16.mxu0 0
      %1167 = vmatpush1.bf16.msra.mxu0 0
      %1168 = vmatprep.subr.bf16.mxu0 0
      %1169 = vmatpush1.bf16.msra.mxu0 0
      %1170 = vmatprep.subr.bf16.mxu0 0
      %1171 = vmatpush1.bf16.msra.mxu0 0
      %1172 = vmatprep.subr.bf16.mxu0 0
      %1173 = vmatpush1.bf16.msra.mxu0 0
      %1174 = vmatprep.subr.bf16.mxu0 0
      %1175 = vmatpush1.bf16.msra.mxu0 0
      %1176 = vmatprep.subr.bf16.mxu0 0
      %1177 = vmatpush1.bf16.msra.mxu0 0
      %1178 = vmatprep.mubr.bf16.mxu0 0
      %1179 = vmatmul.mubr.bf16.gmra.mrb[0].mxu0 %v1144
      %v1180 = vpop.f32.mrb[0].mxu0
      %v1181 = vadd.f32 0.0, %v1180
      %v1182 = vpop.f32.mrb[0].mxu0
      %v1183 = vpop.f32.mrb[0].mxu0
      %v1184 = vadd.f32 0.0, %v1183
      %v1185 = vpop.f32.mrb[0].mxu0
      %1186 = vdwg.mxu0
      %1189 = vrot.lane.b32.xlu0 %v939, 32
      %v1190 = vpop.permute.xlu0 %1189
      %1191 = vrot.lane.b32.xlu0 %v942, 32
      %v1192 = vpop.permute.xlu0 %1191
      %1197 = vrot.lane.b32.xlu0 %v1060, 64
      %v1198 = vpop.permute.xlu0 %1197
      %1199 = vrot.lane.b32.xlu0 %v1063, 64
      %v1200 = vpop.permute.xlu0 %1199
      %1205 = vrot.lane.b32.xlu0 %v1181, 96
      %v1206 = vpop.permute.xlu0 %1205
      %1207 = vrot.lane.b32.xlu0 %v1184, 96
      %v1208 = vpop.permute.xlu0 %1207
      %v1211 = vsel %vm705, %v815, %v1190
      %v1212 = vsel %vm705, %v818, %v1192
      %vm1213 = vcmask 523264
      %v1214 = vsel %vm1213, %v1211, %v1198
      %v1215 = vsel %vm1213, %v1212, %v1200
      %vm1216 = vcmask 785408
      %v1217 = vsel %vm1216, %v1214, %v1206
      %v1218 = vsel %vm1216, %v1215, %v1208
      %v1219 = vpack.c.bf16 %v1218, %v1217
      %v1220 = vld [vmem:[%s4] sm:$0xf]
      %v1221 = vld [vmem:[%s4 + $0x4] sm:$0xf]
      %v1222 = vld [vmem:[%s4 + $0x8] sm:$0xf]
      %v1223 = vld [vmem:[%s4 + $0xc] sm:$0xf]
      %v1224 = vld [vmem:[%s4 + $0x10] sm:$0xf]
      %v1225 = vld [vmem:[%s4 + $0x14] sm:$0xf]
      %v1226 = vld [vmem:[%s4 + $0x18] sm:$0xf]
      %v1227 = vld [vmem:[%s4 + $0x1c] sm:$0xf]
      %v1228 = vld [vmem:[%s4 + $0x20] sm:$0xf]
      %v1229 = vld [vmem:[%s4 + $0x24] sm:$0xf]
      %v1230 = vld [vmem:[%s4 + $0x28] sm:$0xf]
      %v1231 = vld [vmem:[%s4 + $0x2c] sm:$0xf]
      %v1232 = vld [vmem:[%s4 + $0x30] sm:$0xf]
      %v1233 = vld [vmem:[%s4 + $0x34] sm:$0xf]
      %v1234 = vld [vmem:[%s4 + $0x38] sm:$0xf]
      %v1235 = vld [vmem:[%s4 + $0x3c] sm:$0xf]
      %v1236 = vld [vmem:[%s5] sm:$0x1]
      %v1238 = vlaneseq
      %v1239 = vshrl.u32 %v1238, 7
      %v1240 = vsub.s32 0, %v1239
      %v1241 = vrot.slane %v1236, %v1240
      %v1259 = vunpack.c.l.b16 %v1220
      %v1260 = vunpack.c.l.b16 %v1221
      %v1261 = vunpack.c.l.b16 %v1222
      %v1262 = vunpack.c.l.b16 %v1223
      %v1263 = vunpack.c.l.b16 %v1224
      %v1264 = vunpack.c.l.b16 %v1225
      %v1265 = vunpack.c.l.b16 %v1226
      %v1266 = vunpack.c.l.b16 %v1227
      %v1267 = vunpack.c.l.b16 %v1228
      %v1268 = vunpack.c.l.b16 %v1229
      %v1269 = vunpack.c.l.b16 %v1230
      %v1270 = vunpack.c.l.b16 %v1231
      %v1271 = vunpack.c.l.b16 %v1232
      %v1272 = vunpack.c.l.b16 %v1233
      %v1273 = vunpack.c.l.b16 %v1234
      %v1274 = vunpack.c.l.b16 %v1235
      %v1275 = vpack.c.b16 %v1260, %v1259
      %v1276 = vpack.c.b16 %v1262, %v1261
      %v1277 = vpack.c.b16 %v1264, %v1263
      %v1278 = vpack.c.b16 %v1266, %v1265
      %v1279 = vpack.c.b16 %v1268, %v1267
      %v1280 = vpack.c.b16 %v1270, %v1269
      %v1281 = vpack.c.b16 %v1272, %v1271
      %v1282 = vpack.c.b16 %v1274, %v1273
      %1291 = vmatprep.subr.bf16.mxu0 0
      %1292 = vmatpush1.bf16.msra.mxu0 %v1275
      %1293 = vmatprep.subr.bf16.mxu0 0
      %1294 = vmatpush1.bf16.msra.mxu0 %v1276
      %1295 = vmatprep.subr.bf16.mxu0 0
      %1296 = vmatpush1.bf16.msra.mxu0 %v1277
      %1297 = vmatprep.subr.bf16.mxu0 0
      %1298 = vmatpush1.bf16.msra.mxu0 %v1278
      %1299 = vmatprep.subr.bf16.mxu0 0
      %1300 = vmatpush1.bf16.msra.mxu0 %v1279
      %1301 = vmatprep.subr.bf16.mxu0 0
      %1302 = vmatpush1.bf16.msra.mxu0 %v1280
      %1303 = vmatprep.subr.bf16.mxu0 0
      %1304 = vmatpush1.bf16.msra.mxu0 %v1281
      %1305 = vmatprep.subr.bf16.mxu0 0
      %1306 = vmatpush1.bf16.msra.mxu0 %v1282
      %1307 = vmatprep.subr.bf16.mxu0 0
      %1308 = vmatpush1.bf16.msra.mxu0 0
      %1309 = vmatprep.subr.bf16.mxu0 0
      %1310 = vmatpush1.bf16.msra.mxu0 0
      %1311 = vmatprep.subr.bf16.mxu0 0
      %1312 = vmatpush1.bf16.msra.mxu0 0
      %1313 = vmatprep.subr.bf16.mxu0 0
      %1314 = vmatpush1.bf16.msra.mxu0 0
      %1315 = vmatprep.subr.bf16.mxu0 0
      %1316 = vmatpush1.bf16.msra.mxu0 0
      %1317 = vmatprep.subr.bf16.mxu0 0
      %1318 = vmatpush1.bf16.msra.mxu0 0
      %1319 = vmatprep.subr.bf16.mxu0 0
      %1320 = vmatpush1.bf16.msra.mxu0 0
      %1321 = vmatprep.subr.bf16.mxu0 0
      %1322 = vmatpush1.bf16.msra.mxu0 0
      %1323 = vmatprep.mubr.bf16.mxu0 0
      %1324 = vmatmul.mubr.bf16.gmra.mrb[0].mxu0 %v1219
      %v1325 = vpop.f32.mrb[0].mxu0
      %v1326 = vadd.f32 %v1241, %v1325
      %v1327 = vpop.f32.mrb[0].mxu0
      %v1328 = vpop.f32.mrb[0].mxu0
      %v1329 = vadd.f32 %v1241, %v1328
      %v1330 = vpop.f32.mrb[0].mxu0
      %1331 = vdwg.mxu0
      %v1332 = vld [vmem:[%s6] sm:$0x1]
      %v1333 = vld [vmem:[%s7] sm:$0x1]
      %v1334 = vadd.f32 %v431, %v1326
      %v1335 = vadd.f32 %v432, %v1329
      %1336 = vadd.xlane.f32.xlu0 %v1334
      %v1337 = vpop.xlane.xlu0 %1336
      %1338 = vadd.xlane.f32.xlu0 %v1335
      %v1339 = vpop.xlane.xlu0 %1338
      %v1340 = vrcp.pop 128.0
      %v1341 = vmul.f32 %v1337, %v1340
      %v1342 = vmul.f32 %v1339, %v1340
      %v1343 = vsub.f32 %v1334, %v1341
      %v1344 = vsub.f32 %v1335, %v1342
      %v1345 = vmul.f32 %v1343, %v1343
      %v1346 = vmul.f32 %v1344, %v1344
      %1347 = vadd.xlane.f32.xlu0 %v1345
      %v1348 = vpop.xlane.xlu0 %1347
      %1349 = vadd.xlane.f32.xlu0 %v1346
      %v1350 = vpop.xlane.xlu0 %1349
      %v1351 = vmul.f32 %v1348, %v1340
      %v1352 = vmul.f32 %v1350, %v1340
      %v1353 = vadd.f32 %v1351, 1e-12
      %v1354 = vadd.f32 %v1352, 1e-12
      %v1355 = vrsqrt.pop %v1353
      %v1356 = vrsqrt.pop %v1354
      %v1357 = vmul.f32 %v1343, %v1355
      %v1358 = vmul.f32 %v1344, %v1356
      %v1360 = vlaneseq
      %v1361 = vshrl.u32 %v1360, 7
      %v1362 = vsub.s32 0, %v1361
      %v1363 = vrot.slane %v1332, %v1362
      %v1365 = vmul.f32 %v1357, %v1363
      %v1366 = vmul.f32 %v1358, %v1363
      %v1368 = vlaneseq
      %v1369 = vshrl.u32 %v1368, 7
      %v1370 = vsub.s32 0, %v1369
      %v1371 = vrot.slane %v1333, %v1370
      %v1373 = vadd.f32 %v1365, %v1371
      %v1374 = vadd.f32 %v1366, %v1371
      %v1375 = vpack.c.bf16 %v1374, %v1373
      %v1376 = vld [vmem:[%s8] sm:$0xff]
      %v1377 = vld [vmem:[%s8 + $0x8] sm:$0xff]
      %v1378 = vld [vmem:[%s8 + $0x10] sm:$0xff]
      %v1379 = vld [vmem:[%s8 + $0x18] sm:$0xff]
      %v1380 = vld [vmem:[%s8 + $0x20] sm:$0xff]
      %v1381 = vld [vmem:[%s8 + $0x28] sm:$0xff]
      %v1382 = vld [vmem:[%s8 + $0x30] sm:$0xff]
      %v1383 = vld [vmem:[%s8 + $0x38] sm:$0xff]
      %v1384 = vld [vmem:[%s8 + $0x40] sm:$0xff]
      %v1385 = vld [vmem:[%s8 + $0x48] sm:$0xff]
      %v1386 = vld [vmem:[%s8 + $0x50] sm:$0xff]
      %v1387 = vld [vmem:[%s8 + $0x58] sm:$0xff]
      %v1388 = vld [vmem:[%s8 + $0x60] sm:$0xff]
      %v1389 = vld [vmem:[%s8 + $0x68] sm:$0xff]
      %v1390 = vld [vmem:[%s8 + $0x70] sm:$0xff]
      %v1391 = vld [vmem:[%s8 + $0x78] sm:$0xff]
      %v1392 = vld [vmem:[%s9] sm:$0x3]
      %v1394 = vlaneseq
      %v1395 = vshrl.u32 %v1394, 7
      %v1396 = vsub.s32 0, %v1395
      %v1397 = vrot.slane %v1392, %v1396
      %v1398 = vlaneseq
      %v1399 = vshrl.u32 %v1398, 7
      %v1400 = vsub.s32 1, %v1399
      %v1401 = vrot.slane %v1392, %v1400
      %v1420 = vunpack.c.l.b16 %v1376
      %v1421 = vunpack.c.h.b16 %v1376
      %v1422 = vunpack.c.l.b16 %v1377
      %v1423 = vunpack.c.h.b16 %v1377
      %v1424 = vunpack.c.l.b16 %v1378
      %v1425 = vunpack.c.h.b16 %v1378
      %v1426 = vunpack.c.l.b16 %v1379
      %v1427 = vunpack.c.h.b16 %v1379
      %v1428 = vunpack.c.l.b16 %v1380
      %v1429 = vunpack.c.h.b16 %v1380
      %v1430 = vunpack.c.l.b16 %v1381
      %v1431 = vunpack.c.h.b16 %v1381
      %v1432 = vunpack.c.l.b16 %v1382
      %v1433 = vunpack.c.h.b16 %v1382
      %v1434 = vunpack.c.l.b16 %v1383
      %v1435 = vunpack.c.h.b16 %v1383
      %v1436 = vunpack.c.l.b16 %v1384
      %v1437 = vunpack.c.h.b16 %v1384
      %v1438 = vunpack.c.l.b16 %v1385
      %v1439 = vunpack.c.h.b16 %v1385
      %v1440 = vunpack.c.l.b16 %v1386
      %v1441 = vunpack.c.h.b16 %v1386
      %v1442 = vunpack.c.l.b16 %v1387
      %v1443 = vunpack.c.h.b16 %v1387
      %v1444 = vunpack.c.l.b16 %v1388
      %v1445 = vunpack.c.h.b16 %v1388
      %v1446 = vunpack.c.l.b16 %v1389
      %v1447 = vunpack.c.h.b16 %v1389
      %v1448 = vunpack.c.l.b16 %v1390
      %v1449 = vunpack.c.h.b16 %v1390
      %v1450 = vunpack.c.l.b16 %v1391
      %v1451 = vunpack.c.h.b16 %v1391
      %v1452 = vpack.c.b16 %v1422, %v1420
      %v1453 = vpack.c.b16 %v1423, %v1421
      %v1454 = vpack.c.b16 %v1426, %v1424
      %v1455 = vpack.c.b16 %v1427, %v1425
      %v1456 = vpack.c.b16 %v1430, %v1428
      %v1457 = vpack.c.b16 %v1431, %v1429
      %v1458 = vpack.c.b16 %v1434, %v1432
      %v1459 = vpack.c.b16 %v1435, %v1433
      %v1460 = vpack.c.b16 %v1438, %v1436
      %v1461 = vpack.c.b16 %v1439, %v1437
      %v1462 = vpack.c.b16 %v1442, %v1440
      %v1463 = vpack.c.b16 %v1443, %v1441
      %v1464 = vpack.c.b16 %v1446, %v1444
      %v1465 = vpack.c.b16 %v1447, %v1445
      %v1466 = vpack.c.b16 %v1450, %v1448
      %v1467 = vpack.c.b16 %v1451, %v1449
      %1484 = vmatprep.subr.bf16.mxu0 %v1453
      %1485 = vmatpush1.bf16.msra.mxu0 %v1452
      %1486 = vmatprep.subr.bf16.mxu0 %v1455
      %1487 = vmatpush1.bf16.msra.mxu0 %v1454
      %1488 = vmatprep.subr.bf16.mxu0 %v1457
      %1489 = vmatpush1.bf16.msra.mxu0 %v1456
      %1490 = vmatprep.subr.bf16.mxu0 %v1459
      %1491 = vmatpush1.bf16.msra.mxu0 %v1458
      %1492 = vmatprep.subr.bf16.mxu0 %v1461
      %1493 = vmatpush1.bf16.msra.mxu0 %v1460
      %1494 = vmatprep.subr.bf16.mxu0 %v1463
      %1495 = vmatpush1.bf16.msra.mxu0 %v1462
      %1496 = vmatprep.subr.bf16.mxu0 %v1465
      %1497 = vmatpush1.bf16.msra.mxu0 %v1464
      %1498 = vmatprep.subr.bf16.mxu0 %v1467
      %1499 = vmatpush1.bf16.msra.mxu0 %v1466
      %1500 = vmatprep.subr.bf16.mxu0 0
      %1501 = vmatpush1.bf16.msra.mxu0 0
      %1502 = vmatprep.subr.bf16.mxu0 0
      %1503 = vmatpush1.bf16.msra.mxu0 0
      %1504 = vmatprep.subr.bf16.mxu0 0
      %1505 = vmatpush1.bf16.msra.mxu0 0
      %1506 = vmatprep.subr.bf16.mxu0 0
      %1507 = vmatpush1.bf16.msra.mxu0 0
      %1508 = vmatprep.subr.bf16.mxu0 0
      %1509 = vmatpush1.bf16.msra.mxu0 0
      %1510 = vmatprep.subr.bf16.mxu0 0
      %1511 = vmatpush1.bf16.msra.mxu0 0
      %1512 = vmatprep.subr.bf16.mxu0 0
      %1513 = vmatpush1.bf16.msra.mxu0 0
      %1514 = vmatprep.subr.bf16.mxu0 0
      %1515 = vmatpush1.bf16.msra.mxu0 0
      %1516 = vmatprep.mubr.bf16.mxu0 0
      %1517 = vmatmul.mubr.bf16.gmra.mrb[0].mxu0 %v1375
      %v1518 = vpop.f32.mrb[0].mxu0
      %v1519 = vadd.f32 %v1397, %v1518
      %v1520 = vpop.f32.mrb[0].mxu0
      %v1521 = vadd.f32 %v1401, %v1520
      %v1522 = vpop.f32.mrb[0].mxu0
      %v1523 = vadd.f32 %v1397, %v1522
      %v1524 = vpop.f32.mrb[0].mxu0
      %v1525 = vadd.f32 %v1401, %v1524
      %1526 = vdwg.mxu0
      %v1527 = vmax.f32 %v1519, 0.0
      %v1528 = vmax.f32 %v1521, 0.0
      %v1529 = vmax.f32 %v1523, 0.0
      %v1530 = vmax.f32 %v1525, 0.0
      %v1531 = vpack.c.bf16 %v1529, %v1527
      %v1532 = vpack.c.bf16 %v1530, %v1528
      %v1533 = vld [vmem:[%s10] sm:$0xf]
      %v1534 = vld [vmem:[%s10 + $0x4] sm:$0xf]
      %v1535 = vld [vmem:[%s10 + $0x8] sm:$0xf]
      %v1536 = vld [vmem:[%s10 + $0xc] sm:$0xf]
      %v1537 = vld [vmem:[%s10 + $0x10] sm:$0xf]
      %v1538 = vld [vmem:[%s10 + $0x14] sm:$0xf]
      %v1539 = vld [vmem:[%s10 + $0x18] sm:$0xf]
      %v1540 = vld [vmem:[%s10 + $0x1c] sm:$0xf]
      %v1541 = vld [vmem:[%s10 + $0x20] sm:$0xf]
      %v1542 = vld [vmem:[%s10 + $0x24] sm:$0xf]
      %v1543 = vld [vmem:[%s10 + $0x28] sm:$0xf]
      %v1544 = vld [vmem:[%s10 + $0x2c] sm:$0xf]
      %v1545 = vld [vmem:[%s10 + $0x30] sm:$0xf]
      %v1546 = vld [vmem:[%s10 + $0x34] sm:$0xf]
      %v1547 = vld [vmem:[%s10 + $0x38] sm:$0xf]
      %v1548 = vld [vmem:[%s10 + $0x3c] sm:$0xf]
      %v1549 = vld [vmem:[%s10 + $0x40] sm:$0xf]
      %v1550 = vld [vmem:[%s10 + $0x44] sm:$0xf]
      %v1551 = vld [vmem:[%s10 + $0x48] sm:$0xf]
      %v1552 = vld [vmem:[%s10 + $0x4c] sm:$0xf]
      %v1553 = vld [vmem:[%s10 + $0x50] sm:$0xf]
      %v1554 = vld [vmem:[%s10 + $0x54] sm:$0xf]
      %v1555 = vld [vmem:[%s10 + $0x58] sm:$0xf]
      %v1556 = vld [vmem:[%s10 + $0x5c] sm:$0xf]
      %v1557 = vld [vmem:[%s10 + $0x60] sm:$0xf]
      %v1558 = vld [vmem:[%s10 + $0x64] sm:$0xf]
      %v1559 = vld [vmem:[%s10 + $0x68] sm:$0xf]
      %v1560 = vld [vmem:[%s10 + $0x6c] sm:$0xf]
      %v1561 = vld [vmem:[%s10 + $0x70] sm:$0xf]
      %v1562 = vld [vmem:[%s10 + $0x74] sm:$0xf]
      %v1563 = vld [vmem:[%s10 + $0x78] sm:$0xf]
      %v1564 = vld [vmem:[%s10 + $0x7c] sm:$0xf]
      %v1565 = vld [vmem:[%s11] sm:$0x1]
      %v1567 = vlaneseq
      %v1568 = vshrl.u32 %v1567, 7
      %v1569 = vsub.s32 0, %v1568
      %v1570 = vrot.slane %v1565, %v1569
      %v1604 = vunpack.c.l.b16 %v1533
      %v1605 = vunpack.c.l.b16 %v1534
      %v1606 = vunpack.c.l.b16 %v1535
      %v1607 = vunpack.c.l.b16 %v1536
      %v1608 = vunpack.c.l.b16 %v1537
      %v1609 = vunpack.c.l.b16 %v1538
      %v1610 = vunpack.c.l.b16 %v1539
      %v1611 = vunpack.c.l.b16 %v1540
      %v1612 = vunpack.c.l.b16 %v1541
      %v1613 = vunpack.c.l.b16 %v1542
      %v1614 = vunpack.c.l.b16 %v1543
      %v1615 = vunpack.c.l.b16 %v1544
      %v1616 = vunpack.c.l.b16 %v1545
      %v1617 = vunpack.c.l.b16 %v1546
      %v1618 = vunpack.c.l.b16 %v1547
      %v1619 = vunpack.c.l.b16 %v1548
      %v1620 = vunpack.c.l.b16 %v1549
      %v1621 = vunpack.c.l.b16 %v1550
      %v1622 = vunpack.c.l.b16 %v1551
      %v1623 = vunpack.c.l.b16 %v1552
      %v1624 = vunpack.c.l.b16 %v1553
      %v1625 = vunpack.c.l.b16 %v1554
      %v1626 = vunpack.c.l.b16 %v1555
      %v1627 = vunpack.c.l.b16 %v1556
      %v1628 = vunpack.c.l.b16 %v1557
      %v1629 = vunpack.c.l.b16 %v1558
      %v1630 = vunpack.c.l.b16 %v1559
      %v1631 = vunpack.c.l.b16 %v1560
      %v1632 = vunpack.c.l.b16 %v1561
      %v1633 = vunpack.c.l.b16 %v1562
      %v1634 = vunpack.c.l.b16 %v1563
      %v1635 = vunpack.c.l.b16 %v1564
      %v1636 = vpack.c.b16 %v1605, %v1604
      %v1637 = vpack.c.b16 %v1607, %v1606
      %v1638 = vpack.c.b16 %v1609, %v1608
      %v1639 = vpack.c.b16 %v1611, %v1610
      %v1640 = vpack.c.b16 %v1613, %v1612
      %v1641 = vpack.c.b16 %v1615, %v1614
      %v1642 = vpack.c.b16 %v1617, %v1616
      %v1643 = vpack.c.b16 %v1619, %v1618
      %v1644 = vpack.c.b16 %v1621, %v1620
      %v1645 = vpack.c.b16 %v1623, %v1622
      %v1646 = vpack.c.b16 %v1625, %v1624
      %v1647 = vpack.c.b16 %v1627, %v1626
      %v1648 = vpack.c.b16 %v1629, %v1628
      %v1649 = vpack.c.b16 %v1631, %v1630
      %v1650 = vpack.c.b16 %v1633, %v1632
      %v1651 = vpack.c.b16 %v1635, %v1634
      %1668 = vmatprep.subr.bf16.mxu0 0
      %1669 = vmatpush1.bf16.msra.mxu0 %v1636
      %1670 = vmatprep.subr.bf16.mxu0 0
      %1671 = vmatpush1.bf16.msra.mxu0 %v1637
      %1672 = vmatprep.subr.bf16.mxu0 0
      %1673 = vmatpush1.bf16.msra.mxu0 %v1638
      %1674 = vmatprep.subr.bf16.mxu0 0
      %1675 = vmatpush1.bf16.msra.mxu0 %v1639
      %1676 = vmatprep.subr.bf16.mxu0 0
      %1677 = vmatpush1.bf16.msra.mxu0 %v1640
      %1678 = vmatprep.subr.bf16.mxu0 0
      %1679 = vmatpush1.bf16.msra.mxu0 %v1641
      %1680 = vmatprep.subr.bf16.mxu0 0
      %1681 = vmatpush1.bf16.msra.mxu0 %v1642
      %1682 = vmatprep.subr.bf16.mxu0 0
      %1683 = vmatpush1.bf16.msra.mxu0 %v1643
      %1684 = vmatprep.subr.bf16.mxu0 0
      %1685 = vmatpush1.bf16.msra.mxu0 %v1644
      %1686 = vmatprep.subr.bf16.mxu0 0
      %1687 = vmatpush1.bf16.msra.mxu0 %v1645
      %1688 = vmatprep.subr.bf16.mxu0 0
      %1689 = vmatpush1.bf16.msra.mxu0 %v1646
      %1690 = vmatprep.subr.bf16.mxu0 0
      %1691 = vmatpush1.bf16.msra.mxu0 %v1647
      %1692 = vmatprep.subr.bf16.mxu0 0
      %1693 = vmatpush1.bf16.msra.mxu0 %v1648
      %1694 = vmatprep.subr.bf16.mxu0 0
      %1695 = vmatpush1.bf16.msra.mxu0 %v1649
      %1696 = vmatprep.subr.bf16.mxu0 0
      %1697 = vmatpush1.bf16.msra.mxu0 %v1650
      %1698 = vmatprep.subr.bf16.mxu0 0
      %1699 = vmatpush1.bf16.msra.mxu0 %v1651
      %1700 = vmatprep.mubr.bf16.mxu0 %v1532
      %1701 = vmatmul.mubr.bf16.gmra.mrb[0].mxu0 %v1531
      %v1702 = vpop.f32.mrb[0].mxu0
      %v1703 = vadd.f32 %v1570, %v1702
      %v1704 = vpop.f32.mrb[0].mxu0
      %v1705 = vpop.f32.mrb[0].mxu0
      %v1706 = vadd.f32 %v1570, %v1705
      %v1707 = vpop.f32.mrb[0].mxu0
      %1708 = vdwg.mxu0
      %v1709 = vadd.f32 %v1373, %v1703
      %v1710 = vadd.f32 %v1374, %v1706
      %1711 = vadd.xlane.f32.xlu0 %v1709
      %v1712 = vpop.xlane.xlu0 %1711
      %1713 = vadd.xlane.f32.xlu0 %v1710
      %v1714 = vpop.xlane.xlu0 %1713
      %v1715 = vmul.f32 %v1712, %v1340
      %v1716 = vmul.f32 %v1714, %v1340
      %v1717 = vsub.f32 %v1709, %v1715
      %v1718 = vsub.f32 %v1710, %v1716
      %v1719 = vmul.f32 %v1717, %v1717
      %v1720 = vmul.f32 %v1718, %v1718
      %1721 = vadd.xlane.f32.xlu0 %v1719
      %v1722 = vpop.xlane.xlu0 %1721
      %1723 = vadd.xlane.f32.xlu0 %v1720
      %v1724 = vpop.xlane.xlu0 %1723
      %v1725 = vmul.f32 %v1722, %v1340
      %v1726 = vmul.f32 %v1724, %v1340
      %v1727 = vadd.f32 %v1725, 1e-12
      %v1728 = vadd.f32 %v1726, 1e-12
      %v1729 = vrsqrt.pop %v1727
      %v1730 = vrsqrt.pop %v1728
      %v1731 = vmul.f32 %v1717, %v1729
      %v1732 = vmul.f32 %v1718, %v1730
      %v1733 = vmul.f32 %v1731, %v1363
      %v1734 = vmul.f32 %v1732, %v1363
      %v1735 = vadd.f32 %v1733, %v1371
      %v1736 = vadd.f32 %v1734, %v1371
      %v1737 = vpack.c.bf16 %v1736, %v1735
      %v1739 = vunpack.c.l.b16 %v1737
      %v1740 = vunpack.c.h.b16 %v1737
      %v1741 = vpack.c.b16 %v1739, %v1739
      %v1742 = vpack.c.b16 %v1740, %v1740
      %1745 = vst [vmem:[%s427] sm:$0xf] %v1741
      %1746 = vst [vmem:[%s427 + $0x4] sm:$0xf] %v1742
      %p1747 = scmp.lt.s32.totalorder %s23, 1
      %s1748 = scalar_select %p1747, %s23, 1
      %s1749 = smul.addr %s1748, 2
      %s1750 = smul.addr %s1749, 4
      %s1751 = scalar_lea.vmem %s12, %s1750
      // Predicated region
      $region69: #{encoder_forward.3} parent=67 // pred_check
        %p1752 = pneg %p303
      $region70: #{encoder_forward.3} parent=67 // pred_check_branch
        %1754 = sbr.rel (%p1752) target = $region72
      $region71: #{encoder_forward.3} parent=67 // pred_region
        _
      $region72: #{encoder_forward.3} parent=67 // pred_fallthru
        _
    $region68: #{encoder_forward.3} parent=5 // pred_fallthru
      _
    %p1755 = scmp.le.s32.totalorder 2, %s18
    // Predicated region
    $region73: #{encoder_forward.3} parent=5 // pred_check
      %p1756 = pneg %p1755
    $region74: #{encoder_forward.3} parent=5 // pred_check_branch
      %1758 = sbr.rel (%p1756) target = $region76
    $region75: #{encoder_forward.3} parent=5 // pred_region
      %s1759 = ssub.s32 %s18, 2
      // Predicated region
      $region77: #{encoder_forward.3} parent=75 // pred_check
        %p1760 = pneg %p309
      $region78: #{encoder_forward.3} parent=75 // pred_check_branch
        %1762 = sbr.rel (%p1760) target = $region80
      $region79: #{encoder_forward.3} parent=75 // pred_region
        %p1763 = scmp.lt.s32.totalorder %s24, 1
        %s1764 = scalar_select %p1763, %s24, 1
        %s1765 = smul.addr %s1764, 2
        %s1766 = smul.addr %s1765, 4
        %s1767 = scalar_lea.vmem %s12, %s1766
      $region80: #{encoder_forward.3} parent=75 // pred_fallthru
        _
    $region76: #{encoder_forward.3} parent=5 // pred_fallthru
      _
  $region6: #{encoder_forward.3} parent=0 // loop_footer
    %s22 = sadd.s32 1, %s18
  $region7: #{encoder_forward.3} parent=0 // loop_footer_branch
    %17 = sbr.rel target = $region3
  $region8: #{encoder_forward.3} parent=0 // loop_exit
    _

// kernel: encoder_forward.2
$region0: #{encoder_forward.2}
  #allocation0 [shape = 'u32[]', space=smem, size = 0x4, offset = 0x4, fixed_abs, tag = 'smem constant byte address 0x4 - core index']
  #allocation1 [shape = 'u32[144,128]{1,0:T(1,128)}', space=vmem, size = 0x12000, scoped, tag = 'internal scratch']
  %s0 = inlined_call_operand.vmem [shape: bf16[2,16,128], index: 0, kind: input, shape index: {}]
  %s1 = inlined_call_operand.vmem [shape: f32[2,1,16], index: 1, kind: input, shape index: {}]
  %s2 = inlined_call_operand.vmem [shape: bf16[128,384], index: 2, kind: input, shape index: {}]
  %s3 = inlined_call_operand.vmem [shape: f32[1,384], index: 3, kind: input, shape index: {}]
  %s4 = inlined_call_operand.hbm [shape: bf16[128,128], index: 4, kind: input, shape index: {}]
  %s5 = inlined_call_operand.vmem [shape: f32[1,128], index: 5, kind: input, shape index: {}]
  %s6 = inlined_call_operand.hbm [shape: f32[1,128], index: 6, kind: input, shape index: {}]
  %s7 = inlined_call_operand.hbm [shape: f32[1,128], index: 7, kind: input, shape index: {}]
  %s8 = inlined_call_operand.vmem [shape: bf16[128,256], index: 8, kind: input, shape index: {}]
  %s9 = inlined_call_operand.hbm [shape: f32[1,256], index: 9, kind: input, shape index: {}]
  %s10 = inlined_call_operand.vmem [shape: bf16[256,128], index: 10, kind: input, shape index: {}]
  %s11 = inlined_call_operand.hbm [shape: f32[1,128], index: 11, kind: input, shape index: {}]
  %s12 = inlined_call_operand.vmem [shape: bf16[2,16,128], index: 12, kind: output, shape index: {}]
  %s13 = sld [smem:[#allocation0]]
  $region101: #{encoder_forward.2} parent=0
    _
  %s15 = ssub.s32 1, %s13
  %s16 = scalar_select 0, %s15, %s13
  $region1: #{encoder_forward.2} parent=0
    #allocation2 [shape = 'u8[32768]{0}', space=vmem, size = 0x8000, scoped, tag = 'input window, operand 4, single buffered']
    #allocation3 [shape = 's32[2]{0}', space=sflag, size = 0x8, scoped, tag = 'scoped memory for encoder_forward.2']
    #allocation4 [shape = 'u8[512]{0}', space=vmem, size = 0x400, scoped, tag = 'input window, operand 6, single buffered']
    #allocation5 [shape = 's32[1]{0}', space=sflag, size = 0x4, scoped, tag = 'scoped memory for encoder_forward.2']
    #allocation6 [shape = 'u8[512]{0}', space=vmem, size = 0x400, scoped, tag = 'input window, operand 7, single buffered']
    #allocation7 [shape = 'u8[1024]{0}', space=vmem, size = 0x400, scoped, tag = 'input window, operand 9, single buffered']
    #allocation8 [shape = 's32[1]{0}', space=sflag, size = 0x4, scoped, tag = 'scoped memory for encoder_forward.2']
    #allocation9 [shape = 'u8[512]{0}', space=vmem, size = 0x400, scoped, tag = 'input window, operand 11, single buffered']
    %17 = vsyncpa [#allocation3], 0
    %18 = vsyncpa [#allocation5], 0
    %19 = vsyncpa [#allocation8], 0
    loop: start=0, step=1, limit=4
    $region2: #{encoder_forward.2} parent=1 // loop_pre_header
      _
    $region3: #{encoder_forward.2} parent=1 // loop_header
      %s21 = sphi 0, %s25
      %p22 = scmp.ge.s32.totalorder %s21, 4
      %s31 = sphi 0, %s33
      %s34 = sphi 0, %s31
      %s35 = sphi 0, %s34
      %s51 = sphi 0, %s35
      %s57 = sphi 0, %s59
      %s60 = sphi 0, %s57
      %s61 = sphi 0, %s60
      %s77 = sphi 0, %s61
      %s81 = sphi 0, %s81
      %s83 = sphi 0, %s81
      %s84 = sphi 0, %s83
      %s98 = sphi 0, %s84
      %s102 = sphi 0, %s102
      %s104 = sphi 0, %s102
      %s105 = sphi 0, %s104
      %s119 = sphi 0, %s105
      %s123 = sphi 0, %s123
      %s125 = sphi 0, %s123
      %s126 = sphi 0, %s125
      %s140 = sphi 0, %s126
      %s144 = sphi 0, %s144
      %s146 = sphi 0, %s144
      %s147 = sphi 0, %s146
      %s161 = sphi 0, %s147
      %s165 = sphi 0, %s165
      %s167 = sphi 0, %s165
      %s168 = sphi 0, %s167
      %s182 = sphi 0, %s168
      %s186 = sphi 0, %s186
      %s188 = sphi 0, %s186
      %s189 = sphi 0, %s188
      %s203 = sphi 0, %s189
      %s207 = sphi 0, %s207
      %s209 = sphi 0, %s207
      %s210 = sphi 0, %s209
      %s224 = sphi 0, %s210
      %s228 = sphi 0, %s228
      %s230 = sphi 0, %s228
      %s231 = sphi 0, %s230
      %s245 = sphi 0, %s231
      %s249 = sphi 0, %s249
      %s251 = sphi 0, %s249
      %s252 = sphi 0, %s251
      %s266 = sphi 0, %s252
      %s270 = sphi 0, %s270
      %s272 = sphi 0, %s270
      %s273 = sphi 0, %s272
      %s287 = sphi 0, %s273
      %s293 = sphi 0, %s295
      %s296 = sphi 0, %s293
      %s297 = sphi 0, %s296
      %s313 = sphi 0, %s297
    $region4: #{encoder_forward.2} parent=1 // loop_header_branch
      %24 = sbr.rel (%p22) target = $region8
    $region5: #{encoder_forward.2} parent=1 // loop_body
      %s26 = ssub.s32 %s21, 1
      %s27 = ssub.s32 %s21, 2
      %s28 = sadd.s32 %s21, 1
      %s29 = ssub.s32 %s21, %s28
      %p30 = scmp.eq.s32.totalorder %s29, 0
      %s32 = sadd.s32 %s31, 1
      %s33 = scalar_select %p30, %s31, %s32
      %p36 = pneg %p30
      %p37 = scmp.eq.s32.totalorder %s21, 1
      %p38 = por %p36, %p37
      %p39 = scmp.ne.s32.totalorder %s31, %s34
      %p40 = scmp.eq.s32.totalorder %s21, 0
      %p41 = por %p39, %p40
      %p42 = scmp.ne.s32.totalorder %s31, %s34
      %p43 = scmp.eq.s32.totalorder %s26, 1
      %p44 = por %p42, %p43
      %p45 = scmp.ne.s32.totalorder %s34, %s35
      %p46 = scmp.eq.s32.totalorder %s26, 0
      %p47 = por %p45, %p46
      %p48 = scmp.ne.s32.totalorder %s34, %s35
      %p49 = scmp.eq.s32.totalorder %s27, 1
      %p50 = por %p48, %p49
      %p52 = scmp.ne.s32.totalorder %s35, %s51
      %p53 = scmp.eq.s32.totalorder %s27, 0
      %p54 = por %p52, %p53
      %s55 = ssub.s32 %s21, %s28
      %p56 = scmp.eq.s32.totalorder %s55, 0
      %s58 = sadd.s32 %s57, 1
      %s59 = scalar_select %p56, %s57, %s58
      %p62 = pneg %p56
      %p63 = scmp.eq.s32.totalorder %s21, 1
      %p64 = por %p62, %p63
      %p65 = scmp.ne.s32.totalorder %s57, %s60
      %p66 = scmp.eq.s32.totalorder %s21, 0
      %p67 = por %p65, %p66
      %p68 = scmp.ne.s32.totalorder %s57, %s60
      %p69 = scmp.eq.s32.totalorder %s26, 1
      %p70 = por %p68, %p69
      %p71 = scmp.ne.s32.totalorder %s60, %s61
      %p72 = scmp.eq.s32.totalorder %s26, 0
      %p73 = por %p71, %p72
      %p74 = scmp.ne.s32.totalorder %s60, %s61
      %p75 = scmp.eq.s32.totalorder %s27, 1
      %p76 = por %p74, %p75
      %p78 = scmp.ne.s32.totalorder %s61, %s77
      %p79 = scmp.eq.s32.totalorder %s27, 0
      %p80 = por %p78, %p79
      %s82 = sadd.s32 %s81, 1
      %p85 = scmp.eq.s32.totalorder %s21, 1
      %p86 = scmp.ne.s32.totalorder %s81, %s83
      %p87 = scmp.eq.s32.totalorder %s21, 0
      %p88 = por %p86, %p87
      %p89 = scmp.ne.s32.totalorder %s81, %s83
      %p90 = scmp.eq.s32.totalorder %s26, 1
      %p91 = por %p89, %p90
      %p92 = scmp.ne.s32.totalorder %s83, %s84
      %p93 = scmp.eq.s32.totalorder %s26, 0
      %p94 = por %p92, %p93
      %p95 = scmp.ne.s32.totalorder %s83, %s84
      %p96 = scmp.eq.s32.totalorder %s27, 1
      %p97 = por %p95, %p96
      %p99 = scmp.ne.s32.totalorder %s84, %s98
      %p100 = scmp.eq.s32.totalorder %s27, 0
      %p101 = por %p99, %p100
      %s103 = sadd.s32 %s102, 1
      %p106 = scmp.eq.s32.totalorder %s21, 1
      %p107 = scmp.ne.s32.totalorder %s102, %s104
      %p108 = scmp.eq.s32.totalorder %s21, 0
      %p109 = por %p107, %p108
      %p110 = scmp.ne.s32.totalorder %s102, %s104
      %p111 = scmp.eq.s32.totalorder %s26, 1
      %p112 = por %p110, %p111
      %p113 = scmp.ne.s32.totalorder %s104, %s105
      %p114 = scmp.eq.s32.totalorder %s26, 0
      %p115 = por %p113, %p114
      %p116 = scmp.ne.s32.totalorder %s104, %s105
      %p117 = scmp.eq.s32.totalorder %s27, 1
      %p118 = por %p116, %p117
      %p120 = scmp.ne.s32.totalorder %s105, %s119
      %p121 = scmp.eq.s32.totalorder %s27, 0
      %p122 = por %p120, %p121
      %s124 = sadd.s32 %s123, 1
      %p127 = scmp.eq.s32.totalorder %s21, 1
      %p128 = scmp.ne.s32.totalorder %s123, %s125
      %p129 = scmp.eq.s32.totalorder %s21, 0
      %p130 = por %p128, %p129
      %p131 = scmp.ne.s32.totalorder %s123, %s125
      %p132 = scmp.eq.s32.totalorder %s26, 1
      %p133 = por %p131, %p132
      %p134 = scmp.ne.s32.totalorder %s125, %s126
      %p135 = scmp.eq.s32.totalorder %s26, 0
      %p136 = por %p134, %p135
      %p137 = scmp.ne.s32.totalorder %s125, %s126
      %p138 = scmp.eq.s32.totalorder %s27, 1
      %p139 = por %p137, %p138
      %p141 = scmp.ne.s32.totalorder %s126, %s140
      %p142 = scmp.eq.s32.totalorder %s27, 0
      %p143 = por %p141, %p142
      %s145 = sadd.s32 %s144, 1
      %p148 = scmp.eq.s32.totalorder %s21, 1
      %p149 = scmp.ne.s32.totalorder %s144, %s146
      %p150 = scmp.eq.s32.totalorder %s21, 0
      %p151 = por %p149, %p150
      %p152 = scmp.ne.s32.totalorder %s144, %s146
      %p153 = scmp.eq.s32.totalorder %s26, 1
      %p154 = por %p152, %p153
      %p155 = scmp.ne.s32.totalorder %s146, %s147
      %p156 = scmp.eq.s32.totalorder %s26, 0
      %p157 = por %p155, %p156
      %p158 = scmp.ne.s32.totalorder %s146, %s147
      %p159 = scmp.eq.s32.totalorder %s27, 1
      %p160 = por %p158, %p159
      %p162 = scmp.ne.s32.totalorder %s147, %s161
      %p163 = scmp.eq.s32.totalorder %s27, 0
      %p164 = por %p162, %p163
      %s166 = sadd.s32 %s165, 1
      %p169 = scmp.eq.s32.totalorder %s21, 1
      %p170 = scmp.ne.s32.totalorder %s165, %s167
      %p171 = scmp.eq.s32.totalorder %s21, 0
      %p172 = por %p170, %p171
      %p173 = scmp.ne.s32.totalorder %s165, %s167
      %p174 = scmp.eq.s32.totalorder %s26, 1
      %p175 = por %p173, %p174
      %p176 = scmp.ne.s32.totalorder %s167, %s168
      %p177 = scmp.eq.s32.totalorder %s26, 0
      %p178 = por %p176, %p177
      %p179 = scmp.ne.s32.totalorder %s167, %s168
      %p180 = scmp.eq.s32.totalorder %s27, 1
      %p181 = por %p179, %p180
      %p183 = scmp.ne.s32.totalorder %s168, %s182
      %p184 = scmp.eq.s32.totalorder %s27, 0
      %p185 = por %p183, %p184
      %s187 = sadd.s32 %s186, 1
      %p190 = scmp.eq.s32.totalorder %s21, 1
      %p191 = scmp.ne.s32.totalorder %s186, %s188
      %p192 = scmp.eq.s32.totalorder %s21, 0
      %p193 = por %p191, %p192
      %p194 = scmp.ne.s32.totalorder %s186, %s188
      %p195 = scmp.eq.s32.totalorder %s26, 1
      %p196 = por %p194, %p195
      %p197 = scmp.ne.s32.totalorder %s188, %s189
      %p198 = scmp.eq.s32.totalorder %s26, 0
      %p199 = por %p197, %p198
      %p200 = scmp.ne.s32.totalorder %s188, %s189
      %p201 = scmp.eq.s32.totalorder %s27, 1
      %p202 = por %p200, %p201
      %p204 = scmp.ne.s32.totalorder %s189, %s203
      %p205 = scmp.eq.s32.totalorder %s27, 0
      %p206 = por %p204, %p205
      %s208 = sadd.s32 %s207, 1
      %p211 = scmp.eq.s32.totalorder %s21, 1
      %p212 = scmp.ne.s32.totalorder %s207, %s209
      %p213 = scmp.eq.s32.totalorder %s21, 0
      %p214 = por %p212, %p213
      %p215 = scmp.ne.s32.totalorder %s207, %s209
      %p216 = scmp.eq.s32.totalorder %s26, 1
      %p217 = por %p215, %p216
      %p218 = scmp.ne.s32.totalorder %s209, %s210
      %p219 = scmp.eq.s32.totalorder %s26, 0
      %p220 = por %p218, %p219
      %p221 = scmp.ne.s32.totalorder %s209, %s210
      %p222 = scmp.eq.s32.totalorder %s27, 1
      %p223 = por %p221, %p222
      %p225 = scmp.ne.s32.totalorder %s210, %s224
      %p226 = scmp.eq.s32.totalorder %s27, 0
      %p227 = por %p225, %p226
      %s229 = sadd.s32 %s228, 1
      %p232 = scmp.eq.s32.totalorder %s21, 1
      %p233 = scmp.ne.s32.totalorder %s228, %s230
      %p234 = scmp.eq.s32.totalorder %s21, 0
      %p235 = por %p233, %p234
      %p236 = scmp.ne.s32.totalorder %s228, %s230
      %p237 = scmp.eq.s32.totalorder %s26, 1
      %p238 = por %p236, %p237
      %p239 = scmp.ne.s32.totalorder %s230, %s231
      %p240 = scmp.eq.s32.totalorder %s26, 0
      %p241 = por %p239, %p240
      %p242 = scmp.ne.s32.totalorder %s230, %s231
      %p243 = scmp.eq.s32.totalorder %s27, 1
      %p244 = por %p242, %p243
      %p246 = scmp.ne.s32.totalorder %s231, %s245
      %p247 = scmp.eq.s32.totalorder %s27, 0
      %p248 = por %p246, %p247
      %s250 = sadd.s32 %s249, 1
      %p253 = scmp.eq.s32.totalorder %s21, 1
      %p254 = scmp.ne.s32.totalorder %s249, %s251
      %p255 = scmp.eq.s32.totalorder %s21, 0
      %p256 = por %p254, %p255
      %p257 = scmp.ne.s32.totalorder %s249, %s251
      %p258 = scmp.eq.s32.totalorder %s26, 1
      %p259 = por %p257, %p258
      %p260 = scmp.ne.s32.totalorder %s251, %s252
      %p261 = scmp.eq.s32.totalorder %s26, 0
      %p262 = por %p260, %p261
      %p263 = scmp.ne.s32.totalorder %s251, %s252
      %p264 = scmp.eq.s32.totalorder %s27, 1
      %p265 = por %p263, %p264
      %p267 = scmp.ne.s32.totalorder %s252, %s266
      %p268 = scmp.eq.s32.totalorder %s27, 0
      %p269 = por %p267, %p268
      %s271 = sadd.s32 %s270, 1
      %p274 = scmp.eq.s32.totalorder %s21, 1
      %p275 = scmp.ne.s32.totalorder %s270, %s272
      %p276 = scmp.eq.s32.totalorder %s21, 0
      %p277 = por %p275, %p276
      %p278 = scmp.ne.s32.totalorder %s270, %s272
      %p279 = scmp.eq.s32.totalorder %s26, 1
      %p280 = por %p278, %p279
      %p281 = scmp.ne.s32.totalorder %s272, %s273
      %p282 = scmp.eq.s32.totalorder %s26, 0
      %p283 = por %p281, %p282
      %p284 = scmp.ne.s32.totalorder %s272, %s273
      %p285 = scmp.eq.s32.totalorder %s27, 1
      %p286 = por %p284, %p285
      %p288 = scmp.ne.s32.totalorder %s273, %s287
      %p289 = scmp.eq.s32.totalorder %s27, 0
      %p290 = por %p288, %p289
      %s291 = ssub.s32 %s21, %s28
      %p292 = scmp.eq.s32.totalorder %s291, 0
      %s294 = sadd.s32 %s293, 1
      %s295 = scalar_select %p292, %s293, %s294
      %p298 = pneg %p292
      %p299 = scmp.eq.s32.totalorder %s21, 1
      %p300 = por %p298, %p299
      %p301 = scmp.ne.s32.totalorder %s293, %s296
      %p302 = scmp.eq.s32.totalorder %s21, 0
      %p303 = por %p301, %p302
      %p304 = scmp.ne.s32.totalorder %s293, %s296
      %p305 = scmp.eq.s32.totalorder %s26, 1
      %p306 = por %p304, %p305
      %p307 = scmp.ne.s32.totalorder %s296, %s297
      %p308 = scmp.eq.s32.totalorder %s26, 0
      %p309 = por %p307, %p308
      %p310 = scmp.ne.s32.totalorder %s296, %s297
      %p311 = scmp.eq.s32.totalorder %s27, 1
      %p312 = por %p310, %p311
      %p314 = scmp.ne.s32.totalorder %s297, %s313
      %p315 = scmp.eq.s32.totalorder %s27, 0
      %p316 = por %p314, %p315
      %p317 = scmp.le.s32.totalorder 1, %s21
      %p318 = scmp.lt.s32.totalorder %s21, 3
      %p319 = pnand %p317, %p318
      %p320 = pneg %p319
      // Predicated region
      $region9: #{encoder_forward.2} parent=5 // pred_check
        _
      $region10: #{encoder_forward.2} parent=5 // pred_check_branch
        %322 = sbr.rel (%p319) target = $region12
      $region11: #{encoder_forward.2} parent=5 // pred_region
        %s323 = ssub.s32 %s21, 1
        // Predicated region
        $region13: #{encoder_forward.2} parent=11 // pred_check
          %p324 = pneg %p94
        $region14: #{encoder_forward.2} parent=11 // pred_check_branch
          %326 = sbr.rel (%p324) target = $region16
        $region15: #{encoder_forward.2} parent=11 // pred_region
          _
        $region16: #{encoder_forward.2} parent=11 // pred_fallthru
          _
        // Predicated region
        $region17: #{encoder_forward.2} parent=11 // pred_check
          %p327 = pneg %p115
        $region18: #{encoder_forward.2} parent=11 // pred_check_branch
          %329 = sbr.rel (%p327) target = $region20
        $region19: #{encoder_forward.2} parent=11 // pred_region
          _
        $region20: #{encoder_forward.2} parent=11 // pred_fallthru
          _
        // Predicated region
        $region21: #{encoder_forward.2} parent=11 // pred_check
          %p330 = pneg %p136
        $region22: #{encoder_forward.2} parent=11 // pred_check_branch
          %332 = sbr.rel (%p330) target = $region24
        $region23: #{encoder_forward.2} parent=11 // pred_region
          %s334 = ssub.s32 1024, 1024
          %335 = vsyncadd [#allocation3], %s334
          %s336 = sshll.u32 [#allocation2], 4
          %s337 = int_to_ptr.vmem [resolvable:$true] %s336
          %342 = dma.hbm_to_vmem [thread:$0]  %s4, 1024, %s337, [#allocation3], 64, 64, 4
        $region24: #{encoder_forward.2} parent=11 // pred_fallthru
          _
        // Predicated region
        $region25: #{encoder_forward.2} parent=11 // pred_check
          %p343 = pneg %p157
        $region26: #{encoder_forward.2} parent=11 // pred_check_branch
          %345 = sbr.rel (%p343) target = $region28
        $region27: #{encoder_forward.2} parent=11 // pred_region
          _
        $region28: #{encoder_forward.2} parent=11 // pred_fallthru
          _
        // Predicated region
        $region29: #{encoder_forward.2} parent=11 // pred_check
          %p346 = pneg %p178
        $region30: #{encoder_forward.2} parent=11 // pred_check_branch
          %348 = sbr.rel (%p346) target = $region32
        $region31: #{encoder_forward.2} parent=11 // pred_region
          %s350 = ssub.s32 16, 16
          %351 = vsyncadd [#allocation5], %s350
          %s353 = sshll.u32 [#allocation4], 4
          %s354 = int_to_ptr.vmem [resolvable:$true] %s353
          %356 = dma.hbm_to_vmem [thread:$0]  %s6, 16, %s354, [#allocation5]
        $region32: #{encoder_forward.2} parent=11 // pred_fallthru
          _
        // Predicated region
        $region33: #{encoder_forward.2} parent=11 // pred_check
          %p357 = pneg %p199
        $region34: #{encoder_forward.2} parent=11 // pred_check_branch
          %359 = sbr.rel (%p357) target = $region36
        $region35: #{encoder_forward.2} parent=11 // pred_region
          %s361 = ssub.s32 16, 16
          %362 = vsyncadd [#allocation5], %s361
          %s364 = sshll.u32 [#allocation6], 4
          %s365 = int_to_ptr.vmem [resolvable:$true] %s364
          %367 = dma.hbm_to_vmem [thread:$0]  %s7, 16, %s365, [#allocation5]
        $region36: #{encoder_forward.2} parent=11 // pred_fallthru
          _
        // Predicated region
        $region37: #{encoder_forward.2} parent=11 // pred_check
          %p368 = pneg %p220
        $region38: #{encoder_forward.2} parent=11 // pred_check_branch
          %370 = sbr.rel (%p368) target = $region40
        $region39: #{encoder_forward.2} parent=11 // pred_region
          _
        $region40: #{encoder_forward.2} parent=11 // pred_fallthru
          _
        // Predicated region
        $region41: #{encoder_forward.2} parent=11 // pred_check
          %p371 = pneg %p241
        $region42: #{encoder_forward.2} parent=11 // pred_check_branch
          %373 = sbr.rel (%p371) target = $region44
        $region43: #{encoder_forward.2} parent=11 // pred_region
          %s375 = ssub.s32 32, 32
          %376 = vsyncadd [#allocation8], %s375
          %s378 = sshll.u32 [#allocation7], 4
          %s379 = int_to_ptr.vmem [resolvable:$true] %s378
          %381 = dma.hbm_to_vmem [thread:$0]  %s9, 32, %s379, [#allocation8]
        $region44: #{encoder_forward.2} parent=11 // pred_fallthru
          _
        // Predicated region
        $region45: #{encoder_forward.2} parent=11 // pred_check
          %p382 = pneg %p262
        $region46: #{encoder_forward.2} parent=11 // pred_check_branch
          %384 = sbr.rel (%p382) target = $region48
        $region47: #{encoder_forward.2} parent=11 // pred_region
          _
        $region48: #{encoder_forward.2} parent=11 // pred_fallthru
          _
        // Predicated region
        $region49: #{encoder_forward.2} parent=11 // pred_check
          %p385 = pneg %p283
        $region50: #{encoder_forward.2} parent=11 // pred_check_branch
          %387 = sbr.rel (%p385) target = $region52
        $region51: #{encoder_forward.2} parent=11 // pred_region
          %s389 = ssub.s32 16, 16
          %390 = vsyncadd [#allocation8], %s389
          %s392 = sshll.u32 [#allocation9], 4
          %s393 = int_to_ptr.vmem [resolvable:$true] %s392
          %395 = dma.hbm_to_vmem [thread:$0]  %s11, 16, %s393, [#allocation8]
        $region52: #{encoder_forward.2} parent=11 // pred_fallthru
          _
      $region12: #{encoder_forward.2} parent=5 // pred_fallthru
        _
      %p396 = scmp.lt.s32.totalorder %s21, 2
      // Predicated region
      $region53: #{encoder_forward.2} parent=5 // pred_check
        %p397 = pneg %p396
      $region54: #{encoder_forward.2} parent=5 // pred_check_branch
        %399 = sbr.rel (%p397) target = $region56
      $region55: #{encoder_forward.2} parent=5 // pred_region
        // Predicated region
        $region57: #{encoder_forward.2} parent=55 // pred_check
          %p400 = pneg %p41
        $region58: #{encoder_forward.2} parent=55 // pred_check_branch
          %402 = sbr.rel (%p400) target = $region60
        $region59: #{encoder_forward.2} parent=55 // pred_region
          %p403 = scmp.lt.s32.totalorder %s21, 1
          %s404 = scalar_select %p403, %s21, 1
          %s405 = smul.addr %s404, 2
          %s406 = smul.addr %s405, 4
          %s407 = scalar_lea.vmem %s0, %s406
        $region60: #{encoder_forward.2} parent=55 // pred_fallthru
          _
        // Predicated region
        $region61: #{encoder_forward.2} parent=55 // pred_check
          %p408 = pneg %p67
        $region62: #{encoder_forward.2} parent=55 // pred_check_branch
          %410 = sbr.rel (%p408) target = $region64
        $region63: #{encoder_forward.2} parent=55 // pred_region
          %p411 = scmp.lt.s32.totalorder %s21, 1
          %s412 = scalar_select %p411, %s21, 1
          %s413 = scalar_lea.vmem %s1, %s412
        $region64: #{encoder_forward.2} parent=55 // pred_fallthru
          _
      $region56: #{encoder_forward.2} parent=5 // pred_fallthru
        _
      %p414 = scmp.le.s32.totalorder 1, %s21
      %p415 = scmp.lt.s32.totalorder %s21, 3
      %p416 = pnand %p414, %p415
      %p417 = pneg %p416
      // Predicated region
      $region65: #{encoder_forward.2} parent=5 // pred_check
        _
      $region66: #{encoder_forward.2} parent=5 // pred_check_branch
        %419 = sbr.rel (%p416) target = $region68
      $region67: #{encoder_forward.2} parent=5 // pred_region
        %s420 = ssub.s32 %s21, 1
        // Predicated region
        $region69: #{encoder_forward.2} parent=67 // pred_check
          %p421 = pneg %p136
        $region70: #{encoder_forward.2} parent=67 // pred_check_branch
          %423 = sbr.rel (%p421) target = $region72
        $region71: #{encoder_forward.2} parent=67 // pred_region
          %424 = dma.done [#allocation3], 1024
        $region72: #{encoder_forward.2} parent=67 // pred_fallthru
          _
        // Predicated region
        $region73: #{encoder_forward.2} parent=67 // pred_check
          %p425 = pneg %p178
        $region74: #{encoder_forward.2} parent=67 // pred_check_branch
          %427 = sbr.rel (%p425) target = $region76
        $region75: #{encoder_forward.2} parent=67 // pred_region
          %428 = dma.done [#allocation5], 16
        $region76: #{encoder_forward.2} parent=67 // pred_fallthru
          _
        // Predicated region
        $region77: #{encoder_forward.2} parent=67 // pred_check
          %p429 = pneg %p199
        $region78: #{encoder_forward.2} parent=67 // pred_check_branch
          %431 = sbr.rel (%p429) target = $region80
        $region79: #{encoder_forward.2} parent=67 // pred_region
          %432 = dma.done [#allocation5], 16
        $region80: #{encoder_forward.2} parent=67 // pred_fallthru
          _
        // Predicated region
        $region81: #{encoder_forward.2} parent=67 // pred_check
          %p433 = pneg %p241
        $region82: #{encoder_forward.2} parent=67 // pred_check_branch
          %435 = sbr.rel (%p433) target = $region84
        $region83: #{encoder_forward.2} parent=67 // pred_region
          %436 = dma.done [#allocation8], 32
        $region84: #{encoder_forward.2} parent=67 // pred_fallthru
          _
        // Predicated region
        $region85: #{encoder_forward.2} parent=67 // pred_check
          %p437 = pneg %p283
        $region86: #{encoder_forward.2} parent=67 // pred_check_branch
          %439 = sbr.rel (%p437) target = $region88
        $region87: #{encoder_forward.2} parent=67 // pred_region
          %440 = dma.done [#allocation8], 16
        $region88: #{encoder_forward.2} parent=67 // pred_fallthru
          _
        %p441 = scmp.lt.s32.totalorder %s26, 1
        %s442 = scalar_select %p441, %s26, 1
        %s443 = smul.addr %s442, 2
        %s444 = smul.addr %s443, 4
        %s445 = scalar_lea.vmem %s0, %s444
        %p446 = pneg %p47
        %p447 = pneg %p44
        %p448 = scmp.lt.s32.totalorder %s26, 1
        %s449 = scalar_select %p448, %s26, 1
        %s450 = scalar_lea.vmem %s1, %s449
        %p451 = pneg %p73
        %p452 = pneg %p70
        %p453 = pneg %p94
        %p454 = pneg %p91
        %p455 = pneg %p115
        %p456 = pneg %p112
        %p457 = pneg %p136
        %p458 = pneg %p133
        %p459 = pneg %p157
        %p460 = pneg %p154
        %p461 = pneg %p178
        %p462 = pneg %p175
        %p463 = pneg %p199
        %p464 = pneg %p196
        %p465 = pneg %p220
        %p466 = pneg %p217
        %p467 = pneg %p241
        %p468 = pneg %p238
        %p469 = pneg %p262
        %p470 = pneg %p259
        %p471 = pneg %p283
        %p472 = pneg %p280
        %p473 = pneg %p309
        %p474 = pneg %p306
        %p475 = scmp.lt.s32.totalorder %s26, 1
        %s476 = scalar_select %p475, %s26, 1
        %s477 = smul.addr %s476, 2
        %s478 = smul.addr %s477, 4
        %s479 = scalar_lea.vmem %s12, %s478
        %p480 = scmp.lt.s32.totalorder %s26, 1
        %s481 = scalar_select %p480, %s26, 1
        %s482 = smul.addr %s481, 2
        %s483 = smul.addr %s482, 4
        %s484 = scalar_lea.vmem %s0, %s483
        %p485 = scmp.lt.s32.totalorder %s26, 1
        %s486 = scalar_select %p485, %s26, 1
        %s487 = scalar_lea.vmem %s1, %s486
        %p488 = scmp.lt.s32.totalorder %s26, 1
        %s489 = scalar_select %p488, %s26, 1
        %s490 = smul.addr %s489, 2
        %s491 = smul.addr %s490, 4
        %s492 = scalar_lea.vmem %s12, %s491
        %v494 = vld [vmem:[%s484] sm:$0xf]
        %v495 = vld [vmem:[%s484 + $0x4] sm:$0xf]
        %v496 = vunpack.c.l.bf16 %v494
        %v497 = vunpack.c.l.bf16 %v495
        %v498 = vpack.c.bf16 %v497, %v496
        %v499 = vld [vmem:[%s2] sm:$0xff]
        %v500 = vld [vmem:[%s2 + $0x8] sm:$0xf]
        %v501 = vld [vmem:[%s2 + $0xc] sm:$0xff]
        %v502 = vld [vmem:[%s2 + $0x14] sm:$0xf]
        %v503 = vld [vmem:[%s2 + $0x18] sm:$0xff]
        %v504 = vld [vmem:[%s2 + $0x20] sm:$0xf]
        %v505 = vld [vmem:[%s2 + $0x24] sm:$0xff]
        %v506 = vld [vmem:[%s2 + $0x2c] sm:$0xf]
        %v507 = vld [vmem:[%s2 + $0x30] sm:$0xff]
        %v508 = vld [vmem:[%s2 + $0x38] sm:$0xf]
        %v509 = vld [vmem:[%s2 + $0x3c] sm:$0xff]
        %v510 = vld [vmem:[%s2 + $0x44] sm:$0xf]
        %v511 = vld [vmem:[%s2 + $0x48] sm:$0xff]
        %v512 = vld [vmem:[%s2 + $0x50] sm:$0xf]
        %v513 = vld [vmem:[%s2 + $0x54] sm:$0xff]
        %v514 = vld [vmem:[%s2 + $0x5c] sm:$0xf]
        %v515 = vld [vmem:[%s2 + $0x60] sm:$0xff]
        %v516 = vld [vmem:[%s2 + $0x68] sm:$0xf]
        %v517 = vld [vmem:[%s2 + $0x6c] sm:$0xff]
        %v518 = vld [vmem:[%s2 + $0x74] sm:$0xf]
        %v519 = vld [vmem:[%s2 + $0x78] sm:$0xff]
        %v520 = vld [vmem:[%s2 + $0x80] sm:$0xf]
        %v521 = vld [vmem:[%s2 + $0x84] sm:$0xff]
        %v522 = vld [vmem:[%s2 + $0x8c] sm:$0xf]
        %v523 = vld [vmem:[%s2 + $0x90] sm:$0xff]
        %v524 = vld [vmem:[%s2 + $0x98] sm:$0xf]
        %v525 = vld [vmem:[%s2 + $0x9c] sm:$0xff]
        %v526 = vld [vmem:[%s2 + $0xa4] sm:$0xf]
        %v527 = vld [vmem:[%s2 + $0xa8] sm:$0xff]
        %v528 = vld [vmem:[%s2 + $0xb0] sm:$0xf]
        %v529 = vld [vmem:[%s2 + $0xb4] sm:$0xff]
        %v530 = vld [vmem:[%s2 + $0xbc] sm:$0xf]
        %v531 = vld [vmem:[%s3] sm:$0x7]
        %v533 = vlaneseq
        %v534 = vshrl.u32 %v533, 7
        %v535 = vsub.s32 0, %v534
        %v536 = vrot.slane %v531, %v535
        %v537 = vlaneseq
        %v538 = vshrl.u32 %v537, 7
        %v539 = vsub.s32 1, %v538
        %v540 = vrot.slane %v531, %v539
        %v541 = vlaneseq
        %v542 = vshrl.u32 %v541, 7
        %v543 = vsub.s32 2, %v542
        %v544 = vrot.slane %v531, %v543
        %v580 = vunpack.c.l.b16 %v499
        %v581 = vunpack.c.h.b16 %v499
        %v582 = vunpack.c.l.b16 %v500
        %v583 = vunpack.c.l.b16 %v501
        %v584 = vunpack.c.h.b16 %v501
        %v585 = vunpack.c.l.b16 %v502
        %v586 = vunpack.c.l.b16 %v503
        %v587 = vunpack.c.h.b16 %v503
        %v588 = vunpack.c.l.b16 %v504
        %v589 = vunpack.c.l.b16 %v505
        %v590 = vunpack.c.h.b16 %v505
        %v591 = vunpack.c.l.b16 %v506
        %v592 = vunpack.c.l.b16 %v507
        %v593 = vunpack.c.h.b16 %v507
        %v594 = vunpack.c.l.b16 %v508
        %v595 = vunpack.c.l.b16 %v509
        %v596 = vunpack.c.h.b16 %v509
        %v597 = vunpack.c.l.b16 %v510
        %v598 = vunpack.c.l.b16 %v511
        %v599 = vunpack.c.h.b16 %v511
        %v600 = vunpack.c.l.b16 %v512
        %v601 = vunpack.c.l.b16 %v513
        %v602 = vunpack.c.h.b16 %v513
        %v603 = vunpack.c.l.b16 %v514
        %v604 = vunpack.c.l.b16 %v515
        %v605 = vunpack.c.h.b16 %v515
        %v606 = vunpack.c.l.b16 %v516
        %v607 = vunpack.c.l.b16 %v517
        %v608 = vunpack.c.h.b16 %v517
        %v609 = vunpack.c.l.b16 %v518
        %v610 = vunpack.c.l.b16 %v519
        %v611 = vunpack.c.h.b16 %v519
        %v612 = vunpack.c.l.b16 %v520
        %v613 = vunpack.c.l.b16 %v521
        %v614 = vunpack.c.h.b16 %v521
        %v615 = vunpack.c.l.b16 %v522
        %v616 = vunpack.c.l.b16 %v523
        %v617 = vunpack.c.h.b16 %v523
        %v618 = vunpack.c.l.b16 %v524
        %v619 = vunpack.c.l.b16 %v525
        %v620 = vunpack.c.h.b16 %v525
        %v621 = vunpack.c.l.b16 %v526
        %v622 = vunpack.c.l.b16 %v527
        %v623 = vunpack.c.h.b16 %v527
        %v624 = vunpack.c.l.b16 %v528
        %v625 = vunpack.c.l.b16 %v529
        %v626 = vunpack.c.h.b16 %v529
        %v627 = vunpack.c.l.b16 %v530
        %v628 = vpack.c.b16 %v583, %v580
        %v629 = vpack.c.b16 %v584, %v581
        %v630 = vpack.c.b16 %v585, %v582
        %v631 = vpack.c.b16 %v589, %v586
        %v632 = vpack.c.b16 %v590, %v587
        %v633 = vpack.c.b16 %v591, %v588
        %v634 = vpack.c.b16 %v595, %v592
        %v635 = vpack.c.b16 %v596, %v593
        %v636 = vpack.c.b16 %v597, %v594
        %v637 = vpack.c.b16 %v601, %v598
        %v638 = vpack.c.b16 %v602, %v599
        %v639 = vpack.c.b16 %v603, %v600
        %v640 = vpack.c.b16 %v607, %v604
        %v641 = vpack.c.b16 %v608, %v605
        %v642 = vpack.c.b16 %v609, %v606
        %v643 = vpack.c.b16 %v613, %v610
        %v644 = vpack.c.b16 %v614, %v611
        %v645 = vpack.c.b16 %v615, %v612
        %v646 = vpack.c.b16 %v619, %v616
        %v647 = vpack.c.b16 %v620, %v617
        %v648 = vpack.c.b16 %v621, %v618
        %v649 = vpack.c.b16 %v625, %v622
        %v650 = vpack.c.b16 %v626, %v623
        %v651 = vpack.c.b16 %v627, %v624
        %676 = vmatprep.subr.bf16.mxu0 %v629
        %677 = vmatpush1.bf16.msra.mxu0 %v628
        %678 = vmatprep.subr.bf16.mxu0 %v632
        %679 = vmatpush1.bf16.msra.mxu0 %v631
        %680 = vmatprep.subr.bf16.mxu0 %v635
        %681 = vmatpush1.bf16.msra.mxu0 %v634
        %682 = vmatprep.subr.bf16.mxu0 %v638
        %683 = vmatpush1.bf16.msra.mxu0 %v637
        %684 = vmatprep.subr.bf16.mxu0 %v641
        %685 = vmatpush1.bf16.msra.mxu0 %v640
        %686 = vmatprep.subr.bf16.mxu0 %v644
        %687 = vmatpush1.bf16.msra.mxu0 %v643
        %688 = vmatprep.subr.bf16.mxu0 %v647
        %689 = vmatpush1.bf16.msra.mxu0 %v646
        %690 = vmatprep.subr.bf16.mxu0 %v650
        %691 = vmatpush1.bf16.msra.mxu0 %v649
        %692 = vmatprep.subr.bf16.mxu0 0
        %693 = vmatpush1.bf16.msra.mxu0 0
        %694 = vmatprep.subr.bf16.mxu0 0
        %695 = vmatpush1.bf16.msra.mxu0 0
        %696 = vmatprep.subr.bf16.mxu0 0
        %697 = vmatpush1.bf16.msra.mxu0 0
        %698 = vmatprep.subr.bf16.mxu0 0
        %699 = vmatpush1.bf16.msra.mxu0 0
        %700 = vmatprep.subr.bf16.mxu0 0
        %701 = vmatpush1.bf16.msra.mxu0 0
        %702 = vmatprep.subr.bf16.mxu0 0
        %703 = vmatpush1.bf16.msra.mxu0 0
        %704 = vmatprep.subr.bf16.mxu0 0
        %705 = vmatpush1.bf16.msra.mxu0 0
        %706 = vmatprep.subr.bf16.mxu0 0
        %707 = vmatpush1.bf16.msra.mxu0 0
        %708 = vmatprep.mubr.bf16.mxu0 0
        %709 = vmatmul.mubr.bf16.gmra.mrb[0].mxu0 %v498
        %v710 = vpop.f32.mrb[0].mxu0
        %v711 = vadd.f32 %v536, %v710
        %v712 = vpop.f32.mrb[0].mxu0
        %v713 = vadd.f32 %v540, %v712
        %v714 = vpop.f32.mrb[0].mxu0
        %v715 = vadd.f32 %v536, %v714
        %v716 = vpop.f32.mrb[0].mxu0
        %v717 = vadd.f32 %v540, %v716
        %718 = vdwg.mxu0
        %719 = vmatprep.subr.bf16.mxu0 0
        %720 = vmatpush1.bf16.msra.mxu0 %v630
        %721 = vmatprep.subr.bf16.mxu0 0
        %722 = vmatpush1.bf16.msra.mxu0 %v633
        %723 = vmatprep.subr.bf16.mxu0 0
        %724 = vmatpush1.bf16.msra.mxu0 %v636
        %725 = vmatprep.subr.bf16.mxu0 0
        %726 = vmatpush1.bf16.msra.mxu0 %v639
        %727 = vmatprep.subr.bf16.mxu0 0
        %728 = vmatpush1.bf16.msra.mxu0 %v642
        %729 = vmatprep.subr.bf16.mxu0 0
        %730 = vmatpush1.bf16.msra.mxu0 %v645
        %731 = vmatprep.subr.bf16.mxu0 0
        %732 = vmatpush1.bf16.msra.mxu0 %v648
        %733 = vmatprep.subr.bf16.mxu0 0
        %734 = vmatpush1.bf16.msra.mxu0 %v651
        %735 = vmatprep.subr.bf16.mxu0 0
        %736 = vmatpush1.bf16.msra.mxu0 0
        %737 = vmatprep.subr.bf16.mxu0 0
        %738 = vmatpush1.bf16.msra.mxu0 0
        %739 = vmatprep.subr.bf16.mxu0 0
        %740 = vmatpush1.bf16.msra.mxu0 0
        %741 = vmatprep.subr.bf16.mxu0 0
        %742 = vmatpush1.bf16.msra.mxu0 0
        %743 = vmatprep.subr.bf16.mxu0 0
        %744 = vmatpush1.bf16.msra.mxu0 0
        %745 = vmatprep.subr.bf16.mxu0 0
        %746 = vmatpush1.bf16.msra.mxu0 0
        %747 = vmatprep.subr.bf16.mxu0 0
        %748 = vmatpush1.bf16.msra.mxu0 0
        %749 = vmatprep.subr.bf16.mxu0 0
        %750 = vmatpush1.bf16.msra.mxu0 0
        %751 = vmatprep.mubr.bf16.mxu0 0
        %752 = vmatmul.mubr.bf16.gmra.mrb[0].mxu0 %v498
        %v753 = vpop.f32.mrb[0].mxu0
        %v754 = vadd.f32 %v544, %v753
        %v755 = vpop.f32.mrb[0].mxu0
        %v756 = vpop.f32.mrb[0].mxu0
        %v757 = vadd.f32 %v544, %v756
        %v758 = vpop.f32.mrb[0].mxu0
        %759 = vdwg.mxu0
        %v760 = vpack.c.bf16 %v715, %v711
        %v761 = vpack.c.bf16 %v717, %v713
        %v762 = vpack.c.bf16 %v757, %v754
        %v763 = vld [vmem:[%s487] sm:$0x1]
        %v765 = vlaneseq
        %v766 = vshrl.u32 %v765, 7
        %v767 = vsub.s32 0, %v766
        %v768 = vrot.slane %v763, %v767
        %vm770 = vcmask 261120
        %v772 = vsel %vm770, %v760, 0
        %v775 = vsel %vm770, %v761, 0
        %777 = vmatprep.subr.bf16.mxu0 0
        %778 = vmatpush1.bf16.xpose.msra.mxu0 %v775
        %779 = vmatprep.subr.bf16.mxu0 0
        %780 = vmatpush1.bf16.xpose.msra.mxu0 0
        %781 = vmatprep.subr.bf16.mxu0 0
        %782 = vmatpush1.bf16.xpose.msra.mxu0 0
        %783 = vmatprep.subr.bf16.mxu0 0
        %784 = vmatpush1.bf16.xpose.msra.mxu0 0
        %785 = vmatprep.subr.bf16.mxu0 0
        %786 = vmatpush1.bf16.xpose.msra.mxu0 0
        %787 = vmatprep.subr.bf16.mxu0 0
        %788 = vmatpush1.bf16.xpose.msra.mxu0 0
        %789 = vmatprep.subr.bf16.mxu0 0
        %790 = vmatpush1.bf16.xpose.msra.mxu0 0
        %791 = vmatprep.subr.bf16.mxu0 0
        %792 = vmatpush1.bf16.xpose.msra.mxu0 0
        %793 = vmatprep.subr.bf16.mxu0 0
        %794 = vmatpush1.bf16.xpose.msra.mxu0 0
        %795 = vmatprep.subr.bf16.mxu0 0
        %796 = vmatpush1.bf16.xpose.msra.mxu0 0
        %797 = vmatprep.subr.bf16.mxu0 0
        %798 = vmatpush1.bf16.xpose.msra.mxu0 0
        %799 = vmatprep.subr.bf16.mxu0 0
        %800 = vmatpush1.bf16.xpose.msra.mxu0 0
        %801 = vmatprep.subr.bf16.mxu0 0
        %802 = vmatpush1.bf16.xpose.msra.mxu0 0
        %803 = vmatprep.subr.bf16.mxu0 0
        %804 = vmatpush1.bf16.xpose.msra.mxu0 0
        %805 = vmatprep.subr.bf16.mxu0 0
        %806 = vmatpush1.bf16.xpose.msra.mxu0 0
        %807 = vmatprep.subr.bf16.mxu0 0
        %808 = vmatpush1.bf16.xpose.msra.mxu0 0
        %809 = vmatprep.mubr.bf16.mxu0 0
        %810 = vmatmul.mubr.bf16.gmra.mrb[0].mxu0 %v772
        %v811 = vpop.f32.mrb[0].mxu0
        %v812 = vadd.f32 %v768, %v811
        %v813 = vpop.f32.mrb[0].mxu0
        %v814 = vpop.f32.mrb[0].mxu0
        %v815 = vadd.f32 %v768, %v814
        %v816 = vpop.f32.mrb[0].mxu0
        %817 = vdwg.mxu0
        %vm818 = vcmask 130048
        %v819 = vsel %vm818, %v812, -inf
        %820 = vmax.xlane.f32.xlu0 %v819
        %v821 = vpop.xlane.xlu0 %820
        %v822 = vsel %vm818, %v815, -inf
        %823 = vmax.xlane.f32.xlu0 %v822
        %v824 = vpop.xlane.xlu0 %823
        %v825 = vsub.f32 %v812, %v821
        %v826 = vsub.f32 %v815, %v824
        %v827 = vmul.f32 %v825, 1.442695
        %v828 = vpow.pop %v827
        %v829 = vmul.f32 %v826, 1.442695
        %v830 = vpow.pop %v829
        %v831 = vsel %vm818, %v828, 0.0
        %832 = vadd.xlane.f32.xlu0 %v831
        %v833 = vpop.xlane.xlu0 %832
        %v834 = vsel %vm818, %v830, 0.0
        %835 = vadd.xlane.f32.xlu0 %v834
        %v836 = vpop.xlane.xlu0 %835
        %v837 = vrcp.pop %v833
        %v838 = vmul.f32 %v828, %v837
        %v839 = vrcp.pop %v836
        %v840 = vmul.f32 %v830, %v839
        %v841 = vpack.c.bf16 %v840, %v838
        %v843 = vsel %vm818, %v841, 0
        %845 = vmatprep.subr.bf16.mxu0 0
        %846 = vmatpush1.bf16.msra.mxu0 %v762
        %847 = vmatprep.subr.bf16.mxu0 0
        %848 = vmatpush1.bf16.msra.mxu0 0
        %849 = vmatprep.subr.bf16.mxu0 0
        %850 = vmatpush1.bf16.msra.mxu0 0
        %851 = vmatprep.subr.bf16.mxu0 0
        %852 = vmatpush1.bf16.msra.mxu0 0
        %853 = vmatprep.subr.bf16.mxu0 0
        %854 = vmatpush1.bf16.msra.mxu0 0
        %855 = vmatprep.subr.bf16.mxu0 0
        %856 = vmatpush1.bf16.msra.mxu0 0
        %857 = vmatprep.subr.bf16.mxu0 0
        %858 = vmatpush1.bf16.msra.mxu0 0
        %859 = vmatprep.subr.bf16.mxu0 0
        %860 = vmatpush1.bf16.msra.mxu0 0
        %861 = vmatprep.subr.bf16.mxu0 0
        %862 = vmatpush1.bf16.msra.mxu0 0
        %863 = vmatprep.subr.bf16.mxu0 0
        %864 = vmatpush1.bf16.msra.mxu0 0
        %865 = vmatprep.subr.bf16.mxu0 0
        %866 = vmatpush1.bf16.msra.mxu0 0
        %867 = vmatprep.subr.bf16.mxu0 0
        %868 = vmatpush1.bf16.msra.mxu0 0
        %869 = vmatprep.subr.bf16.mxu0 0
        %870 = vmatpush1.bf16.msra.mxu0 0
        %871 = vmatprep.subr.bf16.mxu0 0
        %872 = vmatpush1.bf16.msra.mxu0 0
        %873 = vmatprep.subr.bf16.mxu0 0
        %874 = vmatpush1.bf16.msra.mxu0 0
        %875 = vmatprep.subr.bf16.mxu0 0
        %876 = vmatpush1.bf16.msra.mxu0 0
        %877 = vmatprep.mubr.bf16.mxu0 0
        %878 = vmatmul.mubr.bf16.gmra.mrb[0].mxu0 %v843
        %v879 = vpop.f32.mrb[0].mxu0
        %v880 = vadd.f32 0.0, %v879
        %v881 = vpop.f32.mrb[0].mxu0
        %v882 = vpop.f32.mrb[0].mxu0
        %v883 = vadd.f32 0.0, %v882
        %v884 = vpop.f32.mrb[0].mxu0
        %885 = vdwg.mxu0
        %887 = vrot.lane.b32.xlu0 %v760, 96
        %v888 = vpop.permute.xlu0 %887
        %890 = vrot.lane.b32.xlu0 %v761, 96
        %v891 = vpop.permute.xlu0 %890
        %v893 = vsel %vm770, %v888, 0
        %v896 = vsel %vm770, %v891, 0
        %898 = vmatprep.subr.bf16.mxu0 0
        %899 = vmatpush1.bf16.xpose.msra.mxu0 %v896
        %900 = vmatprep.subr.bf16.mxu0 0
        %901 = vmatpush1.bf16.xpose.msra.mxu0 0
        %902 = vmatprep.subr.bf16.mxu0 0
        %903 = vmatpush1.bf16.xpose.msra.mxu0 0
        %904 = vmatprep.subr.bf16.mxu0 0
        %905 = vmatpush1.bf16.xpose.msra.mxu0 0
        %906 = vmatprep.subr.bf16.mxu0 0
        %907 = vmatpush1.bf16.xpose.msra.mxu0 0
        %908 = vmatprep.subr.bf16.mxu0 0
        %909 = vmatpush1.bf16.xpose.msra.mxu0 0
        %910 = vmatprep.subr.bf16.mxu0 0
        %911 = vmatpush1.bf16.xpose.msra.mxu0 0
        %912 = vmatprep.subr.bf16.mxu0 0
        %913 = vmatpush1.bf16.xpose.msra.mxu0 0
        %914 = vmatprep.subr.bf16.mxu0 0
        %915 = vmatpush1.bf16.xpose.msra.mxu0 0
        %916 = vmatprep.subr.bf16.mxu0 0
        %917 = vmatpush1.bf16.xpose.msra.mxu0 0
        %918 = vmatprep.subr.bf16.mxu0 0
        %919 = vmatpush1.bf16.xpose.msra.mxu0 0
        %920 = vmatprep.subr.bf16.mxu0 0
        %921 = vmatpush1.bf16.xpose.msra.mxu0 0
        %922 = vmatprep.subr.bf16.mxu0 0
        %923 = vmatpush1.bf16.xpose.msra.mxu0 0
        %924 = vmatprep.subr.bf16.mxu0 0
        %925 = vmatpush1.bf16.xpose.msra.mxu0 0
        %926 = vmatprep.subr.bf16.mxu0 0
        %927 = vmatpush1.bf16.xpose.msra.mxu0 0
        %928 = vmatprep.subr.bf16.mxu0 0
        %929 = vmatpush1.bf16.xpose.msra.mxu0 0
        %930 = vmatprep.mubr.bf16.mxu0 0
        %931 = vmatmul.mubr.bf16.gmra.mrb[0].mxu0 %v893
        %v932 = vpop.f32.mrb[0].mxu0
        %v933 = vadd.f32 %v768, %v932
        %v934 = vpop.f32.mrb[0].mxu0
        %v935 = vpop.f32.mrb[0].mxu0
        %v936 = vadd.f32 %v768, %v935
        %v937 = vpop.f32.mrb[0].mxu0
        %938 = vdwg.mxu0
        %v939 = vsel %vm818, %v933, -inf
        %940 = vmax.xlane.f32.xlu0 %v939
        %v941 = vpop.xlane.xlu0 %940
        %v942 = vsel %vm818, %v936, -inf
        %943 = vmax.xlane.f32.xlu0 %v942
        %v944 = vpop.xlane.xlu0 %943
        %v945 = vsub.f32 %v933, %v941
        %v946 = vsub.f32 %v936, %v944
        %v947 = vmul.f32 %v945, 1.442695
        %v948 = vpow.pop %v947
        %v949 = vmul.f32 %v946, 1.442695
        %v950 = vpow.pop %v949
        %v951 = vsel %vm818, %v948, 0.0
        %952 = vadd.xlane.f32.xlu0 %v951
        %v953 = vpop.xlane.xlu0 %952
        %v954 = vsel %vm818, %v950, 0.0
        %955 = vadd.xlane.f32.xlu0 %v954
        %v956 = vpop.xlane.xlu0 %955
        %v957 = vrcp.pop %v953
        %v958 = vmul.f32 %v948, %v957
        %v959 = vrcp.pop %v956
        %v960 = vmul.f32 %v950, %v959
        %v961 = vpack.c.bf16 %v960, %v958
        %963 = vrot.lane.b32.xlu0 %v762, 96
        %v964 = vpop.permute.xlu0 %963
        %v967 = vsel %vm818, %v961, 0
        %969 = vmatprep.subr.bf16.mxu0 0
        %970 = vmatpush1.bf16.msra.mxu0 %v964
        %971 = vmatprep.subr.bf16.mxu0 0
        %972 = vmatpush1.bf16.msra.mxu0 0
        %973 = vmatprep.subr.bf16.mxu0 0
        %974 = vmatpush1.bf16.msra.mxu0 0
        %975 = vmatprep.subr.bf16.mxu0 0
        %976 = vmatpush1.bf16.msra.mxu0 0
        %977 = vmatprep.subr.bf16.mxu0 0
        %978 = vmatpush1.bf16.msra.mxu0 0
        %979 = vmatprep.subr.bf16.mxu0 0
        %980 = vmatpush1.bf16.msra.mxu0 0
        %981 = vmatprep.subr.bf16.mxu0 0
        %982 = vmatpush1.bf16.msra.mxu0 0
        %983 = vmatprep.subr.bf16.mxu0 0
        %984 = vmatpush1.bf16.msra.mxu0 0
        %985 = vmatprep.subr.bf16.mxu0 0
        %986 = vmatpush1.bf16.msra.mxu0 0
        %987 = vmatprep.subr.bf16.mxu0 0
        %988 = vmatpush1.bf16.msra.mxu0 0
        %989 = vmatprep.subr.bf16.mxu0 0
        %990 = vmatpush1.bf16.msra.mxu0 0
        %991 = vmatprep.subr.bf16.mxu0 0
        %992 = vmatpush1.bf16.msra.mxu0 0
        %993 = vmatprep.subr.bf16.mxu0 0
        %994 = vmatpush1.bf16.msra.mxu0 0
        %995 = vmatprep.subr.bf16.mxu0 0
        %996 = vmatpush1.bf16.msra.mxu0 0
        %997 = vmatprep.subr.bf16.mxu0 0
        %998 = vmatpush1.bf16.msra.mxu0 0
        %999 = vmatprep.subr.bf16.mxu0 0
        %1000 = vmatpush1.bf16.msra.mxu0 0
        %1001 = vmatprep.mubr.bf16.mxu0 0
        %1002 = vmatmul.mubr.bf16.gmra.mrb[0].mxu0 %v967
        %v1003 = vpop.f32.mrb[0].mxu0
        %v1004 = vadd.f32 0.0, %v1003
        %v1005 = vpop.f32.mrb[0].mxu0
        %v1006 = vpop.f32.mrb[0].mxu0
        %v1007 = vadd.f32 0.0, %v1006
        %v1008 = vpop.f32.mrb[0].mxu0
        %1009 = vdwg.mxu0
        %1010 = vrot.lane.b32.xlu0 %v760, 64
        %v1011 = vpop.permute.xlu0 %1010
        %1012 = vrot.lane.b32.xlu0 %v761, 64
        %v1013 = vpop.permute.xlu0 %1012
        %v1015 = vsel %vm770, %v1011, 0
        %v1018 = vsel %vm770, %v1013, 0
        %1020 = vmatprep.subr.bf16.mxu0 0
        %1021 = vmatpush1.bf16.xpose.msra.mxu0 %v1018
        %1022 = vmatprep.subr.bf16.mxu0 0
        %1023 = vmatpush1.bf16.xpose.msra.mxu0 0
        %1024 = vmatprep.subr.bf16.mxu0 0
        %1025 = vmatpush1.bf16.xpose.msra.mxu0 0
        %1026 = vmatprep.subr.bf16.mxu0 0
        %1027 = vmatpush1.bf16.xpose.msra.mxu0 0
        %1028 = vmatprep.subr.bf16.mxu0 0
        %1029 = vmatpush1.bf16.xpose.msra.mxu0 0
        %1030 = vmatprep.subr.bf16.mxu0 0
        %1031 = vmatpush1.bf16.xpose.msra.mxu0 0
        %1032 = vmatprep.subr.bf16.mxu0 0
        %1033 = vmatpush1.bf16.xpose.msra.mxu0 0
        %1034 = vmatprep.subr.bf16.mxu0 0
        %1035 = vmatpush1.bf16.xpose.msra.mxu0 0
        %1036 = vmatprep.subr.bf16.mxu0 0
        %1037 = vmatpush1.bf16.xpose.msra.mxu0 0
        %1038 = vmatprep.subr.bf16.mxu0 0
        %1039 = vmatpush1.bf16.xpose.msra.mxu0 0
        %1040 = vmatprep.subr.bf16.mxu0 0
        %1041 = vmatpush1.bf16.xpose.msra.mxu0 0
        %1042 = vmatprep.subr.bf16.mxu0 0
        %1043 = vmatpush1.bf16.xpose.msra.mxu0 0
        %1044 = vmatprep.subr.bf16.mxu0 0
        %1045 = vmatpush1.bf16.xpose.msra.mxu0 0
        %1046 = vmatprep.subr.bf16.mxu0 0
        %1047 = vmatpush1.bf16.xpose.msra.mxu0 0
        %1048 = vmatprep.subr.bf16.mxu0 0
        %1049 = vmatpush1.bf16.xpose.msra.mxu0 0
        %1050 = vmatprep.subr.bf16.mxu0 0
        %1051 = vmatpush1.bf16.xpose.msra.mxu0 0
        %1052 = vmatprep.mubr.bf16.mxu0 0
        %1053 = vmatmul.mubr.bf16.gmra.mrb[0].mxu0 %v1015
        %v1054 = vpop.f32.mrb[0].mxu0
        %v1055 = vadd.f32 %v768, %v1054
        %v1056 = vpop.f32.mrb[0].mxu0
        %v1057 = vpop.f32.mrb[0].mxu0
        %v1058 = vadd.f32 %v768, %v1057
        %v1059 = vpop.f32.mrb[0].mxu0
        %1060 = vdwg.mxu0
        %v1061 = vsel %vm818, %v1055, -inf
        %1062 = vmax.xlane.f32.xlu0 %v1061
        %v1063 = vpop.xlane.xlu0 %1062
        %v1064 = vsel %vm818, %v1058, -inf
        %1065 = vmax.xlane.f32.xlu0 %v1064
        %v1066 = vpop.xlane.xlu0 %1065
        %v1067 = vsub.f32 %v1055, %v1063
        %v1068 = vsub.f32 %v1058, %v1066
        %v1069 = vmul.f32 %v1067, 1.442695
        %v1070 = vpow.pop %v1069
        %v1071 = vmul.f32 %v1068, 1.442695
        %v1072 = vpow.pop %v1071
        %v1073 = vsel %vm818, %v1070, 0.0
        %1074 = vadd.xlane.f32.xlu0 %v1073
        %v1075 = vpop.xlane.xlu0 %1074
        %v1076 = vsel %vm818, %v1072, 0.0
        %1077 = vadd.xlane.f32.xlu0 %v1076
        %v1078 = vpop.xlane.xlu0 %1077
        %v1079 = vrcp.pop %v1075
        %v1080 = vmul.f32 %v1070, %v1079
        %v1081 = vrcp.pop %v1078
        %v1082 = vmul.f32 %v1072, %v1081
        %v1083 = vpack.c.bf16 %v1082, %v1080
        %1084 = vrot.lane.b32.xlu0 %v762, 64
        %v1085 = vpop.permute.xlu0 %1084
        %v1088 = vsel %vm818, %v1083, 0
        %1090 = vmatprep.subr.bf16.mxu0 0
        %1091 = vmatpush1.bf16.msra.mxu0 %v1085
        %1092 = vmatprep.subr.bf16.mxu0 0
        %1093 = vmatpush1.bf16.msra.mxu0 0
        %1094 = vmatprep.subr.bf16.mxu0 0
        %1095 = vmatpush1.bf16.msra.mxu0 0
        %1096 = vmatprep.subr.bf16.mxu0 0
        %1097 = vmatpush1.bf16.msra.mxu0 0
        %1098 = vmatprep.subr.bf16.mxu0 0
        %1099 = vmatpush1.bf16.msra.mxu0 0
        %1100 = vmatprep.subr.bf16.mxu0 0
        %1101 = vmatpush1.bf16.msra.mxu0 0
        %1102 = vmatprep.subr.bf16.mxu0 0
        %1103 = vmatpush1.bf16.msra.mxu0 0
        %1104 = vmatprep.subr.bf16.mxu0 0
        %1105 = vmatpush1.bf16.msra.mxu0 0
        %1106 = vmatprep.subr.bf16.mxu0 0
        %1107 = vmatpush1.bf16.msra.mxu0 0
        %1108 = vmatprep.subr.bf16.mxu0 0
        %1109 = vmatpush1.bf16.msra.mxu0 0
        %1110 = vmatprep.subr.bf16.mxu0 0
        %1111 = vmatpush1.bf16.msra.mxu0 0
        %1112 = vmatprep.subr.bf16.mxu0 0
        %1113 = vmatpush1.bf16.msra.mxu0 0
        %1114 = vmatprep.subr.bf16.mxu0 0
        %1115 = vmatpush1.bf16.msra.mxu0 0
        %1116 = vmatprep.subr.bf16.mxu0 0
        %1117 = vmatpush1.bf16.msra.mxu0 0
        %1118 = vmatprep.subr.bf16.mxu0 0
        %1119 = vmatpush1.bf16.msra.mxu0 0
        %1120 = vmatprep.subr.bf16.mxu0 0
        %1121 = vmatpush1.bf16.msra.mxu0 0
        %1122 = vmatprep.mubr.bf16.mxu0 0
        %1123 = vmatmul.mubr.bf16.gmra.mrb[0].mxu0 %v1088
        %v1124 = vpop.f32.mrb[0].mxu0
        %v1125 = vadd.f32 0.0, %v1124
        %v1126 = vpop.f32.mrb[0].mxu0
        %v1127 = vpop.f32.mrb[0].mxu0
        %v1128 = vadd.f32 0.0, %v1127
        %v1129 = vpop.f32.mrb[0].mxu0
        %1130 = vdwg.mxu0
        %1131 = vrot.lane.b32.xlu0 %v760, 32
        %v1132 = vpop.permute.xlu0 %1131
        %1133 = vrot.lane.b32.xlu0 %v761, 32
        %v1134 = vpop.permute.xlu0 %1133
        %v1136 = vsel %vm770, %v1132, 0
        %v1139 = vsel %vm770, %v1134, 0
        %1141 = vmatprep.subr.bf16.mxu0 0
        %1142 = vmatpush1.bf16.xpose.msra.mxu0 %v1139
        %1143 = vmatprep.subr.bf16.mxu0 0
        %1144 = vmatpush1.bf16.xpose.msra.mxu0 0
        %1145 = vmatprep.subr.bf16.mxu0 0
        %1146 = vmatpush1.bf16.xpose.msra.mxu0 0
        %1147 = vmatprep.subr.bf16.mxu0 0
        %1148 = vmatpush1.bf16.xpose.msra.mxu0 0
        %1149 = vmatprep.subr.bf16.mxu0 0
        %1150 = vmatpush1.bf16.xpose.msra.mxu0 0
        %1151 = vmatprep.subr.bf16.mxu0 0
        %1152 = vmatpush1.bf16.xpose.msra.mxu0 0
        %1153 = vmatprep.subr.bf16.mxu0 0
        %1154 = vmatpush1.bf16.xpose.msra.mxu0 0
        %1155 = vmatprep.subr.bf16.mxu0 0
        %1156 = vmatpush1.bf16.xpose.msra.mxu0 0
        %1157 = vmatprep.subr.bf16.mxu0 0
        %1158 = vmatpush1.bf16.xpose.msra.mxu0 0
        %1159 = vmatprep.subr.bf16.mxu0 0
        %1160 = vmatpush1.bf16.xpose.msra.mxu0 0
        %1161 = vmatprep.subr.bf16.mxu0 0
        %1162 = vmatpush1.bf16.xpose.msra.mxu0 0
        %1163 = vmatprep.subr.bf16.mxu0 0
        %1164 = vmatpush1.bf16.xpose.msra.mxu0 0
        %1165 = vmatprep.subr.bf16.mxu0 0
        %1166 = vmatpush1.bf16.xpose.msra.mxu0 0
        %1167 = vmatprep.subr.bf16.mxu0 0
        %1168 = vmatpush1.bf16.xpose.msra.mxu0 0
        %1169 = vmatprep.subr.bf16.mxu0 0
        %1170 = vmatpush1.bf16.xpose.msra.mxu0 0
        %1171 = vmatprep.subr.bf16.mxu0 0
        %1172 = vmatpush1.bf16.xpose.msra.mxu0 0
        %1173 = vmatprep.mubr.bf16.mxu0 0
        %1174 = vmatmul.mubr.bf16.gmra.mrb[0].mxu0 %v1136
        %v1175 = vpop.f32.mrb[0].mxu0
        %v1176 = vadd.f32 %v768, %v1175
        %v1177 = vpop.f32.mrb[0].mxu0
        %v1178 = vpop.f32.mrb[0].mxu0
        %v1179 = vadd.f32 %v768, %v1178
        %v1180 = vpop.f32.mrb[0].mxu0
        %1181 = vdwg.mxu0
        %v1182 = vsel %vm818, %v1176, -inf
        %1183 = vmax.xlane.f32.xlu0 %v1182
        %v1184 = vpop.xlane.xlu0 %1183
        %v1185 = vsel %vm818, %v1179, -inf
        %1186 = vmax.xlane.f32.xlu0 %v1185
        %v1187 = vpop.xlane.xlu0 %1186
        %v1188 = vsub.f32 %v1176, %v1184
        %v1189 = vsub.f32 %v1179, %v1187
        %v1190 = vmul.f32 %v1188, 1.442695
        %v1191 = vpow.pop %v1190
        %v1192 = vmul.f32 %v1189, 1.442695
        %v1193 = vpow.pop %v1192
        %v1194 = vsel %vm818, %v1191, 0.0
        %1195 = vadd.xlane.f32.xlu0 %v1194
        %v1196 = vpop.xlane.xlu0 %1195
        %v1197 = vsel %vm818, %v1193, 0.0
        %1198 = vadd.xlane.f32.xlu0 %v1197
        %v1199 = vpop.xlane.xlu0 %1198
        %v1200 = vrcp.pop %v1196
        %v1201 = vmul.f32 %v1191, %v1200
        %v1202 = vrcp.pop %v1199
        %v1203 = vmul.f32 %v1193, %v1202
        %v1204 = vpack.c.bf16 %v1203, %v1201
        %1205 = vrot.lane.b32.xlu0 %v762, 32
        %v1206 = vpop.permute.xlu0 %1205
        %v1209 = vsel %vm818, %v1204, 0
        %1211 = vmatprep.subr.bf16.mxu0 0
        %1212 = vmatpush1.bf16.msra.mxu0 %v1206
        %1213 = vmatprep.subr.bf16.mxu0 0
        %1214 = vmatpush1.bf16.msra.mxu0 0
        %1215 = vmatprep.subr.bf16.mxu0 0
        %1216 = vmatpush1.bf16.msra.mxu0 0
        %1217 = vmatprep.subr.bf16.mxu0 0
        %1218 = vmatpush1.bf16.msra.mxu0 0
        %1219 = vmatprep.subr.bf16.mxu0 0
        %1220 = vmatpush1.bf16.msra.mxu0 0
        %1221 = vmatprep.subr.bf16.mxu0 0
        %1222 = vmatpush1.bf16.msra.mxu0 0
        %1223 = vmatprep.subr.bf16.mxu0 0
        %1224 = vmatpush1.bf16.msra.mxu0 0
        %1225 = vmatprep.subr.bf16.mxu0 0
        %1226 = vmatpush1.bf16.msra.mxu0 0
        %1227 = vmatprep.subr.bf16.mxu0 0
        %1228 = vmatpush1.bf16.msra.mxu0 0
        %1229 = vmatprep.subr.bf16.mxu0 0
        %1230 = vmatpush1.bf16.msra.mxu0 0
        %1231 = vmatprep.subr.bf16.mxu0 0
        %1232 = vmatpush1.bf16.msra.mxu0 0
        %1233 = vmatprep.subr.bf16.mxu0 0
        %1234 = vmatpush1.bf16.msra.mxu0 0
        %1235 = vmatprep.subr.bf16.mxu0 0
        %1236 = vmatpush1.bf16.msra.mxu0 0
        %1237 = vmatprep.subr.bf16.mxu0 0
        %1238 = vmatpush1.bf16.msra.mxu0 0
        %1239 = vmatprep.subr.bf16.mxu0 0
        %1240 = vmatpush1.bf16.msra.mxu0 0
        %1241 = vmatprep.subr.bf16.mxu0 0
        %1242 = vmatpush1.bf16.msra.mxu0 0
        %1243 = vmatprep.mubr.bf16.mxu0 0
        %1244 = vmatmul.mubr.bf16.gmra.mrb[0].mxu0 %v1209
        %v1245 = vpop.f32.mrb[0].mxu0
        %v1246 = vadd.f32 0.0, %v1245
        %v1247 = vpop.f32.mrb[0].mxu0
        %v1248 = vpop.f32.mrb[0].mxu0
        %v1249 = vadd.f32 0.0, %v1248
        %v1250 = vpop.f32.mrb[0].mxu0
        %1251 = vdwg.mxu0
        %1254 = vrot.lane.b32.xlu0 %v1004, 32
        %v1255 = vpop.permute.xlu0 %1254
        %1256 = vrot.lane.b32.xlu0 %v1007, 32
        %v1257 = vpop.permute.xlu0 %1256
        %1262 = vrot.lane.b32.xlu0 %v1125, 64
        %v1263 = vpop.permute.xlu0 %1262
        %1264 = vrot.lane.b32.xlu0 %v1128, 64
        %v1265 = vpop.permute.xlu0 %1264
        %1270 = vrot.lane.b32.xlu0 %v1246, 96
        %v1271 = vpop.permute.xlu0 %1270
        %1272 = vrot.lane.b32.xlu0 %v1249, 96
        %v1273 = vpop.permute.xlu0 %1272
        %v1276 = vsel %vm770, %v880, %v1255
        %v1277 = vsel %vm770, %v883, %v1257
        %vm1278 = vcmask 523264
        %v1279 = vsel %vm1278, %v1276, %v1263
        %v1280 = vsel %vm1278, %v1277, %v1265
        %vm1281 = vcmask 785408
        %v1282 = vsel %vm1281, %v1279, %v1271
        %v1283 = vsel %vm1281, %v1280, %v1273
        %v1284 = vpack.c.bf16 %v1283, %v1282
        %v1285 = vld [vmem:[#allocation2] sm:$0xf]
        %v1286 = vld [vmem:[#allocation2 + $0x4] sm:$0xf]
        %v1287 = vld [vmem:[#allocation2 + $0x8] sm:$0xf]
        %v1288 = vld [vmem:[#allocation2 + $0xc] sm:$0xf]
        %v1289 = vld [vmem:[#allocation2 + $0x10] sm:$0xf]
        %v1290 = vld [vmem:[#allocation2 + $0x14] sm:$0xf]
        %v1291 = vld [vmem:[#allocation2 + $0x18] sm:$0xf]
        %v1292 = vld [vmem:[#allocation2 + $0x1c] sm:$0xf]
        %v1293 = vld [vmem:[#allocation2 + $0x20] sm:$0xf]
        %v1294 = vld [vmem:[#allocation2 + $0x24] sm:$0xf]
        %v1295 = vld [vmem:[#allocation2 + $0x28] sm:$0xf]
        %v1296 = vld [vmem:[#allocation2 + $0x2c] sm:$0xf]
        %v1297 = vld [vmem:[#allocation2 + $0x30] sm:$0xf]
        %v1298 = vld [vmem:[#allocation2 + $0x34] sm:$0xf]
        %v1299 = vld [vmem:[#allocation2 + $0x38] sm:$0xf]
        %v1300 = vld [vmem:[#allocation2 + $0x3c] sm:$0xf]
        %v1301 = vld [vmem:[%s5] sm:$0x1]
        %v1303 = vlaneseq
        %v1304 = vshrl.u32 %v1303, 7
        %v1305 = vsub.s32 0, %v1304
        %v1306 = vrot.slane %v1301, %v1305
        %v1324 = vunpack.c.l.b16 %v1285
        %v1325 = vunpack.c.l.b16 %v1286
        %v1326 = vunpack.c.l.b16 %v1287
        %v1327 = vunpack.c.l.b16 %v1288
        %v1328 = vunpack.c.l.b16 %v1289
        %v1329 = vunpack.c.l.b16 %v1290
        %v1330 = vunpack.c.l.b16 %v1291
        %v1331 = vunpack.c.l.b16 %v1292
        %v1332 = vunpack.c.l.b16 %v1293
        %v1333 = vunpack.c.l.b16 %v1294
        %v1334 = vunpack.c.l.b16 %v1295
        %v1335 = vunpack.c.l.b16 %v1296
        %v1336 = vunpack.c.l.b16 %v1297
        %v1337 = vunpack.c.l.b16 %v1298
        %v1338 = vunpack.c.l.b16 %v1299
        %v1339 = vunpack.c.l.b16 %v1300
        %v1340 = vpack.c.b16 %v1325, %v1324
        %v1341 = vpack.c.b16 %v1327, %v1326
        %v1342 = vpack.c.b16 %v1329, %v1328
        %v1343 = vpack.c.b16 %v1331, %v1330
        %v1344 = vpack.c.b16 %v1333, %v1332
        %v1345 = vpack.c.b16 %v1335, %v1334
        %v1346 = vpack.c.b16 %v1337, %v1336
        %v1347 = vpack.c.b16 %v1339, %v1338
        %1356 = vmatprep.subr.bf16.mxu0 0
        %1357 = vmatpush1.bf16.msra.mxu0 %v1340
        %1358 = vmatprep.subr.bf16.mxu0 0
        %1359 = vmatpush1.bf16.msra.mxu0 %v1341
        %1360 = vmatprep.subr.bf16.mxu0 0
        %1361 = vmatpush1.bf16.msra.mxu0 %v1342
        %1362 = vmatprep.subr.bf16.mxu0 0
        %1363 = vmatpush1.bf16.msra.mxu0 %v1343
        %1364 = vmatprep.subr.bf16.mxu0 0
        %1365 = vmatpush1.bf16.msra.mxu0 %v1344
        %1366 = vmatprep.subr.bf16.mxu0 0
        %1367 = vmatpush1.bf16.msra.mxu0 %v1345
        %1368 = vmatprep.subr.bf16.mxu0 0
        %1369 = vmatpush1.bf16.msra.mxu0 %v1346
        %1370 = vmatprep.subr.bf16.mxu0 0
        %1371 = vmatpush1.bf16.msra.mxu0 %v1347
        %1372 = vmatprep.subr.bf16.mxu0 0
        %1373 = vmatpush1.bf16.msra.mxu0 0
        %1374 = vmatprep.subr.bf16.mxu0 0
        %1375 = vmatpush1.bf16.msra.mxu0 0
        %1376 = vmatprep.subr.bf16.mxu0 0
        %1377 = vmatpush1.bf16.msra.mxu0 0
        %1378 = vmatprep.subr.bf16.mxu0 0
        %1379 = vmatpush1.bf16.msra.mxu0 0
        %1380 = vmatprep.subr.bf16.mxu0 0
        %1381 = vmatpush1.bf16.msra.mxu0 0
        %1382 = vmatprep.subr.bf16.mxu0 0
        %1383 = vmatpush1.bf16.msra.mxu0 0
        %1384 = vmatprep.subr.bf16.mxu0 0
        %1385 = vmatpush1.bf16.msra.mxu0 0
        %1386 = vmatprep.subr.bf16.mxu0 0
        %1387 = vmatpush1.bf16.msra.mxu0 0
        %1388 = vmatprep.mubr.bf16.mxu0 0
        %1389 = vmatmul.mubr.bf16.gmra.mrb[0].mxu0 %v1284
        %v1390 = vpop.f32.mrb[0].mxu0
        %v1391 = vadd.f32 %v1306, %v1390
        %v1392 = vpop.f32.mrb[0].mxu0
        %v1393 = vpop.f32.mrb[0].mxu0
        %v1394 = vadd.f32 %v1306, %v1393
        %v1395 = vpop.f32.mrb[0].mxu0
        %1396 = vdwg.mxu0
        %v1397 = vld [vmem:[#allocation4] sm:$0x1]
        %v1398 = vld [vmem:[#allocation6] sm:$0x1]
        %v1399 = vadd.f32 %v496, %v1391
        %v1400 = vadd.f32 %v497, %v1394
        %1401 = vadd.xlane.f32.xlu0 %v1399
        %v1402 = vpop.xlane.xlu0 %1401
        %1403 = vadd.xlane.f32.xlu0 %v1400
        %v1404 = vpop.xlane.xlu0 %1403
        %v1405 = vrcp.pop 128.0
        %v1406 = vmul.f32 %v1402, %v1405
        %v1407 = vmul.f32 %v1404, %v1405
        %v1408 = vsub.f32 %v1399, %v1406
        %v1409 = vsub.f32 %v1400, %v1407
        %v1410 = vmul.f32 %v1408, %v1408
        %v1411 = vmul.f32 %v1409, %v1409
        %1412 = vadd.xlane.f32.xlu0 %v1410
        %v1413 = vpop.xlane.xlu0 %1412
        %1414 = vadd.xlane.f32.xlu0 %v1411
        %v1415 = vpop.xlane.xlu0 %1414
        %v1416 = vmul.f32 %v1413, %v1405
        %v1417 = vmul.f32 %v1415, %v1405
        %v1418 = vadd.f32 %v1416, 1e-12
        %v1419 = vadd.f32 %v1417, 1e-12
        %v1420 = vrsqrt.pop %v1418
        %v1421 = vrsqrt.pop %v1419
        %v1422 = vmul.f32 %v1408, %v1420
        %v1423 = vmul.f32 %v1409, %v1421
        %v1425 = vlaneseq
        %v1426 = vshrl.u32 %v1425, 7
        %v1427 = vsub.s32 0, %v1426
        %v1428 = vrot.slane %v1397, %v1427
        %v1430 = vmul.f32 %v1422, %v1428
        %v1431 = vmul.f32 %v1423, %v1428
        %v1433 = vlaneseq
        %v1434 = vshrl.u32 %v1433, 7
        %v1435 = vsub.s32 0, %v1434
        %v1436 = vrot.slane %v1398, %v1435
        %v1438 = vadd.f32 %v1430, %v1436
        %v1439 = vadd.f32 %v1431, %v1436
        %v1440 = vpack.c.bf16 %v1439, %v1438
        %v1441 = vld [vmem:[%s8] sm:$0xff]
        %v1442 = vld [vmem:[%s8 + $0x8] sm:$0xff]
        %v1443 = vld [vmem:[%s8 + $0x10] sm:$0xff]
        %v1444 = vld [vmem:[%s8 + $0x18] sm:$0xff]
        %v1445 = vld [vmem:[%s8 + $0x20] sm:$0xff]
        %v1446 = vld [vmem:[%s8 + $0x28] sm:$0xff]
        %v1447 = vld [vmem:[%s8 + $0x30] sm:$0xff]
        %v1448 = vld [vmem:[%s8 + $0x38] sm:$0xff]
        %v1449 = vld [vmem:[%s8 + $0x40] sm:$0xff]
        %v1450 = vld [vmem:[%s8 + $0x48] sm:$0xff]
        %v1451 = vld [vmem:[%s8 + $0x50] sm:$0xff]
        %v1452 = vld [vmem:[%s8 + $0x58] sm:$0xff]
        %v1453 = vld [vmem:[%s8 + $0x60] sm:$0xff]
        %v1454 = vld [vmem:[%s8 + $0x68] sm:$0xff]
        %v1455 = vld [vmem:[%s8 + $0x70] sm:$0xff]
        %v1456 = vld [vmem:[%s8 + $0x78] sm:$0xff]
        %v1457 = vld [vmem:[#allocation7] sm:$0x3]
        %v1459 = vlaneseq
        %v1460 = vshrl.u32 %v1459, 7
        %v1461 = vsub.s32 0, %v1460
        %v1462 = vrot.slane %v1457, %v1461
        %v1463 = vlaneseq
        %v1464 = vshrl.u32 %v1463, 7
        %v1465 = vsub.s32 1, %v1464
        %v1466 = vrot.slane %v1457, %v1465
        %v1485 = vunpack.c.l.b16 %v1441
        %v1486 = vunpack.c.h.b16 %v1441
        %v1487 = vunpack.c.l.b16 %v1442
        %v1488 = vunpack.c.h.b16 %v1442
        %v1489 = vunpack.c.l.b16 %v1443
        %v1490 = vunpack.c.h.b16 %v1443
        %v1491 = vunpack.c.l.b16 %v1444
        %v1492 = vunpack.c.h.b16 %v1444
        %v1493 = vunpack.c.l.b16 %v1445
        %v1494 = vunpack.c.h.b16 %v1445
        %v1495 = vunpack.c.l.b16 %v1446
        %v1496 = vunpack.c.h.b16 %v1446
        %v1497 = vunpack.c.l.b16 %v1447
        %v1498 = vunpack.c.h.b16 %v1447
        %v1499 = vunpack.c.l.b16 %v1448
        %v1500 = vunpack.c.h.b16 %v1448
        %v1501 = vunpack.c.l.b16 %v1449
        %v1502 = vunpack.c.h.b16 %v1449
        %v1503 = vunpack.c.l.b16 %v1450
        %v1504 = vunpack.c.h.b16 %v1450
        %v1505 = vunpack.c.l.b16 %v1451
        %v1506 = vunpack.c.h.b16 %v1451
        %v1507 = vunpack.c.l.b16 %v1452
        %v1508 = vunpack.c.h.b16 %v1452
        %v1509 = vunpack.c.l.b16 %v1453
        %v1510 = vunpack.c.h.b16 %v1453
        %v1511 = vunpack.c.l.b16 %v1454
        %v1512 = vunpack.c.h.b16 %v1454
        %v1513 = vunpack.c.l.b16 %v1455
        %v1514 = vunpack.c.h.b16 %v1455
        %v1515 = vunpack.c.l.b16 %v1456
        %v1516 = vunpack.c.h.b16 %v1456
        %v1517 = vpack.c.b16 %v1487, %v1485
        %v1518 = vpack.c.b16 %v1488, %v1486
        %v1519 = vpack.c.b16 %v1491, %v1489
        %v1520 = vpack.c.b16 %v1492, %v1490
        %v1521 = vpack.c.b16 %v1495, %v1493
        %v1522 = vpack.c.b16 %v1496, %v1494
        %v1523 = vpack.c.b16 %v1499, %v1497
        %v1524 = vpack.c.b16 %v1500, %v1498
        %v1525 = vpack.c.b16 %v1503, %v1501
        %v1526 = vpack.c.b16 %v1504, %v1502
        %v1527 = vpack.c.b16 %v1507, %v1505
        %v1528 = vpack.c.b16 %v1508, %v1506
        %v1529 = vpack.c.b16 %v1511, %v1509
        %v1530 = vpack.c.b16 %v1512, %v1510
        %v1531 = vpack.c.b16 %v1515, %v1513
        %v1532 = vpack.c.b16 %v1516, %v1514
        %1549 = vmatprep.subr.bf16.mxu0 %v1518
        %1550 = vmatpush1.bf16.msra.mxu0 %v1517
        %1551 = vmatprep.subr.bf16.mxu0 %v1520
        %1552 = vmatpush1.bf16.msra.mxu0 %v1519
        %1553 = vmatprep.subr.bf16.mxu0 %v1522
        %1554 = vmatpush1.bf16.msra.mxu0 %v1521
        %1555 = vmatprep.subr.bf16.mxu0 %v1524
        %1556 = vmatpush1.bf16.msra.mxu0 %v1523
        %1557 = vmatprep.subr.bf16.mxu0 %v1526
        %1558 = vmatpush1.bf16.msra.mxu0 %v1525
        %1559 = vmatprep.subr.bf16.mxu0 %v1528
        %1560 = vmatpush1.bf16.msra.mxu0 %v1527
        %1561 = vmatprep.subr.bf16.mxu0 %v1530
        %1562 = vmatpush1.bf16.msra.mxu0 %v1529
        %1563 = vmatprep.subr.bf16.mxu0 %v1532
        %1564 = vmatpush1.bf16.msra.mxu0 %v1531
        %1565 = vmatprep.subr.bf16.mxu0 0
        %1566 = vmatpush1.bf16.msra.mxu0 0
        %1567 = vmatprep.subr.bf16.mxu0 0
        %1568 = vmatpush1.bf16.msra.mxu0 0
        %1569 = vmatprep.subr.bf16.mxu0 0
        %1570 = vmatpush1.bf16.msra.mxu0 0
        %1571 = vmatprep.subr.bf16.mxu0 0
        %1572 = vmatpush1.bf16.msra.mxu0 0
        %1573 = vmatprep.subr.bf16.mxu0 0
        %1574 = vmatpush1.bf16.msra.mxu0 0
        %1575 = vmatprep.subr.bf16.mxu0 0
        %1576 = vmatpush1.bf16.msra.mxu0 0
        %1577 = vmatprep.subr.bf16.mxu0 0
        %1578 = vmatpush1.bf16.msra.mxu0 0
        %1579 = vmatprep.subr.bf16.mxu0 0
        %1580 = vmatpush1.bf16.msra.mxu0 0
        %1581 = vmatprep.mubr.bf16.mxu0 0
        %1582 = vmatmul.mubr.bf16.gmra.mrb[0].mxu0 %v1440
        %v1583 = vpop.f32.mrb[0].mxu0
        %v1584 = vadd.f32 %v1462, %v1583
        %v1585 = vpop.f32.mrb[0].mxu0
        %v1586 = vadd.f32 %v1466, %v1585
        %v1587 = vpop.f32.mrb[0].mxu0
        %v1588 = vadd.f32 %v1462, %v1587
        %v1589 = vpop.f32.mrb[0].mxu0
        %v1590 = vadd.f32 %v1466, %v1589
        %1591 = vdwg.mxu0
        %v1592 = vmax.f32 %v1584, 0.0
        %v1593 = vmax.f32 %v1586, 0.0
        %v1594 = vmax.f32 %v1588, 0.0
        %v1595 = vmax.f32 %v1590, 0.0
        %v1596 = vpack.c.bf16 %v1594, %v1592
        %v1597 = vpack.c.bf16 %v1595, %v1593
        %v1598 = vld [vmem:[%s10] sm:$0xf]
        %v1599 = vld [vmem:[%s10 + $0x4] sm:$0xf]
        %v1600 = vld [vmem:[%s10 + $0x8] sm:$0xf]
        %v1601 = vld [vmem:[%s10 + $0xc] sm:$0xf]
        %v1602 = vld [vmem:[%s10 + $0x10] sm:$0xf]
        %v1603 = vld [vmem:[%s10 + $0x14] sm:$0xf]
        %v1604 = vld [vmem:[%s10 + $0x18] sm:$0xf]
        %v1605 = vld [vmem:[%s10 + $0x1c] sm:$0xf]
        %v1606 = vld [vmem:[%s10 + $0x20] sm:$0xf]
        %v1607 = vld [vmem:[%s10 + $0x24] sm:$0xf]
        %v1608 = vld [vmem:[%s10 + $0x28] sm:$0xf]
        %v1609 = vld [vmem:[%s10 + $0x2c] sm:$0xf]
        %v1610 = vld [vmem:[%s10 + $0x30] sm:$0xf]
        %v1611 = vld [vmem:[%s10 + $0x34] sm:$0xf]
        %v1612 = vld [vmem:[%s10 + $0x38] sm:$0xf]
        %v1613 = vld [vmem:[%s10 + $0x3c] sm:$0xf]
        %v1614 = vld [vmem:[%s10 + $0x40] sm:$0xf]
        %v1615 = vld [vmem:[%s10 + $0x44] sm:$0xf]
        %v1616 = vld [vmem:[%s10 + $0x48] sm:$0xf]
        %v1617 = vld [vmem:[%s10 + $0x4c] sm:$0xf]
        %v1618 = vld [vmem:[%s10 + $0x50] sm:$0xf]
        %v1619 = vld [vmem:[%s10 + $0x54] sm:$0xf]
        %v1620 = vld [vmem:[%s10 + $0x58] sm:$0xf]
        %v1621 = vld [vmem:[%s10 + $0x5c] sm:$0xf]
        %v1622 = vld [vmem:[%s10 + $0x60] sm:$0xf]
        %v1623 = vld [vmem:[%s10 + $0x64] sm:$0xf]
        %v1624 = vld [vmem:[%s10 + $0x68] sm:$0xf]
        %v1625 = vld [vmem:[%s10 + $0x6c] sm:$0xf]
        %v1626 = vld [vmem:[%s10 + $0x70] sm:$0xf]
        %v1627 = vld [vmem:[%s10 + $0x74] sm:$0xf]
        %v1628 = vld [vmem:[%s10 + $0x78] sm:$0xf]
        %v1629 = vld [vmem:[%s10 + $0x7c] sm:$0xf]
        %v1630 = vld [vmem:[#allocation9] sm:$0x1]
        %v1632 = vlaneseq
        %v1633 = vshrl.u32 %v1632, 7
        %v1634 = vsub.s32 0, %v1633
        %v1635 = vrot.slane %v1630, %v1634
        %v1669 = vunpack.c.l.b16 %v1598
        %v1670 = vunpack.c.l.b16 %v1599
        %v1671 = vunpack.c.l.b16 %v1600
        %v1672 = vunpack.c.l.b16 %v1601
        %v1673 = vunpack.c.l.b16 %v1602
        %v1674 = vunpack.c.l.b16 %v1603
        %v1675 = vunpack.c.l.b16 %v1604
        %v1676 = vunpack.c.l.b16 %v1605
        %v1677 = vunpack.c.l.b16 %v1606
        %v1678 = vunpack.c.l.b16 %v1607
        %v1679 = vunpack.c.l.b16 %v1608
        %v1680 = vunpack.c.l.b16 %v1609
        %v1681 = vunpack.c.l.b16 %v1610
        %v1682 = vunpack.c.l.b16 %v1611
        %v1683 = vunpack.c.l.b16 %v1612
        %v1684 = vunpack.c.l.b16 %v1613
        %v1685 = vunpack.c.l.b16 %v1614
        %v1686 = vunpack.c.l.b16 %v1615
        %v1687 = vunpack.c.l.b16 %v1616
        %v1688 = vunpack.c.l.b16 %v1617
        %v1689 = vunpack.c.l.b16 %v1618
        %v1690 = vunpack.c.l.b16 %v1619
        %v1691 = vunpack.c.l.b16 %v1620
        %v1692 = vunpack.c.l.b16 %v1621
        %v1693 = vunpack.c.l.b16 %v1622
        %v1694 = vunpack.c.l.b16 %v1623
        %v1695 = vunpack.c.l.b16 %v1624
        %v1696 = vunpack.c.l.b16 %v1625
        %v1697 = vunpack.c.l.b16 %v1626
        %v1698 = vunpack.c.l.b16 %v1627
        %v1699 = vunpack.c.l.b16 %v1628
        %v1700 = vunpack.c.l.b16 %v1629
        %v1701 = vpack.c.b16 %v1670, %v1669
        %v1702 = vpack.c.b16 %v1672, %v1671
        %v1703 = vpack.c.b16 %v1674, %v1673
        %v1704 = vpack.c.b16 %v1676, %v1675
        %v1705 = vpack.c.b16 %v1678, %v1677
        %v1706 = vpack.c.b16 %v1680, %v1679
        %v1707 = vpack.c.b16 %v1682, %v1681
        %v1708 = vpack.c.b16 %v1684, %v1683
        %v1709 = vpack.c.b16 %v1686, %v1685
        %v1710 = vpack.c.b16 %v1688, %v1687
        %v1711 = vpack.c.b16 %v1690, %v1689
        %v1712 = vpack.c.b16 %v1692, %v1691
        %v1713 = vpack.c.b16 %v1694, %v1693
        %v1714 = vpack.c.b16 %v1696, %v1695
        %v1715 = vpack.c.b16 %v1698, %v1697
        %v1716 = vpack.c.b16 %v1700, %v1699
        %1733 = vmatprep.subr.bf16.mxu0 0
        %1734 = vmatpush1.bf16.msra.mxu0 %v1701
        %1735 = vmatprep.subr.bf16.mxu0 0
        %1736 = vmatpush1.bf16.msra.mxu0 %v1702
        %1737 = vmatprep.subr.bf16.mxu0 0
        %1738 = vmatpush1.bf16.msra.mxu0 %v1703
        %1739 = vmatprep.subr.bf16.mxu0 0
        %1740 = vmatpush1.bf16.msra.mxu0 %v1704
        %1741 = vmatprep.subr.bf16.mxu0 0
        %1742 = vmatpush1.bf16.msra.mxu0 %v1705
        %1743 = vmatprep.subr.bf16.mxu0 0
        %1744 = vmatpush1.bf16.msra.mxu0 %v1706
        %1745 = vmatprep.subr.bf16.mxu0 0
        %1746 = vmatpush1.bf16.msra.mxu0 %v1707
        %1747 = vmatprep.subr.bf16.mxu0 0
        %1748 = vmatpush1.bf16.msra.mxu0 %v1708
        %1749 = vmatprep.subr.bf16.mxu0 0
        %1750 = vmatpush1.bf16.msra.mxu0 %v1709
        %1751 = vmatprep.subr.bf16.mxu0 0
        %1752 = vmatpush1.bf16.msra.mxu0 %v1710
        %1753 = vmatprep.subr.bf16.mxu0 0
        %1754 = vmatpush1.bf16.msra.mxu0 %v1711
        %1755 = vmatprep.subr.bf16.mxu0 0
        %1756 = vmatpush1.bf16.msra.mxu0 %v1712
        %1757 = vmatprep.subr.bf16.mxu0 0
        %1758 = vmatpush1.bf16.msra.mxu0 %v1713
        %1759 = vmatprep.subr.bf16.mxu0 0
        %1760 = vmatpush1.bf16.msra.mxu0 %v1714
        %1761 = vmatprep.subr.bf16.mxu0 0
        %1762 = vmatpush1.bf16.msra.mxu0 %v1715
        %1763 = vmatprep.subr.bf16.mxu0 0
        %1764 = vmatpush1.bf16.msra.mxu0 %v1716
        %1765 = vmatprep.mubr.bf16.mxu0 %v1597
        %1766 = vmatmul.mubr.bf16.gmra.mrb[0].mxu0 %v1596
        %v1767 = vpop.f32.mrb[0].mxu0
        %v1768 = vadd.f32 %v1635, %v1767
        %v1769 = vpop.f32.mrb[0].mxu0
        %v1770 = vpop.f32.mrb[0].mxu0
        %v1771 = vadd.f32 %v1635, %v1770
        %v1772 = vpop.f32.mrb[0].mxu0
        %1773 = vdwg.mxu0
        %v1774 = vadd.f32 %v1438, %v1768
        %v1775 = vadd.f32 %v1439, %v1771
        %1776 = vadd.xlane.f32.xlu0 %v1774
        %v1777 = vpop.xlane.xlu0 %1776
        %1778 = vadd.xlane.f32.xlu0 %v1775
        %v1779 = vpop.xlane.xlu0 %1778
        %v1780 = vmul.f32 %v1777, %v1405
        %v1781 = vmul.f32 %v1779, %v1405
        %v1782 = vsub.f32 %v1774, %v1780
        %v1783 = vsub.f32 %v1775, %v1781
        %v1784 = vmul.f32 %v1782, %v1782
        %v1785 = vmul.f32 %v1783, %v1783
        %1786 = vadd.xlane.f32.xlu0 %v1784
        %v1787 = vpop.xlane.xlu0 %1786
        %1788 = vadd.xlane.f32.xlu0 %v1785
        %v1789 = vpop.xlane.xlu0 %1788
        %v1790 = vmul.f32 %v1787, %v1405
        %v1791 = vmul.f32 %v1789, %v1405
        %v1792 = vadd.f32 %v1790, 1e-12
        %v1793 = vadd.f32 %v1791, 1e-12
        %v1794 = vrsqrt.pop %v1792
        %v1795 = vrsqrt.pop %v1793
        %v1796 = vmul.f32 %v1782, %v1794
        %v1797 = vmul.f32 %v1783, %v1795
        %v1798 = vmul.f32 %v1796, %v1428
        %v1799 = vmul.f32 %v1797, %v1428
        %v1800 = vadd.f32 %v1798, %v1436
        %v1801 = vadd.f32 %v1799, %v1436
        %v1802 = vpack.c.bf16 %v1801, %v1800
        %v1804 = vunpack.c.l.b16 %v1802
        %v1805 = vunpack.c.h.b16 %v1802
        %v1806 = vpack.c.b16 %v1804, %v1804
        %v1807 = vpack.c.b16 %v1805, %v1805
        %1810 = vst [vmem:[%s492] sm:$0xf] %v1806
        %1811 = vst [vmem:[%s492 + $0x4] sm:$0xf] %v1807
        %p1812 = scmp.lt.s32.totalorder %s26, 1
        %s1813 = scalar_select %p1812, %s26, 1
        %s1814 = smul.addr %s1813, 2
        %s1815 = smul.addr %s1814, 4
        %s1816 = scalar_lea.vmem %s12, %s1815
        // Predicated region
        $region89: #{encoder_forward.2} parent=67 // pred_check
          %p1817 = pneg %p306
        $region90: #{encoder_forward.2} parent=67 // pred_check_branch
          %1819 = sbr.rel (%p1817) target = $region92
        $region91: #{encoder_forward.2} parent=67 // pred_region
          _
        $region92: #{encoder_forward.2} parent=67 // pred_fallthru
          _
      $region68: #{encoder_forward.2} parent=5 // pred_fallthru
        _
      %p1820 = scmp.le.s32.totalorder 2, %s21
      // Predicated region
      $region93: #{encoder_forward.2} parent=5 // pred_check
        %p1821 = pneg %p1820
      $region94: #{encoder_forward.2} parent=5 // pred_check_branch
        %1823 = sbr.rel (%p1821) target = $region96
      $region95: #{encoder_forward.2} parent=5 // pred_region
        %s1824 = ssub.s32 %s21, 2
        // Predicated region
        $region97: #{encoder_forward.2} parent=95 // pred_check
          %p1825 = pneg %p312
        $region98: #{encoder_forward.2} parent=95 // pred_check_branch
          %1827 = sbr.rel (%p1825) target = $region100
        $region99: #{encoder_forward.2} parent=95 // pred_region
          %p1828 = scmp.lt.s32.totalorder %s27, 1
          %s1829 = scalar_select %p1828, %s27, 1
          %s1830 = smul.addr %s1829, 2
          %s1831 = smul.addr %s1830, 4
          %s1832 = scalar_lea.vmem %s12, %s1831
        $region100: #{encoder_forward.2} parent=95 // pred_fallthru
          _
      $region96: #{encoder_forward.2} parent=5 // pred_fallthru
        _
    $region6: #{encoder_forward.2} parent=1 // loop_footer
      %s25 = sadd.s32 1, %s21
    $region7: #{encoder_forward.2} parent=1 // loop_footer_branch
      %20 = sbr.rel target = $region3
    $region8: #{encoder_forward.2} parent=1 // loop_exit
      _
    %1833 = vsyncpa [#allocation3], 1
    %s1834 = scalar_lea.sflag [#allocation3], 1
    %1835 = vsyncpa %s1834, 1
    %1836 = vsyncpa [#allocation5], 1
    %1837 = vsyncpa [#allocation8], 1

</llo_original>
